<compile_context>
chip_gen: v7x
topology: tpu7x:2x2x1
jax: 0.10.0
libtpu: 0.0.40
codegen_flags: <defaults>
</compile_context>

<pallas_src>
import jax
import jax.numpy as jnp
from jax import lax
from jax.experimental import pallas as pl
from jax.experimental.pallas import tpu as pltpu

# Static model configuration (matches the PyTorch instantiation).
H = 16            # spatial height
W = 16            # spatial width
CIN = 4           # input channels
C1 = 8            # conv1 output channels
C2 = 8            # conv2 output channels
KH = 3            # conv kernel height (3x3, stride 1, padding 1)
KW = 3
NUM_CLASSES = 10
IN_FEATURES = C2 * H * W        # 2048 (PyTorch NCHW flatten of conv2 output)
NC_PAD = 128                    # fc output columns padded to one full lane width


# ----------------------------------------------------------------------------
# Fused Pallas kernel: Bt images per grid step, everything VMEM/vreg-resident.
# ----------------------------------------------------------------------------
def _fused_forward_kernel(x_ref, w1_ref, b1_ref, w2_ref, b2_ref, wfc_ref,
                          bfc_ref, out_ref):
    """
    x_ref   : (Bt, H+2, W*CIN)   host-padded inputs (rows 0 and H+1 are zero)
    w1_ref  : (KH, W*CIN, W*C1)  banded conv1 weights (one band per ki)
    b1_ref  : (1, W*C1)          conv1 bias tiled across W
    w2_ref  : (KH, W*C1, W*C2)   banded conv2 weights
    b2_ref  : (1, W*C2)          conv2 bias tiled across W
    wfc_ref : (H*W*C2, NC_PAD)   fc1 weight, permuted + column-padded
    bfc_ref : (1, NC_PAD)        fc1 bias (-1e30 in padded columns)
    out_ref : (Bt, NC_PAD)       softmax probabilities (padded columns -> 0)
    """
    f32 = jnp.float32
    Bt = x_ref.shape[0]
    M = Bt * H                                        # matmul rows (>= 128)

    # ---- conv1 (3x3, pad=1) + ReLU: 3 row-shifted banded matmuls -------------
    # W-direction padding is baked into the band weights; H-direction padding
    # was done on the host, so each ki just reads a shifted H-row window.
    acc = jnp.zeros((M, W * C1), f32)
    for ki in range(KH):
        lhs = x_ref[:, pl.ds(ki, H), :].reshape(M, W * CIN)
        acc = acc + jnp.dot(lhs, w1_ref[ki], preferred_element_type=f32)
    h1 = jnp.maximum(acc + b1_ref[...], 0.0)          # (M, 128), lane dense

    # ---- conv2 (3x3, pad=1) + ReLU: row shifts done in-register --------------
    # h1 shifted down/up by one row per image, boundary rows zeroed (padding=1).
    h1b = h1.reshape(Bt, H, W * C1)
    zrow = jnp.zeros((Bt, 1, W * C1), f32)
    h1_dn = jnp.concatenate([zrow, h1b[:, :H - 1, :]], axis=1).reshape(M, W * C1)
    h1_up = jnp.concatenate([h1b[:, 1:, :], zrow], axis=1).reshape(M, W * C1)

    acc = jnp.dot(h1_dn, w2_ref[0], preferred_element_type=f32)
    acc = acc + jnp.dot(h1, w2_ref[1], preferred_element_type=f32)
    acc = acc + jnp.dot(h1_up, w2_ref[2], preferred_element_type=f32)
    h2 = jnp.maximum(acc + b2_ref[...], 0.0)          # (M, 128), lane dense

    # ---- flatten + fc1: sum_h (Bt, 128) @ (128, NC_PAD) ----------------------
    # The (h, w, c) -> PyTorch (c, h, w) flatten permutation is baked into wfc
    # at pack time; row-block offsets h*128 are sublane/lane aligned.
    h2b = h2.reshape(Bt, H, W * C2)
    logits = jnp.zeros((Bt, NC_PAD), f32)
    for h in range(H):
        logits = logits + jnp.dot(h2b[:, h, :],
                                  wfc_ref[pl.ds(h * W * C2, W * C2), :],
                                  preferred_element_type=f32)
    logits = logits + bfc_ref[...]                    # (Bt, NC_PAD)

    # ---- softmax(dim=1): exact divide (padded columns -> exactly 0) ----------
    m = jnp.max(logits, axis=-1, keepdims=True)
    e = jnp.exp(logits - m)
    out_ref[...] = (e / jnp.sum(e, axis=-1, keepdims=True)).astype(out_ref.dtype)


def fused_forward(packed, x_padded, batch_tile):
    """x_padded: (B_pad, H+2, W*CIN) f32, B_pad % batch_tile == 0.
    Returns padded probabilities (B_pad, NC_PAD)."""
    b_pad = x_padded.shape[0]
    assert b_pad % batch_tile == 0
    n_steps = b_pad // batch_tile

    flops = b_pad * (2 * H * (W * CIN) * (W * C1) * KH
                     + 2 * H * (W * C1) * (W * C2) * KH
                     + 2 * IN_FEATURES * NC_PAD)
    bytes_accessed = 4 * (b_pad * (H + 2) * W * CIN
                          + KH * W * CIN * W * C1 + W * C1
                          + KH * W * C1 * W * C2 + W * C2
                          + IN_FEATURES * NC_PAD + NC_PAD
                          + b_pad * NC_PAD)

    return pl.pallas_call(
        _fused_forward_kernel,
        out_shape=jax.ShapeDtypeStruct((b_pad, NC_PAD), jnp.float32),
        grid_spec=pltpu.PrefetchScalarGridSpec(
            num_scalar_prefetch=0,
            grid=(n_steps,),
            in_specs=[
                pl.BlockSpec((batch_tile, H + 2, W * CIN), lambda b: (b, 0, 0)),
                pl.BlockSpec((KH, W * CIN, W * C1), lambda b: (0, 0, 0)),  # w1 band
                pl.BlockSpec((1, W * C1), lambda b: (0, 0)),               # b1 row
                pl.BlockSpec((KH, W * C1, W * C2), lambda b: (0, 0, 0)),   # w2 band
                pl.BlockSpec((1, W * C2), lambda b: (0, 0)),               # b2 row
                pl.BlockSpec((IN_FEATURES, NC_PAD), lambda b: (0, 0)),     # fc weight
                pl.BlockSpec((1, NC_PAD), lambda b: (0, 0)),               # fc bias
            ],
            out_specs=pl.BlockSpec((batch_tile, NC_PAD), lambda b: (b, 0)),
        ),
        compiler_params=pltpu.CompilerParams(
            dimension_semantics=("parallel",),
            vmem_limit_bytes=32 * 1024 * 1024,
        ),
        cost_estimate=pl.CostEstimate(
            flops=flops,
            transcendentals=b_pad * NC_PAD,
            bytes_accessed=bytes_accessed,
        ),
    )(x_padded, packed["w1band"], packed["b1row"], packed["w2band"],
      packed["b2row"], packed["wfc"], packed["bfc"])


def forward(packed, x_nchw, batch_tile=None):
    """Full forward: NCHW input -> (B, NUM_CLASSES) softmax probabilities."""
    B = x_nchw.shape[0]
    if batch_tile is None:
        batch_tile = 16 if B >= 16 else 8     # Bt*H >= 128 matmul rows per step
    b_pad = ((B + batch_tile - 1) // batch_tile) * batch_tile
    # NCHW -> NHWC -> (B, H, W*CIN); zero-pad H (conv padding=1) + batch tail.
    x_rows = jnp.transpose(x_nchw, (0, 2, 3, 1)).reshape(B, H, W * CIN)
    x_padded = jnp.pad(x_rows, ((0, b_pad - B), (1, 1), (0, 0)))
    probs = fused_forward(packed, x_padded, batch_tile)
    return probs[:B, :NUM_CLASSES]


# ----------------------------------------------------------------------------
# Parameters: PyTorch layouts + one-time packing into kernel-friendly layouts.
# ----------------------------------------------------------------------------
def init_params(key):
    """Parameters in PyTorch layouts (Conv2d: OIHW, Linear: (out, in))."""
    k1, k2, k3 = jax.random.split(key, 3)
    return {
        "conv1_w": 0.1 * jax.random.normal(k1, (C1, CIN, KH, KW), jnp.float32),
        "conv1_b": jnp.linspace(-0.1, 0.1, C1, dtype=jnp.float32),
        "conv2_w": 0.1 * jax.random.normal(k2, (C2, C1, KH, KW), jnp.float32),
        "conv2_b": jnp.linspace(-0.1, 0.1, C2, dtype=jnp.float32),
        "fc1_w": 0.02 * jax.random.normal(k3, (NUM_CLASSES, IN_FEATURES), jnp.float32),
        "fc1_b": jnp.linspace(-0.05, 0.05, NUM_CLASSES, dtype=jnp.float32),
    }


def _make_band(w_oihw):
    """(Cout, Cin, 3, 3) -> (3, W*Cin, W*Cout) block-banded conv weights.

    band[ki][u*Cin + ci, w*Cout + co] = w[co, ci, ki, kj] where u = w + kj - 1,
    i.e. the W-direction padding=1 is baked into the band structure.
    """
    cout, cin, kh, kw = w_oihw.shape
    bands = []
    for ki in range(kh):
        acc = jnp.zeros((W * cin, W * cout), jnp.float32)
        for kj in range(kw):
            shift = jnp.eye(W, W, k=1 - kj, dtype=jnp.float32)  # S[u,w]=1 iff u=w+kj-1
            acc = acc + jnp.kron(shift, w_oihw[:, :, ki, kj].T)
        bands.append(acc)
    return jnp.stack(bands)


def pack_params(params):
    """One-time conversion (hoisted out of forward) to kernel layouts."""
    # fc1: PyTorch (NUM_CLASSES, C*H*W) with (c, h, w) flatten order
    #   -> (H*W*C2, NC_PAD) matching the kernel's (h, w, c) activation layout.
    wfc = jnp.transpose(params["fc1_w"].reshape(NUM_CLASSES, C2, H, W),
                        (2, 3, 1, 0)).reshape(H * W * C2, NUM_CLASSES)
    wfc = jnp.pad(wfc, ((0, 0), (0, NC_PAD - NUM_CLASSES)))
    bfc = jnp.full((1, NC_PAD), -1e30, jnp.float32)
    bfc = bfc.at[0, :NUM_CLASSES].set(params["fc1_b"])
    return {
        "w1band": _make_band(params["conv1_w"]),
        "b1row": jnp.tile(params["conv1_b"], W).reshape(1, W * C1),
        "w2band": _make_band(params["conv2_w"]),
        "b2row": jnp.tile(params["conv2_b"], W).reshape(1, W * C2),
        "wfc": wfc,
        "bfc": bfc,
    }


# ----------------------------------------------------------------------------
# Pure-JAX reference of the PyTorch module (for validation).
# ----------------------------------------------------------------------------
def forward_reference(params, x_nchw):
    def conv(x, w, b):
        y = jax.lax.conv_general_dilated(
            x, w, window_strides=(1, 1), padding=((1, 1), (1, 1)),
            dimension_numbers=("NCHW", "OIHW", "NCHW"))
        return jnp.maximum(y + b[None, :, None, None], 0.0)

    y = conv(x_nchw, params["conv1_w"], params["conv1_b"])
    y = conv(y, params["conv2_w"], params["conv2_b"])
    y = y.reshape(y.shape[0], -1)                       # NCHW flatten
    logits = y @ params["fc1_w"].T + params["fc1_b"]
    return jax.nn.softmax(logits, axis=1)


# ----------------------------------------------------------------------------
if __name__ == "__main__":
    key = jax.random.PRNGKey(0)
    kx, kp = jax.random.split(key)

    # Small shapes consistent with the module: batch=2, channels=4, 16x16 NCHW.
    x = jax.random.normal(kx, (2, CIN, H, W), jnp.float32)
    params = init_params(kp)
    packed = pack_params(params)          # weight layout transforms: done once

    fwd = jax.jit(forward)
    out = jax.block_until_ready(fwd(packed, x))

    assert out.shape == (2, NUM_CLASSES), out.shape
    # softmax rows must sum to 1 (exact divide in-kernel)
    assert jnp.allclose(jnp.sum(out, axis=1), 1.0, atol=1e-5), jnp.sum(out, axis=1)
    # cross-check against the pure-JAX reference of the PyTorch module
    ref = jax.block_until_ready(forward_reference(params, x))
    assert jnp.allclose(out, ref, atol=5e-4, rtol=1e-3), float(jnp.max(jnp.abs(out - ref)))
    print("KERNEL_OK")
</pallas_src>

<mosaic_0001>
module attributes {stable_mosaic.version = 11 : i64} {
  func.func @_fused_forward_kernel(%arg0: i32, %arg1: memref<8x18x64xf32, #tpu.memory_space<vmem>>, %arg2: memref<3x64x128xf32, #tpu.memory_space<vmem>>, %arg3: memref<1x128xf32, #tpu.memory_space<vmem>>, %arg4: memref<3x128x128xf32, #tpu.memory_space<vmem>>, %arg5: memref<1x128xf32, #tpu.memory_space<vmem>>, %arg6: memref<2048x128xf32, #tpu.memory_space<vmem>>, %arg7: memref<1x128xf32, #tpu.memory_space<vmem>>, %arg8: memref<8x128xf32, #tpu.memory_space<vmem>>) attributes {dimension_semantics = [#tpu.dimension_semantics<parallel>], iteration_bounds = array<i64: 1>, scalar_prefetch = 0 : i64, scratch_operands = 0 : i64, tpu.core_type = #tpu.core_type<tc>, window_params = [{transform_indices = @transform_0, window_bounds = array<i64: 8, 18, 64>}, {pipeline_mode = #tpu.pipeline_mode<synchronous>, transform_indices = @transform_1, window_bounds = array<i64: 3, 64, 128>}, {pipeline_mode = #tpu.pipeline_mode<synchronous>, transform_indices = @transform_2, window_bounds = array<i64: 1, 128>}, {pipeline_mode = #tpu.pipeline_mode<synchronous>, transform_indices = @transform_3, window_bounds = array<i64: 3, 128, 128>}, {pipeline_mode = #tpu.pipeline_mode<synchronous>, transform_indices = @transform_4, window_bounds = array<i64: 1, 128>}, {pipeline_mode = #tpu.pipeline_mode<synchronous>, transform_indices = @transform_5, window_bounds = array<i64: 2048, 128>}, {pipeline_mode = #tpu.pipeline_mode<synchronous>, transform_indices = @transform_6, window_bounds = array<i64: 1, 128>}, {transform_indices = @transform_7, window_bounds = array<i64: 8, 128>}]} {
    %cst = arith.constant 0.000000e+00 : f32
    %0 = vector.broadcast %cst : f32 to vector<128x128xf32>
    %c0 = arith.constant 0 : index
    %c0_0 = arith.constant 0 : index
    %c0_1 = arith.constant 0 : index
    %1 = vector.load %arg1[%c0, %c0_0, %c0_1] : memref<8x18x64xf32, #tpu.memory_space<vmem>>, vector<8x16x64xf32>
    %2 = vector.shape_cast %1 : vector<8x16x64xf32> to vector<128x64xf32>
    %c0_2 = arith.constant 0 : index
    %c0_3 = arith.constant 0 : index
    %c0_4 = arith.constant 0 : index
    %3 = vector.load %arg2[%c0_2, %c0_3, %c0_4] : memref<3x64x128xf32, #tpu.memory_space<vmem>>, vector<1x64x128xf32>
    %4 = vector.shape_cast %3 : vector<1x64x128xf32> to vector<64x128xf32>
    %cst_5 = arith.constant dense<0.000000e+00> : vector<128x128xf32>
    %5 = tpu.matmul %2, %4, %cst_5 {dimension_numbers = #tpu.dot_dimension_numbers<[1], [0], [0], [1], [0, 0, 1, 1], [], []>} : vector<128x64xf32>, vector<64x128xf32>, vector<128x128xf32> -> vector<128x128xf32>
    %6 = arith.addf %0, %5 : vector<128x128xf32>
    %c0_6 = arith.constant 0 : index
    %c1 = arith.constant 1 : index
    %c0_7 = arith.constant 0 : index
    %7 = vector.load %arg1[%c0_6, %c1, %c0_7] : memref<8x18x64xf32, #tpu.memory_space<vmem>>, vector<8x16x64xf32>
    %8 = vector.shape_cast %7 : vector<8x16x64xf32> to vector<128x64xf32>
    %c1_8 = arith.constant 1 : index
    %c0_9 = arith.constant 0 : index
    %c0_10 = arith.constant 0 : index
    %9 = vector.load %arg2[%c1_8, %c0_9, %c0_10] : memref<3x64x128xf32, #tpu.memory_space<vmem>>, vector<1x64x128xf32>
    %10 = vector.shape_cast %9 : vector<1x64x128xf32> to vector<64x128xf32>
    %cst_11 = arith.constant dense<0.000000e+00> : vector<128x128xf32>
    %11 = tpu.matmul %8, %10, %cst_11 {dimension_numbers = #tpu.dot_dimension_numbers<[1], [0], [0], [1], [0, 0, 1, 1], [], []>} : vector<128x64xf32>, vector<64x128xf32>, vector<128x128xf32> -> vector<128x128xf32>
    %12 = arith.addf %6, %11 : vector<128x128xf32>
    %c0_12 = arith.constant 0 : index
    %c2 = arith.constant 2 : index
    %c0_13 = arith.constant 0 : index
    %13 = vector.load %arg1[%c0_12, %c2, %c0_13] : memref<8x18x64xf32, #tpu.memory_space<vmem>>, vector<8x16x64xf32>
    %14 = vector.shape_cast %13 : vector<8x16x64xf32> to vector<128x64xf32>
    %c2_14 = arith.constant 2 : index
    %c0_15 = arith.constant 0 : index
    %c0_16 = arith.constant 0 : index
    %15 = vector.load %arg2[%c2_14, %c0_15, %c0_16] : memref<3x64x128xf32, #tpu.memory_space<vmem>>, vector<1x64x128xf32>
    %16 = vector.shape_cast %15 : vector<1x64x128xf32> to vector<64x128xf32>
    %cst_17 = arith.constant dense<0.000000e+00> : vector<128x128xf32>
    %17 = tpu.matmul %14, %16, %cst_17 {dimension_numbers = #tpu.dot_dimension_numbers<[1], [0], [0], [1], [0, 0, 1, 1], [], []>} : vector<128x64xf32>, vector<64x128xf32>, vector<128x128xf32> -> vector<128x128xf32>
    %18 = arith.addf %12, %17 : vector<128x128xf32>
    %c0_18 = arith.constant 0 : index
    %c0_19 = arith.constant 0 : index
    %19 = vector.load %arg3[%c0_18, %c0_19] : memref<1x128xf32, #tpu.memory_space<vmem>>, vector<1x128xf32>
    %20 = vector.broadcast %19 : vector<1x128xf32> to vector<128x128xf32>
    %21 = arith.addf %18, %20 : vector<128x128xf32>
    %cst_20 = arith.constant 0.000000e+00 : f32
    %22 = vector.broadcast %cst_20 : f32 to vector<128x128xf32>
    %23 = arith.maximumf %21, %22 : vector<128x128xf32>
    %24 = vector.shape_cast %23 : vector<128x128xf32> to vector<8x16x128xf32>
    %cst_21 = arith.constant 0.000000e+00 : f32
    %25 = vector.broadcast %cst_21 : f32 to vector<8x1x128xf32>
    %26 = vector.extract_strided_slice %24 {offsets = [0, 0, 0], sizes = [8, 15, 128], strides = [1, 1, 1]} : vector<8x16x128xf32> to vector<8x15x128xf32>
    %27 = tpu.concatenate %25, %26 in 1 : vector<8x1x128xf32>, vector<8x15x128xf32> -> vector<8x16x128xf32>
    %28 = vector.shape_cast %27 : vector<8x16x128xf32> to vector<128x128xf32>
    %29 = vector.extract_strided_slice %24 {offsets = [0, 1, 0], sizes = [8, 15, 128], strides = [1, 1, 1]} : vector<8x16x128xf32> to vector<8x15x128xf32>
    %30 = tpu.concatenate %29, %25 in 1 : vector<8x15x128xf32>, vector<8x1x128xf32> -> vector<8x16x128xf32>
    %31 = vector.shape_cast %30 : vector<8x16x128xf32> to vector<128x128xf32>
    %c0_22 = arith.constant 0 : index
    %c0_23 = arith.constant 0 : index
    %c0_24 = arith.constant 0 : index
    %32 = vector.load %arg4[%c0_22, %c0_23, %c0_24] : memref<3x128x128xf32, #tpu.memory_space<vmem>>, vector<1x128x128xf32>
    %33 = vector.shape_cast %32 : vector<1x128x128xf32> to vector<128x128xf32>
    %cst_25 = arith.constant dense<0.000000e+00> : vector<128x128xf32>
    %34 = tpu.matmul %28, %33, %cst_25 {dimension_numbers = #tpu.dot_dimension_numbers<[1], [0], [0], [1], [0, 0, 1, 1], [], []>} : vector<128x128xf32>, vector<128x128xf32>, vector<128x128xf32> -> vector<128x128xf32>
    %c1_26 = arith.constant 1 : index
    %c0_27 = arith.constant 0 : index
    %c0_28 = arith.constant 0 : index
    %35 = vector.load %arg4[%c1_26, %c0_27, %c0_28] : memref<3x128x128xf32, #tpu.memory_space<vmem>>, vector<1x128x128xf32>
    %36 = vector.shape_cast %35 : vector<1x128x128xf32> to vector<128x128xf32>
    %cst_29 = arith.constant dense<0.000000e+00> : vector<128x128xf32>
    %37 = tpu.matmul %23, %36, %cst_29 {dimension_numbers = #tpu.dot_dimension_numbers<[1], [0], [0], [1], [0, 0, 1, 1], [], []>} : vector<128x128xf32>, vector<128x128xf32>, vector<128x128xf32> -> vector<128x128xf32>
    %38 = arith.addf %34, %37 : vector<128x128xf32>
    %c2_30 = arith.constant 2 : index
    %c0_31 = arith.constant 0 : index
    %c0_32 = arith.constant 0 : index
    %39 = vector.load %arg4[%c2_30, %c0_31, %c0_32] : memref<3x128x128xf32, #tpu.memory_space<vmem>>, vector<1x128x128xf32>
    %40 = vector.shape_cast %39 : vector<1x128x128xf32> to vector<128x128xf32>
    %cst_33 = arith.constant dense<0.000000e+00> : vector<128x128xf32>
    %41 = tpu.matmul %31, %40, %cst_33 {dimension_numbers = #tpu.dot_dimension_numbers<[1], [0], [0], [1], [0, 0, 1, 1], [], []>} : vector<128x128xf32>, vector<128x128xf32>, vector<128x128xf32> -> vector<128x128xf32>
    %42 = arith.addf %38, %41 : vector<128x128xf32>
    %c0_34 = arith.constant 0 : index
    %c0_35 = arith.constant 0 : index
    %43 = vector.load %arg5[%c0_34, %c0_35] : memref<1x128xf32, #tpu.memory_space<vmem>>, vector<1x128xf32>
    %44 = vector.broadcast %43 : vector<1x128xf32> to vector<128x128xf32>
    %45 = arith.addf %42, %44 : vector<128x128xf32>
    %cst_36 = arith.constant 0.000000e+00 : f32
    %46 = vector.broadcast %cst_36 : f32 to vector<128x128xf32>
    %47 = arith.maximumf %45, %46 : vector<128x128xf32>
    %48 = vector.shape_cast %47 : vector<128x128xf32> to vector<8x16x128xf32>
    %cst_37 = arith.constant 0.000000e+00 : f32
    %49 = vector.broadcast %cst_37 : f32 to vector<8x128xf32>
    %50 = vector.extract_strided_slice %48 {offsets = [0, 0, 0], sizes = [8, 1, 128], strides = [1, 1, 1]} : vector<8x16x128xf32> to vector<8x1x128xf32>
    %51 = vector.shape_cast %50 : vector<8x1x128xf32> to vector<8x128xf32>
    %c0_38 = arith.constant 0 : index
    %c0_39 = arith.constant 0 : index
    %52 = vector.load %arg6[%c0_38, %c0_39] : memref<2048x128xf32, #tpu.memory_space<vmem>>, vector<128x128xf32>
    %cst_40 = arith.constant dense<0.000000e+00> : vector<8x128xf32>
    %53 = tpu.matmul %51, %52, %cst_40 {dimension_numbers = #tpu.dot_dimension_numbers<[1], [0], [0], [1], [0, 0, 1, 1], [], []>} : vector<8x128xf32>, vector<128x128xf32>, vector<8x128xf32> -> vector<8x128xf32>
    %54 = arith.addf %49, %53 : vector<8x128xf32>
    %55 = vector.extract_strided_slice %48 {offsets = [0, 1, 0], sizes = [8, 1, 128], strides = [1, 1, 1]} : vector<8x16x128xf32> to vector<8x1x128xf32>
    %56 = vector.shape_cast %55 : vector<8x1x128xf32> to vector<8x128xf32>
    %c128 = arith.constant 128 : index
    %c0_41 = arith.constant 0 : index
    %57 = vector.load %arg6[%c128, %c0_41] : memref<2048x128xf32, #tpu.memory_space<vmem>>, vector<128x128xf32>
    %cst_42 = arith.constant dense<0.000000e+00> : vector<8x128xf32>
    %58 = tpu.matmul %56, %57, %cst_42 {dimension_numbers = #tpu.dot_dimension_numbers<[1], [0], [0], [1], [0, 0, 1, 1], [], []>} : vector<8x128xf32>, vector<128x128xf32>, vector<8x128xf32> -> vector<8x128xf32>
    %59 = arith.addf %54, %58 : vector<8x128xf32>
    %60 = vector.extract_strided_slice %48 {offsets = [0, 2, 0], sizes = [8, 1, 128], strides = [1, 1, 1]} : vector<8x16x128xf32> to vector<8x1x128xf32>
    %61 = vector.shape_cast %60 : vector<8x1x128xf32> to vector<8x128xf32>
    %c256 = arith.constant 256 : index
    %c0_43 = arith.constant 0 : index
    %62 = vector.load %arg6[%c256, %c0_43] : memref<2048x128xf32, #tpu.memory_space<vmem>>, vector<128x128xf32>
    %cst_44 = arith.constant dense<0.000000e+00> : vector<8x128xf32>
    %63 = tpu.matmul %61, %62, %cst_44 {dimension_numbers = #tpu.dot_dimension_numbers<[1], [0], [0], [1], [0, 0, 1, 1], [], []>} : vector<8x128xf32>, vector<128x128xf32>, vector<8x128xf32> -> vector<8x128xf32>
    %64 = arith.addf %59, %63 : vector<8x128xf32>
    %65 = vector.extract_strided_slice %48 {offsets = [0, 3, 0], sizes = [8, 1, 128], strides = [1, 1, 1]} : vector<8x16x128xf32> to vector<8x1x128xf32>
    %66 = vector.shape_cast %65 : vector<8x1x128xf32> to vector<8x128xf32>
    %c384 = arith.constant 384 : index
    %c0_45 = arith.constant 0 : index
    %67 = vector.load %arg6[%c384, %c0_45] : memref<2048x128xf32, #tpu.memory_space<vmem>>, vector<128x128xf32>
    %cst_46 = arith.constant dense<0.000000e+00> : vector<8x128xf32>
    %68 = tpu.matmul %66, %67, %cst_46 {dimension_numbers = #tpu.dot_dimension_numbers<[1], [0], [0], [1], [0, 0, 1, 1], [], []>} : vector<8x128xf32>, vector<128x128xf32>, vector<8x128xf32> -> vector<8x128xf32>
    %69 = arith.addf %64, %68 : vector<8x128xf32>
    %70 = vector.extract_strided_slice %48 {offsets = [0, 4, 0], sizes = [8, 1, 128], strides = [1, 1, 1]} : vector<8x16x128xf32> to vector<8x1x128xf32>
    %71 = vector.shape_cast %70 : vector<8x1x128xf32> to vector<8x128xf32>
    %c512 = arith.constant 512 : index
    %c0_47 = arith.constant 0 : index
    %72 = vector.load %arg6[%c512, %c0_47] : memref<2048x128xf32, #tpu.memory_space<vmem>>, vector<128x128xf32>
    %cst_48 = arith.constant dense<0.000000e+00> : vector<8x128xf32>
    %73 = tpu.matmul %71, %72, %cst_48 {dimension_numbers = #tpu.dot_dimension_numbers<[1], [0], [0], [1], [0, 0, 1, 1], [], []>} : vector<8x128xf32>, vector<128x128xf32>, vector<8x128xf32> -> vector<8x128xf32>
    %74 = arith.addf %69, %73 : vector<8x128xf32>
    %75 = vector.extract_strided_slice %48 {offsets = [0, 5, 0], sizes = [8, 1, 128], strides = [1, 1, 1]} : vector<8x16x128xf32> to vector<8x1x128xf32>
    %76 = vector.shape_cast %75 : vector<8x1x128xf32> to vector<8x128xf32>
    %c640 = arith.constant 640 : index
    %c0_49 = arith.constant 0 : index
    %77 = vector.load %arg6[%c640, %c0_49] : memref<2048x128xf32, #tpu.memory_space<vmem>>, vector<128x128xf32>
    %cst_50 = arith.constant dense<0.000000e+00> : vector<8x128xf32>
    %78 = tpu.matmul %76, %77, %cst_50 {dimension_numbers = #tpu.dot_dimension_numbers<[1], [0], [0], [1], [0, 0, 1, 1], [], []>} : vector<8x128xf32>, vector<128x128xf32>, vector<8x128xf32> -> vector<8x128xf32>
    %79 = arith.addf %74, %78 : vector<8x128xf32>
    %80 = vector.extract_strided_slice %48 {offsets = [0, 6, 0], sizes = [8, 1, 128], strides = [1, 1, 1]} : vector<8x16x128xf32> to vector<8x1x128xf32>
    %81 = vector.shape_cast %80 : vector<8x1x128xf32> to vector<8x128xf32>
    %c768 = arith.constant 768 : index
    %c0_51 = arith.constant 0 : index
    %82 = vector.load %arg6[%c768, %c0_51] : memref<2048x128xf32, #tpu.memory_space<vmem>>, vector<128x128xf32>
    %cst_52 = arith.constant dense<0.000000e+00> : vector<8x128xf32>
    %83 = tpu.matmul %81, %82, %cst_52 {dimension_numbers = #tpu.dot_dimension_numbers<[1], [0], [0], [1], [0, 0, 1, 1], [], []>} : vector<8x128xf32>, vector<128x128xf32>, vector<8x128xf32> -> vector<8x128xf32>
    %84 = arith.addf %79, %83 : vector<8x128xf32>
    %85 = vector.extract_strided_slice %48 {offsets = [0, 7, 0], sizes = [8, 1, 128], strides = [1, 1, 1]} : vector<8x16x128xf32> to vector<8x1x128xf32>
    %86 = vector.shape_cast %85 : vector<8x1x128xf32> to vector<8x128xf32>
    %c896 = arith.constant 896 : index
    %c0_53 = arith.constant 0 : index
    %87 = vector.load %arg6[%c896, %c0_53] : memref<2048x128xf32, #tpu.memory_space<vmem>>, vector<128x128xf32>
    %cst_54 = arith.constant dense<0.000000e+00> : vector<8x128xf32>
    %88 = tpu.matmul %86, %87, %cst_54 {dimension_numbers = #tpu.dot_dimension_numbers<[1], [0], [0], [1], [0, 0, 1, 1], [], []>} : vector<8x128xf32>, vector<128x128xf32>, vector<8x128xf32> -> vector<8x128xf32>
    %89 = arith.addf %84, %88 : vector<8x128xf32>
    %90 = vector.extract_strided_slice %48 {offsets = [0, 8, 0], sizes = [8, 1, 128], strides = [1, 1, 1]} : vector<8x16x128xf32> to vector<8x1x128xf32>
    %91 = vector.shape_cast %90 : vector<8x1x128xf32> to vector<8x128xf32>
    %c1024 = arith.constant 1024 : index
    %c0_55 = arith.constant 0 : index
    %92 = vector.load %arg6[%c1024, %c0_55] : memref<2048x128xf32, #tpu.memory_space<vmem>>, vector<128x128xf32>
    %cst_56 = arith.constant dense<0.000000e+00> : vector<8x128xf32>
    %93 = tpu.matmul %91, %92, %cst_56 {dimension_numbers = #tpu.dot_dimension_numbers<[1], [0], [0], [1], [0, 0, 1, 1], [], []>} : vector<8x128xf32>, vector<128x128xf32>, vector<8x128xf32> -> vector<8x128xf32>
    %94 = arith.addf %89, %93 : vector<8x128xf32>
    %95 = vector.extract_strided_slice %48 {offsets = [0, 9, 0], sizes = [8, 1, 128], strides = [1, 1, 1]} : vector<8x16x128xf32> to vector<8x1x128xf32>
    %96 = vector.shape_cast %95 : vector<8x1x128xf32> to vector<8x128xf32>
    %c1152 = arith.constant 1152 : index
    %c0_57 = arith.constant 0 : index
    %97 = vector.load %arg6[%c1152, %c0_57] : memref<2048x128xf32, #tpu.memory_space<vmem>>, vector<128x128xf32>
    %cst_58 = arith.constant dense<0.000000e+00> : vector<8x128xf32>
    %98 = tpu.matmul %96, %97, %cst_58 {dimension_numbers = #tpu.dot_dimension_numbers<[1], [0], [0], [1], [0, 0, 1, 1], [], []>} : vector<8x128xf32>, vector<128x128xf32>, vector<8x128xf32> -> vector<8x128xf32>
    %99 = arith.addf %94, %98 : vector<8x128xf32>
    %100 = vector.extract_strided_slice %48 {offsets = [0, 10, 0], sizes = [8, 1, 128], strides = [1, 1, 1]} : vector<8x16x128xf32> to vector<8x1x128xf32>
    %101 = vector.shape_cast %100 : vector<8x1x128xf32> to vector<8x128xf32>
    %c1280 = arith.constant 1280 : index
    %c0_59 = arith.constant 0 : index
    %102 = vector.load %arg6[%c1280, %c0_59] : memref<2048x128xf32, #tpu.memory_space<vmem>>, vector<128x128xf32>
    %cst_60 = arith.constant dense<0.000000e+00> : vector<8x128xf32>
    %103 = tpu.matmul %101, %102, %cst_60 {dimension_numbers = #tpu.dot_dimension_numbers<[1], [0], [0], [1], [0, 0, 1, 1], [], []>} : vector<8x128xf32>, vector<128x128xf32>, vector<8x128xf32> -> vector<8x128xf32>
    %104 = arith.addf %99, %103 : vector<8x128xf32>
    %105 = vector.extract_strided_slice %48 {offsets = [0, 11, 0], sizes = [8, 1, 128], strides = [1, 1, 1]} : vector<8x16x128xf32> to vector<8x1x128xf32>
    %106 = vector.shape_cast %105 : vector<8x1x128xf32> to vector<8x128xf32>
    %c1408 = arith.constant 1408 : index
    %c0_61 = arith.constant 0 : index
    %107 = vector.load %arg6[%c1408, %c0_61] : memref<2048x128xf32, #tpu.memory_space<vmem>>, vector<128x128xf32>
    %cst_62 = arith.constant dense<0.000000e+00> : vector<8x128xf32>
    %108 = tpu.matmul %106, %107, %cst_62 {dimension_numbers = #tpu.dot_dimension_numbers<[1], [0], [0], [1], [0, 0, 1, 1], [], []>} : vector<8x128xf32>, vector<128x128xf32>, vector<8x128xf32> -> vector<8x128xf32>
    %109 = arith.addf %104, %108 : vector<8x128xf32>
    %110 = vector.extract_strided_slice %48 {offsets = [0, 12, 0], sizes = [8, 1, 128], strides = [1, 1, 1]} : vector<8x16x128xf32> to vector<8x1x128xf32>
    %111 = vector.shape_cast %110 : vector<8x1x128xf32> to vector<8x128xf32>
    %c1536 = arith.constant 1536 : index
    %c0_63 = arith.constant 0 : index
    %112 = vector.load %arg6[%c1536, %c0_63] : memref<2048x128xf32, #tpu.memory_space<vmem>>, vector<128x128xf32>
    %cst_64 = arith.constant dense<0.000000e+00> : vector<8x128xf32>
    %113 = tpu.matmul %111, %112, %cst_64 {dimension_numbers = #tpu.dot_dimension_numbers<[1], [0], [0], [1], [0, 0, 1, 1], [], []>} : vector<8x128xf32>, vector<128x128xf32>, vector<8x128xf32> -> vector<8x128xf32>
    %114 = arith.addf %109, %113 : vector<8x128xf32>
    %115 = vector.extract_strided_slice %48 {offsets = [0, 13, 0], sizes = [8, 1, 128], strides = [1, 1, 1]} : vector<8x16x128xf32> to vector<8x1x128xf32>
    %116 = vector.shape_cast %115 : vector<8x1x128xf32> to vector<8x128xf32>
    %c1664 = arith.constant 1664 : index
    %c0_65 = arith.constant 0 : index
    %117 = vector.load %arg6[%c1664, %c0_65] : memref<2048x128xf32, #tpu.memory_space<vmem>>, vector<128x128xf32>
    %cst_66 = arith.constant dense<0.000000e+00> : vector<8x128xf32>
    %118 = tpu.matmul %116, %117, %cst_66 {dimension_numbers = #tpu.dot_dimension_numbers<[1], [0], [0], [1], [0, 0, 1, 1], [], []>} : vector<8x128xf32>, vector<128x128xf32>, vector<8x128xf32> -> vector<8x128xf32>
    %119 = arith.addf %114, %118 : vector<8x128xf32>
    %120 = vector.extract_strided_slice %48 {offsets = [0, 14, 0], sizes = [8, 1, 128], strides = [1, 1, 1]} : vector<8x16x128xf32> to vector<8x1x128xf32>
    %121 = vector.shape_cast %120 : vector<8x1x128xf32> to vector<8x128xf32>
    %c1792 = arith.constant 1792 : index
    %c0_67 = arith.constant 0 : index
    %122 = vector.load %arg6[%c1792, %c0_67] : memref<2048x128xf32, #tpu.memory_space<vmem>>, vector<128x128xf32>
    %cst_68 = arith.constant dense<0.000000e+00> : vector<8x128xf32>
    %123 = tpu.matmul %121, %122, %cst_68 {dimension_numbers = #tpu.dot_dimension_numbers<[1], [0], [0], [1], [0, 0, 1, 1], [], []>} : vector<8x128xf32>, vector<128x128xf32>, vector<8x128xf32> -> vector<8x128xf32>
    %124 = arith.addf %119, %123 : vector<8x128xf32>
    %125 = vector.extract_strided_slice %48 {offsets = [0, 15, 0], sizes = [8, 1, 128], strides = [1, 1, 1]} : vector<8x16x128xf32> to vector<8x1x128xf32>
    %126 = vector.shape_cast %125 : vector<8x1x128xf32> to vector<8x128xf32>
    %c1920 = arith.constant 1920 : index
    %c0_69 = arith.constant 0 : index
    %127 = vector.load %arg6[%c1920, %c0_69] : memref<2048x128xf32, #tpu.memory_space<vmem>>, vector<128x128xf32>
    %cst_70 = arith.constant dense<0.000000e+00> : vector<8x128xf32>
    %128 = tpu.matmul %126, %127, %cst_70 {dimension_numbers = #tpu.dot_dimension_numbers<[1], [0], [0], [1], [0, 0, 1, 1], [], []>} : vector<8x128xf32>, vector<128x128xf32>, vector<8x128xf32> -> vector<8x128xf32>
    %129 = arith.addf %124, %128 : vector<8x128xf32>
    %c0_71 = arith.constant 0 : index
    %c0_72 = arith.constant 0 : index
    %130 = vector.load %arg7[%c0_71, %c0_72] : memref<1x128xf32, #tpu.memory_space<vmem>>, vector<1x128xf32>
    %131 = vector.broadcast %130 : vector<1x128xf32> to vector<8x128xf32>
    %132 = arith.addf %129, %131 : vector<8x128xf32>
    %cst_73 = arith.constant dense<0xFF800000> : vector<8xf32>
    %133 = vector.multi_reduction <maximumf>, %132, %cst_73 [1] : vector<8x128xf32> to vector<8xf32>
    %134 = vector.shape_cast %133 : vector<8xf32> to vector<8x1xf32>
    %135 = vector.broadcast %134 : vector<8x1xf32> to vector<8x128xf32>
    %136 = arith.subf %132, %135 : vector<8x128xf32>
    %137 = math.exp %136 : vector<8x128xf32>
    %cst_74 = arith.constant dense<0.000000e+00> : vector<8xf32>
    %138 = vector.multi_reduction <add>, %137, %cst_74 [1] : vector<8x128xf32> to vector<8xf32>
    %139 = vector.shape_cast %138 : vector<8xf32> to vector<8x1xf32>
    %140 = vector.broadcast %139 : vector<8x1xf32> to vector<8x128xf32>
    %141 = arith.divf %137, %140 : vector<8x128xf32>
    %c0_75 = arith.constant 0 : index
    %c0_76 = arith.constant 0 : index
    %142 = vector.load %arg8[%c0_75, %c0_76] : memref<8x128xf32, #tpu.memory_space<vmem>>, vector<8x128xf32>
    tpu.vector_store %arg8[%c0_75, %c0_76], %141 {strides = array<i32>} : memref<8x128xf32, #tpu.memory_space<vmem>>, vector<8x128xf32>,
    return
  }
  func.func @transform_0(%arg0: i32) -> (i32, i32, i32) {
    %c0_i32 = arith.constant 0 : i32
    %c0_i32_0 = arith.constant 0 : i32
    %c0_i32_1 = arith.constant 0 : i32
    return %arg0, %c0_i32, %c0_i32_0 : i32, i32, i32
  }
  func.func @transform_1(%arg0: i32) -> (i32, i32, i32) {
    %c0_i32 = arith.constant 0 : i32
    %c0_i32_0 = arith.constant 0 : i32
    %c0_i32_1 = arith.constant 0 : i32
    %c0_i32_2 = arith.constant 0 : i32
    return %c0_i32, %c0_i32_0, %c0_i32_1 : i32, i32, i32
  }
  func.func @transform_2(%arg0: i32) -> (i32, i32) {
    %c0_i32 = arith.constant 0 : i32
    %c0_i32_0 = arith.constant 0 : i32
    %c0_i32_1 = arith.constant 0 : i32
    return %c0_i32, %c0_i32_0 : i32, i32
  }
  func.func @transform_3(%arg0: i32) -> (i32, i32, i32) {
    %c0_i32 = arith.constant 0 : i32
    %c0_i32_0 = arith.constant 0 : i32
    %c0_i32_1 = arith.constant 0 : i32
    %c0_i32_2 = arith.constant 0 : i32
    return %c0_i32, %c0_i32_0, %c0_i32_1 : i32, i32, i32
  }
  func.func @transform_4(%arg0: i32) -> (i32, i32) {
    %c0_i32 = arith.constant 0 : i32
    %c0_i32_0 = arith.constant 0 : i32
    %c0_i32_1 = arith.constant 0 : i32
    return %c0_i32, %c0_i32_0 : i32, i32
  }
  func.func @transform_5(%arg0: i32) -> (i32, i32) {
    %c0_i32 = arith.constant 0 : i32
    %c0_i32_0 = arith.constant 0 : i32
    %c0_i32_1 = arith.constant 0 : i32
    return %c0_i32, %c0_i32_0 : i32, i32
  }
  func.func @transform_6(%arg0: i32) -> (i32, i32) {
    %c0_i32 = arith.constant 0 : i32
    %c0_i32_0 = arith.constant 0 : i32
    %c0_i32_1 = arith.constant 0 : i32
    return %c0_i32, %c0_i32_0 : i32, i32
  }
  func.func @transform_7(%arg0: i32) -> (i32, i32) {
    %c0_i32 = arith.constant 0 : i32
    %c0_i32_0 = arith.constant 0 : i32
    return %arg0, %c0_i32 : i32, i32
  }
}

</mosaic_0001>

<llo_original>
// kernel: forward.1
$region0: #{forward.1}
  #allocation0 [shape = 'u32[]', space=smem, size = 0x4, offset = 0x4, fixed_abs, tag = 'smem constant byte address 0x4 - core index']
  #allocation1 [shape = 'u32[144,128]{1,0:T(1,128)}', space=vmem, size = 0x12000, scoped, tag = 'internal scratch']
  %s0 = inlined_call_operand.vmem [shape: f32[8,18,64], index: 0, kind: input, shape index: {}]
  %s1 = inlined_call_operand.vmem [shape: f32[3,64,128], index: 1, kind: input, shape index: {}]
  %s2 = inlined_call_operand.vmem [shape: f32[1,128], index: 2, kind: input, shape index: {}]
  %s3 = inlined_call_operand.vmem [shape: f32[3,128,128], index: 3, kind: input, shape index: {}]
  %s4 = inlined_call_operand.vmem [shape: f32[1,128], index: 4, kind: input, shape index: {}]
  %s5 = inlined_call_operand.hbm [shape: f32[2048,128], index: 5, kind: input, shape index: {}]
  %s6 = inlined_call_operand.vmem [shape: f32[1,128], index: 6, kind: input, shape index: {}]
  %s7 = inlined_call_operand.vmem [shape: f32[8,128], index: 7, kind: output, shape index: {}]
  %s8 = sld [smem:[#allocation0]]
  $region42: #{forward.1} parent=0
    _
  %s10 = ssub.s32 1, %s8
  %s11 = scalar_select 0, %s10, %s8
  $region1: #{forward.1} parent=0
    #allocation2 [shape = 'u8[1048576]{0}', space=vmem, size = 0x100000, scoped, tag = 'input window, operand 5, single buffered']
    #allocation3 [shape = 's32[1]{0}', space=sflag, size = 0x4, scoped, tag = 'scoped memory for forward.1']
    %12 = vsyncpa [#allocation3], 0
    // Predicated region
    $region2: #{forward.1} parent=1 // pred_check
      _
    $region3: #{forward.1} parent=1 // pred_check_branch
      %14 = sbr.rel (0) target = $region5
    $region4: #{forward.1} parent=1 // pred_region
      _
    $region5: #{forward.1} parent=1 // pred_fallthru
      _
    // Predicated region
    $region6: #{forward.1} parent=1 // pred_check
      _
    $region7: #{forward.1} parent=1 // pred_check_branch
      %16 = sbr.rel (0) target = $region9
    $region8: #{forward.1} parent=1 // pred_region
      _
    $region9: #{forward.1} parent=1 // pred_fallthru
      _
    // Predicated region
    $region10: #{forward.1} parent=1 // pred_check
      _
    $region11: #{forward.1} parent=1 // pred_check_branch
      %18 = sbr.rel (0) target = $region13
    $region12: #{forward.1} parent=1 // pred_region
      _
    $region13: #{forward.1} parent=1 // pred_fallthru
      _
    // Predicated region
    $region14: #{forward.1} parent=1 // pred_check
      _
    $region15: #{forward.1} parent=1 // pred_check_branch
      %20 = sbr.rel (0) target = $region17
    $region16: #{forward.1} parent=1 // pred_region
      _
    $region17: #{forward.1} parent=1 // pred_fallthru
      _
    // Predicated region
    $region18: #{forward.1} parent=1 // pred_check
      _
    $region19: #{forward.1} parent=1 // pred_check_branch
      %22 = sbr.rel (0) target = $region21
    $region20: #{forward.1} parent=1 // pred_region
      _
    $region21: #{forward.1} parent=1 // pred_fallthru
      _
    // Predicated region
    $region22: #{forward.1} parent=1 // pred_check
      _
    $region23: #{forward.1} parent=1 // pred_check_branch
      %24 = sbr.rel (0) target = $region25
    $region24: #{forward.1} parent=1 // pred_region
      %s26 = ssub.s32 32768, 32768
      %27 = vsyncadd [#allocation3], %s26
      %s28 = sshll.u32 [#allocation2], 4
      %s29 = int_to_ptr.vmem [resolvable:$true] %s28
      %34 = dma.hbm_to_vmem [thread:$0]  %s5, 32768, %s29, [#allocation3], 128, 128, 8
    $region25: #{forward.1} parent=1 // pred_fallthru
      _
    // Predicated region
    $region26: #{forward.1} parent=1 // pred_check
      _
    $region27: #{forward.1} parent=1 // pred_check_branch
      %36 = sbr.rel (0) target = $region29
    $region28: #{forward.1} parent=1 // pred_region
      _
    $region29: #{forward.1} parent=1 // pred_fallthru
      _
    // Predicated region
    $region30: #{forward.1} parent=1 // pred_check
      _
    $region31: #{forward.1} parent=1 // pred_check_branch
      %38 = sbr.rel (0) target = $region33
    $region32: #{forward.1} parent=1 // pred_region
      %39 = dma.done [#allocation3], 32768
    $region33: #{forward.1} parent=1 // pred_fallthru
      _
    %v40 = vld [vmem:[%s0] sm:$0xff]
    %v41 = vld [vmem:[%s0 + $0x8] sm:$0xff]
    %v42 = vld [vmem:[%s0 + $0x18] sm:$0xff]
    %v43 = vld [vmem:[%s0 + $0x20] sm:$0xff]
    %v44 = vld [vmem:[%s0 + $0x30] sm:$0xff]
    %v45 = vld [vmem:[%s0 + $0x38] sm:$0xff]
    %v46 = vld [vmem:[%s0 + $0x48] sm:$0xff]
    %v47 = vld [vmem:[%s0 + $0x50] sm:$0xff]
    %v48 = vld [vmem:[%s0 + $0x60] sm:$0xff]
    %v49 = vld [vmem:[%s0 + $0x68] sm:$0xff]
    %v50 = vld [vmem:[%s0 + $0x78] sm:$0xff]
    %v51 = vld [vmem:[%s0 + $0x80] sm:$0xff]
    %v52 = vld [vmem:[%s0 + $0x90] sm:$0xff]
    %v53 = vld [vmem:[%s0 + $0x98] sm:$0xff]
    %v54 = vld [vmem:[%s0 + $0xa8] sm:$0xff]
    %v55 = vld [vmem:[%s0 + $0xb0] sm:$0xff]
    %v56 = vld [vmem:[%s1] sm:$0xff]
    %v57 = vld [vmem:[%s1 + $0x8] sm:$0xff]
    %v58 = vld [vmem:[%s1 + $0x10] sm:$0xff]
    %v59 = vld [vmem:[%s1 + $0x18] sm:$0xff]
    %v60 = vld [vmem:[%s1 + $0x20] sm:$0xff]
    %v61 = vld [vmem:[%s1 + $0x28] sm:$0xff]
    %v62 = vld [vmem:[%s1 + $0x30] sm:$0xff]
    %v63 = vld [vmem:[%s1 + $0x38] sm:$0xff]
    %v64 = vld [vmem:[%s0 + $0x1] sm:$0xff]
    %v65 = vld [vmem:[%s0 + $0x9] sm:$0xff]
    %v66 = vld [vmem:[%s0 + $0x19] sm:$0xff]
    %v67 = vld [vmem:[%s0 + $0x21] sm:$0xff]
    %v68 = vld [vmem:[%s0 + $0x31] sm:$0xff]
    %v69 = vld [vmem:[%s0 + $0x39] sm:$0xff]
    %v70 = vld [vmem:[%s0 + $0x49] sm:$0xff]
    %v71 = vld [vmem:[%s0 + $0x51] sm:$0xff]
    %v72 = vld [vmem:[%s0 + $0x61] sm:$0xff]
    %v73 = vld [vmem:[%s0 + $0x69] sm:$0xff]
    %v74 = vld [vmem:[%s0 + $0x79] sm:$0xff]
    %v75 = vld [vmem:[%s0 + $0x81] sm:$0xff]
    %v76 = vld [vmem:[%s0 + $0x91] sm:$0xff]
    %v77 = vld [vmem:[%s0 + $0x99] sm:$0xff]
    %v78 = vld [vmem:[%s0 + $0xa9] sm:$0xff]
    %v79 = vld [vmem:[%s0 + $0xb1] sm:$0xff]
    %s80 = scalar_lea.vmem %s1, 64
    %v81 = vld [vmem:[%s80] sm:$0xff]
    %v82 = vld [vmem:[%s80 + $0x8] sm:$0xff]
    %v83 = vld [vmem:[%s80 + $0x10] sm:$0xff]
    %v84 = vld [vmem:[%s80 + $0x18] sm:$0xff]
    %v85 = vld [vmem:[%s80 + $0x20] sm:$0xff]
    %v86 = vld [vmem:[%s80 + $0x28] sm:$0xff]
    %v87 = vld [vmem:[%s80 + $0x30] sm:$0xff]
    %v88 = vld [vmem:[%s80 + $0x38] sm:$0xff]
    %vm89 = vcmask 523264
    %v91 = vsel %vm89, %v64, 0
    %v94 = vsel %vm89, %v65, 0
    %v97 = vsel %vm89, %v66, 0
    %v100 = vsel %vm89, %v67, 0
    %v103 = vsel %vm89, %v68, 0
    %v106 = vsel %vm89, %v69, 0
    %v109 = vsel %vm89, %v70, 0
    %v112 = vsel %vm89, %v71, 0
    %v115 = vsel %vm89, %v72, 0
    %v118 = vsel %vm89, %v73, 0
    %v121 = vsel %vm89, %v74, 0
    %v124 = vsel %vm89, %v75, 0
    %v127 = vsel %vm89, %v76, 0
    %v130 = vsel %vm89, %v77, 0
    %v133 = vsel %vm89, %v78, 0
    %v136 = vsel %vm89, %v79, 0
    %138 = vmatprep.subr.mxu0 0.0
    %139 = vmatpush1.msra.mxu0 %v81
    %140 = vmatprep.subr.mxu0 0.0
    %141 = vmatpush1.msra.mxu0 %v82
    %142 = vmatprep.subr.mxu0 0.0
    %143 = vmatpush1.msra.mxu0 %v83
    %144 = vmatprep.subr.mxu0 0.0
    %145 = vmatpush1.msra.mxu0 %v84
    %146 = vmatprep.subr.mxu0 0.0
    %147 = vmatpush1.msra.mxu0 %v85
    %148 = vmatprep.subr.mxu0 0.0
    %149 = vmatpush1.msra.mxu0 %v86
    %150 = vmatprep.subr.mxu0 0.0
    %151 = vmatpush1.msra.mxu0 %v87
    %152 = vmatprep.subr.mxu0 0.0
    %153 = vmatpush1.msra.mxu0 %v88
    %154 = vmatprep.subr.mxu0 0.0
    %155 = vmatpush1.msra.mxu0 0.0
    %156 = vmatprep.subr.mxu0 0.0
    %157 = vmatpush1.msra.mxu0 0.0
    %158 = vmatprep.subr.mxu0 0.0
    %159 = vmatpush1.msra.mxu0 0.0
    %160 = vmatprep.subr.mxu0 0.0
    %161 = vmatpush1.msra.mxu0 0.0
    %162 = vmatprep.subr.mxu0 0.0
    %163 = vmatpush1.msra.mxu0 0.0
    %164 = vmatprep.subr.mxu0 0.0
    %165 = vmatpush1.msra.mxu0 0.0
    %166 = vmatprep.subr.mxu0 0.0
    %167 = vmatpush1.msra.mxu0 0.0
    %168 = vmatprep.subr.mxu0 0.0
    %169 = vmatpush1.msra.mxu0 0.0
    %170 = vmatprep.subr.mxu0 0.0
    %171 = vmatpush1.msra.mxu0 0.0
    %172 = vmatprep.subr.mxu0 0.0
    %173 = vmatpush1.msra.mxu0 0.0
    %174 = vmatprep.subr.mxu0 0.0
    %175 = vmatpush1.msra.mxu0 0.0
    %176 = vmatprep.subr.mxu0 0.0
    %177 = vmatpush1.msra.mxu0 0.0
    %178 = vmatprep.subr.mxu0 0.0
    %179 = vmatpush1.msra.mxu0 0.0
    %180 = vmatprep.subr.mxu0 0.0
    %181 = vmatpush1.msra.mxu0 0.0
    %182 = vmatprep.subr.mxu0 0.0
    %183 = vmatpush1.msra.mxu0 0.0
    %184 = vmatprep.subr.mxu0 0.0
    %185 = vmatpush1.msra.mxu0 0.0
    %186 = vmatprep.subr.mxu0 0.0
    %187 = vmatpush1.msra.mxu0 0.0
    %188 = vmatprep.subr.mxu0 0.0
    %189 = vmatpush1.msra.mxu0 0.0
    %190 = vmatprep.subr.mxu0 0.0
    %191 = vmatpush1.msra.mxu0 0.0
    %192 = vmatprep.subr.mxu0 0.0
    %193 = vmatpush1.msra.mxu0 0.0
    %194 = vmatprep.subr.mxu0 0.0
    %195 = vmatpush1.msra.mxu0 0.0
    %196 = vmatprep.subr.mxu0 0.0
    %197 = vmatpush1.msra.mxu0 0.0
    %198 = vmatprep.subr.mxu0 0.0
    %199 = vmatpush1.msra.mxu0 0.0
    %200 = vmatprep.subr.mxu0 0.0
    %201 = vmatpush1.msra.mxu0 0.0
    %202 = vmatprep.mubr.f32.mxu0 0.0
    %203 = vmatmul.mubr.f32.gmra.mrb[0].mxu0 %v91
    %v204 = vpop.f32.mrb[0].mxu0
    %v205 = vadd.f32 0.0, %v204
    %v206 = vpop.f32.mrb[0].mxu0
    %207 = vmatprep.mubr.f32.mxu0 0.0
    %208 = vmatmul.mubr.f32.gmra.mrb[0].mxu0 %v94
    %v209 = vpop.f32.mrb[0].mxu0
    %v210 = vadd.f32 0.0, %v209
    %v211 = vpop.f32.mrb[0].mxu0
    %212 = vmatprep.mubr.f32.mxu0 0.0
    %213 = vmatmul.mubr.f32.gmra.mrb[0].mxu0 %v97
    %v214 = vpop.f32.mrb[0].mxu0
    %v215 = vadd.f32 0.0, %v214
    %v216 = vpop.f32.mrb[0].mxu0
    %217 = vmatprep.mubr.f32.mxu0 0.0
    %218 = vmatmul.mubr.f32.gmra.mrb[0].mxu0 %v100
    %v219 = vpop.f32.mrb[0].mxu0
    %v220 = vadd.f32 0.0, %v219
    %v221 = vpop.f32.mrb[0].mxu0
    %222 = vmatprep.mubr.f32.mxu0 0.0
    %223 = vmatmul.mubr.f32.gmra.mrb[0].mxu0 %v103
    %v224 = vpop.f32.mrb[0].mxu0
    %v225 = vadd.f32 0.0, %v224
    %v226 = vpop.f32.mrb[0].mxu0
    %227 = vmatprep.mubr.f32.mxu0 0.0
    %228 = vmatmul.mubr.f32.gmra.mrb[0].mxu0 %v106
    %v229 = vpop.f32.mrb[0].mxu0
    %v230 = vadd.f32 0.0, %v229
    %v231 = vpop.f32.mrb[0].mxu0
    %232 = vmatprep.mubr.f32.mxu0 0.0
    %233 = vmatmul.mubr.f32.gmra.mrb[0].mxu0 %v109
    %v234 = vpop.f32.mrb[0].mxu0
    %v235 = vadd.f32 0.0, %v234
    %v236 = vpop.f32.mrb[0].mxu0
    %237 = vmatprep.mubr.f32.mxu0 0.0
    %238 = vmatmul.mubr.f32.gmra.mrb[0].mxu0 %v112
    %v239 = vpop.f32.mrb[0].mxu0
    %v240 = vadd.f32 0.0, %v239
    %v241 = vpop.f32.mrb[0].mxu0
    %242 = vmatprep.mubr.f32.mxu0 0.0
    %243 = vmatmul.mubr.f32.gmra.mrb[0].mxu0 %v115
    %v244 = vpop.f32.mrb[0].mxu0
    %v245 = vadd.f32 0.0, %v244
    %v246 = vpop.f32.mrb[0].mxu0
    %247 = vmatprep.mubr.f32.mxu0 0.0
    %248 = vmatmul.mubr.f32.gmra.mrb[0].mxu0 %v118
    %v249 = vpop.f32.mrb[0].mxu0
    %v250 = vadd.f32 0.0, %v249
    %v251 = vpop.f32.mrb[0].mxu0
    %252 = vmatprep.mubr.f32.mxu0 0.0
    %253 = vmatmul.mubr.f32.gmra.mrb[0].mxu0 %v121
    %v254 = vpop.f32.mrb[0].mxu0
    %v255 = vadd.f32 0.0, %v254
    %v256 = vpop.f32.mrb[0].mxu0
    %257 = vmatprep.mubr.f32.mxu0 0.0
    %258 = vmatmul.mubr.f32.gmra.mrb[0].mxu0 %v124
    %v259 = vpop.f32.mrb[0].mxu0
    %v260 = vadd.f32 0.0, %v259
    %v261 = vpop.f32.mrb[0].mxu0
    %262 = vmatprep.mubr.f32.mxu0 0.0
    %263 = vmatmul.mubr.f32.gmra.mrb[0].mxu0 %v127
    %v264 = vpop.f32.mrb[0].mxu0
    %v265 = vadd.f32 0.0, %v264
    %v266 = vpop.f32.mrb[0].mxu0
    %267 = vmatprep.mubr.f32.mxu0 0.0
    %268 = vmatmul.mubr.f32.gmra.mrb[0].mxu0 %v130
    %v269 = vpop.f32.mrb[0].mxu0
    %v270 = vadd.f32 0.0, %v269
    %v271 = vpop.f32.mrb[0].mxu0
    %272 = vmatprep.mubr.f32.mxu0 0.0
    %273 = vmatmul.mubr.f32.gmra.mrb[0].mxu0 %v133
    %v274 = vpop.f32.mrb[0].mxu0
    %v275 = vadd.f32 0.0, %v274
    %v276 = vpop.f32.mrb[0].mxu0
    %277 = vmatprep.mubr.f32.mxu0 0.0
    %278 = vmatmul.mubr.f32.gmra.mrb[0].mxu0 %v136
    %v279 = vpop.f32.mrb[0].mxu0
    %v280 = vadd.f32 0.0, %v279
    %v281 = vpop.f32.mrb[0].mxu0
    %282 = vdwg.mxu0
    %v284 = vsel %vm89, %v40, 0
    %v287 = vsel %vm89, %v41, 0
    %v290 = vsel %vm89, %v42, 0
    %v293 = vsel %vm89, %v43, 0
    %v296 = vsel %vm89, %v44, 0
    %v299 = vsel %vm89, %v45, 0
    %v302 = vsel %vm89, %v46, 0
    %v305 = vsel %vm89, %v47, 0
    %v308 = vsel %vm89, %v48, 0
    %v311 = vsel %vm89, %v49, 0
    %v314 = vsel %vm89, %v50, 0
    %v317 = vsel %vm89, %v51, 0
    %v320 = vsel %vm89, %v52, 0
    %v323 = vsel %vm89, %v53, 0
    %v326 = vsel %vm89, %v54, 0
    %v329 = vsel %vm89, %v55, 0
    %331 = vmatprep.subr.mxu0 0.0
    %332 = vmatpush1.msra.mxu0 %v56
    %333 = vmatprep.subr.mxu0 0.0
    %334 = vmatpush1.msra.mxu0 %v57
    %335 = vmatprep.subr.mxu0 0.0
    %336 = vmatpush1.msra.mxu0 %v58
    %337 = vmatprep.subr.mxu0 0.0
    %338 = vmatpush1.msra.mxu0 %v59
    %339 = vmatprep.subr.mxu0 0.0
    %340 = vmatpush1.msra.mxu0 %v60
    %341 = vmatprep.subr.mxu0 0.0
    %342 = vmatpush1.msra.mxu0 %v61
    %343 = vmatprep.subr.mxu0 0.0
    %344 = vmatpush1.msra.mxu0 %v62
    %345 = vmatprep.subr.mxu0 0.0
    %346 = vmatpush1.msra.mxu0 %v63
    %347 = vmatprep.subr.mxu0 0.0
    %348 = vmatpush1.msra.mxu0 0.0
    %349 = vmatprep.subr.mxu0 0.0
    %350 = vmatpush1.msra.mxu0 0.0
    %351 = vmatprep.subr.mxu0 0.0
    %352 = vmatpush1.msra.mxu0 0.0
    %353 = vmatprep.subr.mxu0 0.0
    %354 = vmatpush1.msra.mxu0 0.0
    %355 = vmatprep.subr.mxu0 0.0
    %356 = vmatpush1.msra.mxu0 0.0
    %357 = vmatprep.subr.mxu0 0.0
    %358 = vmatpush1.msra.mxu0 0.0
    %359 = vmatprep.subr.mxu0 0.0
    %360 = vmatpush1.msra.mxu0 0.0
    %361 = vmatprep.subr.mxu0 0.0
    %362 = vmatpush1.msra.mxu0 0.0
    %363 = vmatprep.subr.mxu0 0.0
    %364 = vmatpush1.msra.mxu0 0.0
    %365 = vmatprep.subr.mxu0 0.0
    %366 = vmatpush1.msra.mxu0 0.0
    %367 = vmatprep.subr.mxu0 0.0
    %368 = vmatpush1.msra.mxu0 0.0
    %369 = vmatprep.subr.mxu0 0.0
    %370 = vmatpush1.msra.mxu0 0.0
    %371 = vmatprep.subr.mxu0 0.0
    %372 = vmatpush1.msra.mxu0 0.0
    %373 = vmatprep.subr.mxu0 0.0
    %374 = vmatpush1.msra.mxu0 0.0
    %375 = vmatprep.subr.mxu0 0.0
    %376 = vmatpush1.msra.mxu0 0.0
    %377 = vmatprep.subr.mxu0 0.0
    %378 = vmatpush1.msra.mxu0 0.0
    %379 = vmatprep.subr.mxu0 0.0
    %380 = vmatpush1.msra.mxu0 0.0
    %381 = vmatprep.subr.mxu0 0.0
    %382 = vmatpush1.msra.mxu0 0.0
    %383 = vmatprep.subr.mxu0 0.0
    %384 = vmatpush1.msra.mxu0 0.0
    %385 = vmatprep.subr.mxu0 0.0
    %386 = vmatpush1.msra.mxu0 0.0
    %387 = vmatprep.subr.mxu0 0.0
    %388 = vmatpush1.msra.mxu0 0.0
    %389 = vmatprep.subr.mxu0 0.0
    %390 = vmatpush1.msra.mxu0 0.0
    %391 = vmatprep.subr.mxu0 0.0
    %392 = vmatpush1.msra.mxu0 0.0
    %393 = vmatprep.subr.mxu0 0.0
    %394 = vmatpush1.msra.mxu0 0.0
    %395 = vmatprep.mubr.f32.mxu0 0.0
    %396 = vmatmul.mubr.f32.gmra.mrb[0].mxu0 %v284
    %v397 = vpop.f32.mrb[0].mxu0
    %v398 = vadd.f32 %v205, %v397
    %v399 = vpop.f32.mrb[0].mxu0
    %400 = vmatprep.mubr.f32.mxu0 0.0
    %401 = vmatmul.mubr.f32.gmra.mrb[0].mxu0 %v287
    %v402 = vpop.f32.mrb[0].mxu0
    %v403 = vadd.f32 %v210, %v402
    %v404 = vpop.f32.mrb[0].mxu0
    %405 = vmatprep.mubr.f32.mxu0 0.0
    %406 = vmatmul.mubr.f32.gmra.mrb[0].mxu0 %v290
    %v407 = vpop.f32.mrb[0].mxu0
    %v408 = vadd.f32 %v215, %v407
    %v409 = vpop.f32.mrb[0].mxu0
    %410 = vmatprep.mubr.f32.mxu0 0.0
    %411 = vmatmul.mubr.f32.gmra.mrb[0].mxu0 %v293
    %v412 = vpop.f32.mrb[0].mxu0
    %v413 = vadd.f32 %v220, %v412
    %v414 = vpop.f32.mrb[0].mxu0
    %415 = vmatprep.mubr.f32.mxu0 0.0
    %416 = vmatmul.mubr.f32.gmra.mrb[0].mxu0 %v296
    %v417 = vpop.f32.mrb[0].mxu0
    %v418 = vadd.f32 %v225, %v417
    %v419 = vpop.f32.mrb[0].mxu0
    %420 = vmatprep.mubr.f32.mxu0 0.0
    %421 = vmatmul.mubr.f32.gmra.mrb[0].mxu0 %v299
    %v422 = vpop.f32.mrb[0].mxu0
    %v423 = vadd.f32 %v230, %v422
    %v424 = vpop.f32.mrb[0].mxu0
    %425 = vmatprep.mubr.f32.mxu0 0.0
    %426 = vmatmul.mubr.f32.gmra.mrb[0].mxu0 %v302
    %v427 = vpop.f32.mrb[0].mxu0
    %v428 = vadd.f32 %v235, %v427
    %v429 = vpop.f32.mrb[0].mxu0
    %430 = vmatprep.mubr.f32.mxu0 0.0
    %431 = vmatmul.mubr.f32.gmra.mrb[0].mxu0 %v305
    %v432 = vpop.f32.mrb[0].mxu0
    %v433 = vadd.f32 %v240, %v432
    %v434 = vpop.f32.mrb[0].mxu0
    %435 = vmatprep.mubr.f32.mxu0 0.0
    %436 = vmatmul.mubr.f32.gmra.mrb[0].mxu0 %v308
    %v437 = vpop.f32.mrb[0].mxu0
    %v438 = vadd.f32 %v245, %v437
    %v439 = vpop.f32.mrb[0].mxu0
    %440 = vmatprep.mubr.f32.mxu0 0.0
    %441 = vmatmul.mubr.f32.gmra.mrb[0].mxu0 %v311
    %v442 = vpop.f32.mrb[0].mxu0
    %v443 = vadd.f32 %v250, %v442
    %v444 = vpop.f32.mrb[0].mxu0
    %445 = vmatprep.mubr.f32.mxu0 0.0
    %446 = vmatmul.mubr.f32.gmra.mrb[0].mxu0 %v314
    %v447 = vpop.f32.mrb[0].mxu0
    %v448 = vadd.f32 %v255, %v447
    %v449 = vpop.f32.mrb[0].mxu0
    %450 = vmatprep.mubr.f32.mxu0 0.0
    %451 = vmatmul.mubr.f32.gmra.mrb[0].mxu0 %v317
    %v452 = vpop.f32.mrb[0].mxu0
    %v453 = vadd.f32 %v260, %v452
    %v454 = vpop.f32.mrb[0].mxu0
    %455 = vmatprep.mubr.f32.mxu0 0.0
    %456 = vmatmul.mubr.f32.gmra.mrb[0].mxu0 %v320
    %v457 = vpop.f32.mrb[0].mxu0
    %v458 = vadd.f32 %v265, %v457
    %v459 = vpop.f32.mrb[0].mxu0
    %460 = vmatprep.mubr.f32.mxu0 0.0
    %461 = vmatmul.mubr.f32.gmra.mrb[0].mxu0 %v323
    %v462 = vpop.f32.mrb[0].mxu0
    %v463 = vadd.f32 %v270, %v462
    %v464 = vpop.f32.mrb[0].mxu0
    %465 = vmatprep.mubr.f32.mxu0 0.0
    %466 = vmatmul.mubr.f32.gmra.mrb[0].mxu0 %v326
    %v467 = vpop.f32.mrb[0].mxu0
    %v468 = vadd.f32 %v275, %v467
    %v469 = vpop.f32.mrb[0].mxu0
    %470 = vmatprep.mubr.f32.mxu0 0.0
    %471 = vmatmul.mubr.f32.gmra.mrb[0].mxu0 %v329
    %v472 = vpop.f32.mrb[0].mxu0
    %v473 = vadd.f32 %v280, %v472
    %v474 = vpop.f32.mrb[0].mxu0
    %475 = vdwg.mxu0
    %v476 = vld [vmem:[%s0 + $0x2] sm:$0xff]
    %v477 = vld [vmem:[%s0 + $0xa] sm:$0xff]
    %v478 = vld [vmem:[%s0 + $0x1a] sm:$0xff]
    %v479 = vld [vmem:[%s0 + $0x22] sm:$0xff]
    %v480 = vld [vmem:[%s0 + $0x32] sm:$0xff]
    %v481 = vld [vmem:[%s0 + $0x3a] sm:$0xff]
    %v482 = vld [vmem:[%s0 + $0x4a] sm:$0xff]
    %v483 = vld [vmem:[%s0 + $0x52] sm:$0xff]
    %v484 = vld [vmem:[%s0 + $0x62] sm:$0xff]
    %v485 = vld [vmem:[%s0 + $0x6a] sm:$0xff]
    %v486 = vld [vmem:[%s0 + $0x7a] sm:$0xff]
    %v487 = vld [vmem:[%s0 + $0x82] sm:$0xff]
    %v488 = vld [vmem:[%s0 + $0x92] sm:$0xff]
    %v489 = vld [vmem:[%s0 + $0x9a] sm:$0xff]
    %v490 = vld [vmem:[%s0 + $0xaa] sm:$0xff]
    %v491 = vld [vmem:[%s0 + $0xb2] sm:$0xff]
    %s492 = scalar_lea.vmem %s1, 128
    %v493 = vld [vmem:[%s492] sm:$0xff]
    %v494 = vld [vmem:[%s492 + $0x8] sm:$0xff]
    %v495 = vld [vmem:[%s492 + $0x10] sm:$0xff]
    %v496 = vld [vmem:[%s492 + $0x18] sm:$0xff]
    %v497 = vld [vmem:[%s492 + $0x20] sm:$0xff]
    %v498 = vld [vmem:[%s492 + $0x28] sm:$0xff]
    %v499 = vld [vmem:[%s492 + $0x30] sm:$0xff]
    %v500 = vld [vmem:[%s492 + $0x38] sm:$0xff]
    %v502 = vsel %vm89, %v476, 0
    %v505 = vsel %vm89, %v477, 0
    %v508 = vsel %vm89, %v478, 0
    %v511 = vsel %vm89, %v479, 0
    %v514 = vsel %vm89, %v480, 0
    %v517 = vsel %vm89, %v481, 0
    %v520 = vsel %vm89, %v482, 0
    %v523 = vsel %vm89, %v483, 0
    %v526 = vsel %vm89, %v484, 0
    %v529 = vsel %vm89, %v485, 0
    %v532 = vsel %vm89, %v486, 0
    %v535 = vsel %vm89, %v487, 0
    %v538 = vsel %vm89, %v488, 0
    %v541 = vsel %vm89, %v489, 0
    %v544 = vsel %vm89, %v490, 0
    %v547 = vsel %vm89, %v491, 0
    %549 = vmatprep.subr.mxu0 0.0
    %550 = vmatpush1.msra.mxu0 %v493
    %551 = vmatprep.subr.mxu0 0.0
    %552 = vmatpush1.msra.mxu0 %v494
    %553 = vmatprep.subr.mxu0 0.0
    %554 = vmatpush1.msra.mxu0 %v495
    %555 = vmatprep.subr.mxu0 0.0
    %556 = vmatpush1.msra.mxu0 %v496
    %557 = vmatprep.subr.mxu0 0.0
    %558 = vmatpush1.msra.mxu0 %v497
    %559 = vmatprep.subr.mxu0 0.0
    %560 = vmatpush1.msra.mxu0 %v498
    %561 = vmatprep.subr.mxu0 0.0
    %562 = vmatpush1.msra.mxu0 %v499
    %563 = vmatprep.subr.mxu0 0.0
    %564 = vmatpush1.msra.mxu0 %v500
    %565 = vmatprep.subr.mxu0 0.0
    %566 = vmatpush1.msra.mxu0 0.0
    %567 = vmatprep.subr.mxu0 0.0
    %568 = vmatpush1.msra.mxu0 0.0
    %569 = vmatprep.subr.mxu0 0.0
    %570 = vmatpush1.msra.mxu0 0.0
    %571 = vmatprep.subr.mxu0 0.0
    %572 = vmatpush1.msra.mxu0 0.0
    %573 = vmatprep.subr.mxu0 0.0
    %574 = vmatpush1.msra.mxu0 0.0
    %575 = vmatprep.subr.mxu0 0.0
    %576 = vmatpush1.msra.mxu0 0.0
    %577 = vmatprep.subr.mxu0 0.0
    %578 = vmatpush1.msra.mxu0 0.0
    %579 = vmatprep.subr.mxu0 0.0
    %580 = vmatpush1.msra.mxu0 0.0
    %581 = vmatprep.subr.mxu0 0.0
    %582 = vmatpush1.msra.mxu0 0.0
    %583 = vmatprep.subr.mxu0 0.0
    %584 = vmatpush1.msra.mxu0 0.0
    %585 = vmatprep.subr.mxu0 0.0
    %586 = vmatpush1.msra.mxu0 0.0
    %587 = vmatprep.subr.mxu0 0.0
    %588 = vmatpush1.msra.mxu0 0.0
    %589 = vmatprep.subr.mxu0 0.0
    %590 = vmatpush1.msra.mxu0 0.0
    %591 = vmatprep.subr.mxu0 0.0
    %592 = vmatpush1.msra.mxu0 0.0
    %593 = vmatprep.subr.mxu0 0.0
    %594 = vmatpush1.msra.mxu0 0.0
    %595 = vmatprep.subr.mxu0 0.0
    %596 = vmatpush1.msra.mxu0 0.0
    %597 = vmatprep.subr.mxu0 0.0
    %598 = vmatpush1.msra.mxu0 0.0
    %599 = vmatprep.subr.mxu0 0.0
    %600 = vmatpush1.msra.mxu0 0.0
    %601 = vmatprep.subr.mxu0 0.0
    %602 = vmatpush1.msra.mxu0 0.0
    %603 = vmatprep.subr.mxu0 0.0
    %604 = vmatpush1.msra.mxu0 0.0
    %605 = vmatprep.subr.mxu0 0.0
    %606 = vmatpush1.msra.mxu0 0.0
    %607 = vmatprep.subr.mxu0 0.0
    %608 = vmatpush1.msra.mxu0 0.0
    %609 = vmatprep.subr.mxu0 0.0
    %610 = vmatpush1.msra.mxu0 0.0
    %611 = vmatprep.subr.mxu0 0.0
    %612 = vmatpush1.msra.mxu0 0.0
    %613 = vmatprep.mubr.f32.mxu0 0.0
    %614 = vmatmul.mubr.f32.gmra.mrb[0].mxu0 %v502
    %v615 = vpop.f32.mrb[0].mxu0
    %v616 = vadd.f32 0.0, %v615
    %v617 = vpop.f32.mrb[0].mxu0
    %618 = vmatprep.mubr.f32.mxu0 0.0
    %619 = vmatmul.mubr.f32.gmra.mrb[0].mxu0 %v505
    %v620 = vpop.f32.mrb[0].mxu0
    %v621 = vadd.f32 0.0, %v620
    %v622 = vpop.f32.mrb[0].mxu0
    %623 = vmatprep.mubr.f32.mxu0 0.0
    %624 = vmatmul.mubr.f32.gmra.mrb[0].mxu0 %v508
    %v625 = vpop.f32.mrb[0].mxu0
    %v626 = vadd.f32 0.0, %v625
    %v627 = vpop.f32.mrb[0].mxu0
    %628 = vmatprep.mubr.f32.mxu0 0.0
    %629 = vmatmul.mubr.f32.gmra.mrb[0].mxu0 %v511
    %v630 = vpop.f32.mrb[0].mxu0
    %v631 = vadd.f32 0.0, %v630
    %v632 = vpop.f32.mrb[0].mxu0
    %633 = vmatprep.mubr.f32.mxu0 0.0
    %634 = vmatmul.mubr.f32.gmra.mrb[0].mxu0 %v514
    %v635 = vpop.f32.mrb[0].mxu0
    %v636 = vadd.f32 0.0, %v635
    %v637 = vpop.f32.mrb[0].mxu0
    %638 = vmatprep.mubr.f32.mxu0 0.0
    %639 = vmatmul.mubr.f32.gmra.mrb[0].mxu0 %v517
    %v640 = vpop.f32.mrb[0].mxu0
    %v641 = vadd.f32 0.0, %v640
    %v642 = vpop.f32.mrb[0].mxu0
    %643 = vmatprep.mubr.f32.mxu0 0.0
    %644 = vmatmul.mubr.f32.gmra.mrb[0].mxu0 %v520
    %v645 = vpop.f32.mrb[0].mxu0
    %v646 = vadd.f32 0.0, %v645
    %v647 = vpop.f32.mrb[0].mxu0
    %648 = vmatprep.mubr.f32.mxu0 0.0
    %649 = vmatmul.mubr.f32.gmra.mrb[0].mxu0 %v523
    %v650 = vpop.f32.mrb[0].mxu0
    %v651 = vadd.f32 0.0, %v650
    %v652 = vpop.f32.mrb[0].mxu0
    %653 = vmatprep.mubr.f32.mxu0 0.0
    %654 = vmatmul.mubr.f32.gmra.mrb[0].mxu0 %v526
    %v655 = vpop.f32.mrb[0].mxu0
    %v656 = vadd.f32 0.0, %v655
    %v657 = vpop.f32.mrb[0].mxu0
    %658 = vmatprep.mubr.f32.mxu0 0.0
    %659 = vmatmul.mubr.f32.gmra.mrb[0].mxu0 %v529
    %v660 = vpop.f32.mrb[0].mxu0
    %v661 = vadd.f32 0.0, %v660
    %v662 = vpop.f32.mrb[0].mxu0
    %663 = vmatprep.mubr.f32.mxu0 0.0
    %664 = vmatmul.mubr.f32.gmra.mrb[0].mxu0 %v532
    %v665 = vpop.f32.mrb[0].mxu0
    %v666 = vadd.f32 0.0, %v665
    %v667 = vpop.f32.mrb[0].mxu0
    %668 = vmatprep.mubr.f32.mxu0 0.0
    %669 = vmatmul.mubr.f32.gmra.mrb[0].mxu0 %v535
    %v670 = vpop.f32.mrb[0].mxu0
    %v671 = vadd.f32 0.0, %v670
    %v672 = vpop.f32.mrb[0].mxu0
    %673 = vmatprep.mubr.f32.mxu0 0.0
    %674 = vmatmul.mubr.f32.gmra.mrb[0].mxu0 %v538
    %v675 = vpop.f32.mrb[0].mxu0
    %v676 = vadd.f32 0.0, %v675
    %v677 = vpop.f32.mrb[0].mxu0
    %678 = vmatprep.mubr.f32.mxu0 0.0
    %679 = vmatmul.mubr.f32.gmra.mrb[0].mxu0 %v541
    %v680 = vpop.f32.mrb[0].mxu0
    %v681 = vadd.f32 0.0, %v680
    %v682 = vpop.f32.mrb[0].mxu0
    %683 = vmatprep.mubr.f32.mxu0 0.0
    %684 = vmatmul.mubr.f32.gmra.mrb[0].mxu0 %v544
    %v685 = vpop.f32.mrb[0].mxu0
    %v686 = vadd.f32 0.0, %v685
    %v687 = vpop.f32.mrb[0].mxu0
    %688 = vmatprep.mubr.f32.mxu0 0.0
    %689 = vmatmul.mubr.f32.gmra.mrb[0].mxu0 %v547
    %v690 = vpop.f32.mrb[0].mxu0
    %v691 = vadd.f32 0.0, %v690
    %v692 = vpop.f32.mrb[0].mxu0
    %693 = vdwg.mxu0
    %v694 = vadd.f32 %v398, %v616
    %v695 = vadd.f32 %v403, %v621
    %v696 = vadd.f32 %v408, %v626
    %v697 = vadd.f32 %v413, %v631
    %v698 = vadd.f32 %v418, %v636
    %v699 = vadd.f32 %v423, %v641
    %v700 = vadd.f32 %v428, %v646
    %v701 = vadd.f32 %v433, %v651
    %v702 = vadd.f32 %v438, %v656
    %v703 = vadd.f32 %v443, %v661
    %v704 = vadd.f32 %v448, %v666
    %v705 = vadd.f32 %v453, %v671
    %v706 = vadd.f32 %v458, %v676
    %v707 = vadd.f32 %v463, %v681
    %v708 = vadd.f32 %v468, %v686
    %v709 = vadd.f32 %v473, %v691
    %v710 = vld [vmem:[%s2] sm:$0x1]
    %v712 = vlaneseq
    %v713 = vshrl.u32 %v712, 7
    %v714 = vsub.s32 0, %v713
    %v715 = vrot.slane %v710, %v714
    %v717 = vadd.f32 %v694, %v715
    %v718 = vadd.f32 %v695, %v715
    %v719 = vadd.f32 %v696, %v715
    %v720 = vadd.f32 %v697, %v715
    %v721 = vadd.f32 %v698, %v715
    %v722 = vadd.f32 %v699, %v715
    %v723 = vadd.f32 %v700, %v715
    %v724 = vadd.f32 %v701, %v715
    %v725 = vadd.f32 %v702, %v715
    %v726 = vadd.f32 %v703, %v715
    %v727 = vadd.f32 %v704, %v715
    %v728 = vadd.f32 %v705, %v715
    %v729 = vadd.f32 %v706, %v715
    %v730 = vadd.f32 %v707, %v715
    %v731 = vadd.f32 %v708, %v715
    %v732 = vadd.f32 %v709, %v715
    %v733 = vmax.f32 %v717, 0.0
    %v734 = vmax.f32 %v718, 0.0
    %v735 = vmax.f32 %v719, 0.0
    %v736 = vmax.f32 %v720, 0.0
    %v737 = vmax.f32 %v721, 0.0
    %v738 = vmax.f32 %v722, 0.0
    %v739 = vmax.f32 %v723, 0.0
    %v740 = vmax.f32 %v724, 0.0
    %v741 = vmax.f32 %v725, 0.0
    %v742 = vmax.f32 %v726, 0.0
    %v743 = vmax.f32 %v727, 0.0
    %v744 = vmax.f32 %v728, 0.0
    %v745 = vmax.f32 %v729, 0.0
    %v746 = vmax.f32 %v730, 0.0
    %v747 = vmax.f32 %v731, 0.0
    %v748 = vmax.f32 %v732, 0.0
    %vm765 = vcmask 1040384
    %v766 = vrot.slane %v733, 7
    %v767 = vrot.slane %v734, 7
    %v768 = vsel %vm765, %v766, %v767
    %v769 = vrot.slane %v735, 7
    %v770 = vrot.slane %v736, 7
    %v771 = vsel %vm765, %v769, %v770
    %v772 = vrot.slane %v737, 7
    %v773 = vrot.slane %v738, 7
    %v774 = vsel %vm765, %v772, %v773
    %v775 = vrot.slane %v739, 7
    %v776 = vrot.slane %v740, 7
    %v777 = vsel %vm765, %v775, %v776
    %v778 = vrot.slane %v741, 7
    %v779 = vrot.slane %v742, 7
    %v780 = vsel %vm765, %v778, %v779
    %v781 = vrot.slane %v743, 7
    %v782 = vrot.slane %v744, 7
    %v783 = vsel %vm765, %v781, %v782
    %v784 = vrot.slane %v745, 7
    %v785 = vrot.slane %v746, 7
    %v786 = vsel %vm765, %v784, %v785
    %v787 = vrot.slane %v747, 7
    %v788 = vrot.slane %v748, 7
    %v789 = vsel %vm765, %v787, %v788
    %v806 = vsel %vm765, 0.0, %v766
    %v807 = vsel %vm765, 0.0, %v769
    %v808 = vsel %vm765, 0.0, %v772
    %v809 = vsel %vm765, 0.0, %v775
    %v810 = vsel %vm765, 0.0, %v778
    %v811 = vsel %vm765, 0.0, %v781
    %v812 = vsel %vm765, 0.0, %v784
    %v813 = vsel %vm765, 0.0, %v787
    %vm814 = vcmask 1046528
    %v815 = vrot.slane %v733, 1
    %v816 = vrot.slane %v734, 1
    %v817 = vsel %vm814, %v815, %v816
    %v818 = vrot.slane %v735, 1
    %v819 = vrot.slane %v736, 1
    %v820 = vsel %vm814, %v818, %v819
    %v821 = vrot.slane %v737, 1
    %v822 = vrot.slane %v738, 1
    %v823 = vsel %vm814, %v821, %v822
    %v824 = vrot.slane %v739, 1
    %v825 = vrot.slane %v740, 1
    %v826 = vsel %vm814, %v824, %v825
    %v827 = vrot.slane %v741, 1
    %v828 = vrot.slane %v742, 1
    %v829 = vsel %vm814, %v827, %v828
    %v830 = vrot.slane %v743, 1
    %v831 = vrot.slane %v744, 1
    %v832 = vsel %vm814, %v830, %v831
    %v833 = vrot.slane %v745, 1
    %v834 = vrot.slane %v746, 1
    %v835 = vsel %vm814, %v833, %v834
    %v836 = vrot.slane %v747, 1
    %v837 = vrot.slane %v748, 1
    %v838 = vsel %vm814, %v836, %v837
    %v855 = vsel %vm814, %v816, 0.0
    %v856 = vsel %vm814, %v819, 0.0
    %v857 = vsel %vm814, %v822, 0.0
    %v858 = vsel %vm814, %v825, 0.0
    %v859 = vsel %vm814, %v828, 0.0
    %v860 = vsel %vm814, %v831, 0.0
    %v861 = vsel %vm814, %v834, 0.0
    %v862 = vsel %vm814, %v837, 0.0
    %v863 = vld [vmem:[%s3] sm:$0xff]
    %v864 = vld [vmem:[%s3 + $0x8] sm:$0xff]
    %v865 = vld [vmem:[%s3 + $0x10] sm:$0xff]
    %v866 = vld [vmem:[%s3 + $0x18] sm:$0xff]
    %v867 = vld [vmem:[%s3 + $0x20] sm:$0xff]
    %v868 = vld [vmem:[%s3 + $0x28] sm:$0xff]
    %v869 = vld [vmem:[%s3 + $0x30] sm:$0xff]
    %v870 = vld [vmem:[%s3 + $0x38] sm:$0xff]
    %v871 = vld [vmem:[%s3 + $0x40] sm:$0xff]
    %v872 = vld [vmem:[%s3 + $0x48] sm:$0xff]
    %v873 = vld [vmem:[%s3 + $0x50] sm:$0xff]
    %v874 = vld [vmem:[%s3 + $0x58] sm:$0xff]
    %v875 = vld [vmem:[%s3 + $0x60] sm:$0xff]
    %v876 = vld [vmem:[%s3 + $0x68] sm:$0xff]
    %v877 = vld [vmem:[%s3 + $0x70] sm:$0xff]
    %v878 = vld [vmem:[%s3 + $0x78] sm:$0xff]
    %s879 = scalar_lea.vmem %s3, 128
    %v880 = vld [vmem:[%s879] sm:$0xff]
    %v881 = vld [vmem:[%s879 + $0x8] sm:$0xff]
    %v882 = vld [vmem:[%s879 + $0x10] sm:$0xff]
    %v883 = vld [vmem:[%s879 + $0x18] sm:$0xff]
    %v884 = vld [vmem:[%s879 + $0x20] sm:$0xff]
    %v885 = vld [vmem:[%s879 + $0x28] sm:$0xff]
    %v886 = vld [vmem:[%s879 + $0x30] sm:$0xff]
    %v887 = vld [vmem:[%s879 + $0x38] sm:$0xff]
    %v888 = vld [vmem:[%s879 + $0x40] sm:$0xff]
    %v889 = vld [vmem:[%s879 + $0x48] sm:$0xff]
    %v890 = vld [vmem:[%s879 + $0x50] sm:$0xff]
    %v891 = vld [vmem:[%s879 + $0x58] sm:$0xff]
    %v892 = vld [vmem:[%s879 + $0x60] sm:$0xff]
    %v893 = vld [vmem:[%s879 + $0x68] sm:$0xff]
    %v894 = vld [vmem:[%s879 + $0x70] sm:$0xff]
    %v895 = vld [vmem:[%s879 + $0x78] sm:$0xff]
    %896 = vmatprep.subr.mxu0 0.0
    %897 = vmatpush1.msra.mxu0 %v880
    %898 = vmatprep.subr.mxu0 0.0
    %899 = vmatpush1.msra.mxu0 %v881
    %900 = vmatprep.subr.mxu0 0.0
    %901 = vmatpush1.msra.mxu0 %v882
    %902 = vmatprep.subr.mxu0 0.0
    %903 = vmatpush1.msra.mxu0 %v883
    %904 = vmatprep.subr.mxu0 0.0
    %905 = vmatpush1.msra.mxu0 %v884
    %906 = vmatprep.subr.mxu0 0.0
    %907 = vmatpush1.msra.mxu0 %v885
    %908 = vmatprep.subr.mxu0 0.0
    %909 = vmatpush1.msra.mxu0 %v886
    %910 = vmatprep.subr.mxu0 0.0
    %911 = vmatpush1.msra.mxu0 %v887
    %912 = vmatprep.subr.mxu0 0.0
    %913 = vmatpush1.msra.mxu0 %v888
    %914 = vmatprep.subr.mxu0 0.0
    %915 = vmatpush1.msra.mxu0 %v889
    %916 = vmatprep.subr.mxu0 0.0
    %917 = vmatpush1.msra.mxu0 %v890
    %918 = vmatprep.subr.mxu0 0.0
    %919 = vmatpush1.msra.mxu0 %v891
    %920 = vmatprep.subr.mxu0 0.0
    %921 = vmatpush1.msra.mxu0 %v892
    %922 = vmatprep.subr.mxu0 0.0
    %923 = vmatpush1.msra.mxu0 %v893
    %924 = vmatprep.subr.mxu0 0.0
    %925 = vmatpush1.msra.mxu0 %v894
    %926 = vmatprep.subr.mxu0 0.0
    %927 = vmatpush1.msra.mxu0 %v895
    %928 = vmatprep.subr.mxu0 0.0
    %929 = vmatpush1.msra.mxu0 0.0
    %930 = vmatprep.subr.mxu0 0.0
    %931 = vmatpush1.msra.mxu0 0.0
    %932 = vmatprep.subr.mxu0 0.0
    %933 = vmatpush1.msra.mxu0 0.0
    %934 = vmatprep.subr.mxu0 0.0
    %935 = vmatpush1.msra.mxu0 0.0
    %936 = vmatprep.subr.mxu0 0.0
    %937 = vmatpush1.msra.mxu0 0.0
    %938 = vmatprep.subr.mxu0 0.0
    %939 = vmatpush1.msra.mxu0 0.0
    %940 = vmatprep.subr.mxu0 0.0
    %941 = vmatpush1.msra.mxu0 0.0
    %942 = vmatprep.subr.mxu0 0.0
    %943 = vmatpush1.msra.mxu0 0.0
    %944 = vmatprep.subr.mxu0 0.0
    %945 = vmatpush1.msra.mxu0 0.0
    %946 = vmatprep.subr.mxu0 0.0
    %947 = vmatpush1.msra.mxu0 0.0
    %948 = vmatprep.subr.mxu0 0.0
    %949 = vmatpush1.msra.mxu0 0.0
    %950 = vmatprep.subr.mxu0 0.0
    %951 = vmatpush1.msra.mxu0 0.0
    %952 = vmatprep.subr.mxu0 0.0
    %953 = vmatpush1.msra.mxu0 0.0
    %954 = vmatprep.subr.mxu0 0.0
    %955 = vmatpush1.msra.mxu0 0.0
    %956 = vmatprep.subr.mxu0 0.0
    %957 = vmatpush1.msra.mxu0 0.0
    %958 = vmatprep.subr.mxu0 0.0
    %959 = vmatpush1.msra.mxu0 0.0
    %960 = vmatprep.mubr.f32.mxu0 0.0
    %961 = vmatmul.mubr.f32.gmra.mrb[0].mxu0 %v733
    %v962 = vpop.f32.mrb[0].mxu0
    %v963 = vadd.f32 0.0, %v962
    %v964 = vpop.f32.mrb[0].mxu0
    %965 = vmatprep.mubr.f32.mxu0 0.0
    %966 = vmatmul.mubr.f32.gmra.mrb[0].mxu0 %v734
    %v967 = vpop.f32.mrb[0].mxu0
    %v968 = vadd.f32 0.0, %v967
    %v969 = vpop.f32.mrb[0].mxu0
    %970 = vmatprep.mubr.f32.mxu0 0.0
    %971 = vmatmul.mubr.f32.gmra.mrb[0].mxu0 %v735
    %v972 = vpop.f32.mrb[0].mxu0
    %v973 = vadd.f32 0.0, %v972
    %v974 = vpop.f32.mrb[0].mxu0
    %975 = vmatprep.mubr.f32.mxu0 0.0
    %976 = vmatmul.mubr.f32.gmra.mrb[0].mxu0 %v736
    %v977 = vpop.f32.mrb[0].mxu0
    %v978 = vadd.f32 0.0, %v977
    %v979 = vpop.f32.mrb[0].mxu0
    %980 = vmatprep.mubr.f32.mxu0 0.0
    %981 = vmatmul.mubr.f32.gmra.mrb[0].mxu0 %v737
    %v982 = vpop.f32.mrb[0].mxu0
    %v983 = vadd.f32 0.0, %v982
    %v984 = vpop.f32.mrb[0].mxu0
    %985 = vmatprep.mubr.f32.mxu0 0.0
    %986 = vmatmul.mubr.f32.gmra.mrb[0].mxu0 %v738
    %v987 = vpop.f32.mrb[0].mxu0
    %v988 = vadd.f32 0.0, %v987
    %v989 = vpop.f32.mrb[0].mxu0
    %990 = vmatprep.mubr.f32.mxu0 0.0
    %991 = vmatmul.mubr.f32.gmra.mrb[0].mxu0 %v739
    %v992 = vpop.f32.mrb[0].mxu0
    %v993 = vadd.f32 0.0, %v992
    %v994 = vpop.f32.mrb[0].mxu0
    %995 = vmatprep.mubr.f32.mxu0 0.0
    %996 = vmatmul.mubr.f32.gmra.mrb[0].mxu0 %v740
    %v997 = vpop.f32.mrb[0].mxu0
    %v998 = vadd.f32 0.0, %v997
    %v999 = vpop.f32.mrb[0].mxu0
    %1000 = vmatprep.mubr.f32.mxu0 0.0
    %1001 = vmatmul.mubr.f32.gmra.mrb[0].mxu0 %v741
    %v1002 = vpop.f32.mrb[0].mxu0
    %v1003 = vadd.f32 0.0, %v1002
    %v1004 = vpop.f32.mrb[0].mxu0
    %1005 = vmatprep.mubr.f32.mxu0 0.0
    %1006 = vmatmul.mubr.f32.gmra.mrb[0].mxu0 %v742
    %v1007 = vpop.f32.mrb[0].mxu0
    %v1008 = vadd.f32 0.0, %v1007
    %v1009 = vpop.f32.mrb[0].mxu0
    %1010 = vmatprep.mubr.f32.mxu0 0.0
    %1011 = vmatmul.mubr.f32.gmra.mrb[0].mxu0 %v743
    %v1012 = vpop.f32.mrb[0].mxu0
    %v1013 = vadd.f32 0.0, %v1012
    %v1014 = vpop.f32.mrb[0].mxu0
    %1015 = vmatprep.mubr.f32.mxu0 0.0
    %1016 = vmatmul.mubr.f32.gmra.mrb[0].mxu0 %v744
    %v1017 = vpop.f32.mrb[0].mxu0
    %v1018 = vadd.f32 0.0, %v1017
    %v1019 = vpop.f32.mrb[0].mxu0
    %1020 = vmatprep.mubr.f32.mxu0 0.0
    %1021 = vmatmul.mubr.f32.gmra.mrb[0].mxu0 %v745
    %v1022 = vpop.f32.mrb[0].mxu0
    %v1023 = vadd.f32 0.0, %v1022
    %v1024 = vpop.f32.mrb[0].mxu0
    %1025 = vmatprep.mubr.f32.mxu0 0.0
    %1026 = vmatmul.mubr.f32.gmra.mrb[0].mxu0 %v746
    %v1027 = vpop.f32.mrb[0].mxu0
    %v1028 = vadd.f32 0.0, %v1027
    %v1029 = vpop.f32.mrb[0].mxu0
    %1030 = vmatprep.mubr.f32.mxu0 0.0
    %1031 = vmatmul.mubr.f32.gmra.mrb[0].mxu0 %v747
    %v1032 = vpop.f32.mrb[0].mxu0
    %v1033 = vadd.f32 0.0, %v1032
    %v1034 = vpop.f32.mrb[0].mxu0
    %1035 = vmatprep.mubr.f32.mxu0 0.0
    %1036 = vmatmul.mubr.f32.gmra.mrb[0].mxu0 %v748
    %v1037 = vpop.f32.mrb[0].mxu0
    %v1038 = vadd.f32 0.0, %v1037
    %v1039 = vpop.f32.mrb[0].mxu0
    %1040 = vdwg.mxu0
    %1041 = vmatprep.subr.mxu0 0.0
    %1042 = vmatpush1.msra.mxu0 %v863
    %1043 = vmatprep.subr.mxu0 0.0
    %1044 = vmatpush1.msra.mxu0 %v864
    %1045 = vmatprep.subr.mxu0 0.0
    %1046 = vmatpush1.msra.mxu0 %v865
    %1047 = vmatprep.subr.mxu0 0.0
    %1048 = vmatpush1.msra.mxu0 %v866
    %1049 = vmatprep.subr.mxu0 0.0
    %1050 = vmatpush1.msra.mxu0 %v867
    %1051 = vmatprep.subr.mxu0 0.0
    %1052 = vmatpush1.msra.mxu0 %v868
    %1053 = vmatprep.subr.mxu0 0.0
    %1054 = vmatpush1.msra.mxu0 %v869
    %1055 = vmatprep.subr.mxu0 0.0
    %1056 = vmatpush1.msra.mxu0 %v870
    %1057 = vmatprep.subr.mxu0 0.0
    %1058 = vmatpush1.msra.mxu0 %v871
    %1059 = vmatprep.subr.mxu0 0.0
    %1060 = vmatpush1.msra.mxu0 %v872
    %1061 = vmatprep.subr.mxu0 0.0
    %1062 = vmatpush1.msra.mxu0 %v873
    %1063 = vmatprep.subr.mxu0 0.0
    %1064 = vmatpush1.msra.mxu0 %v874
    %1065 = vmatprep.subr.mxu0 0.0
    %1066 = vmatpush1.msra.mxu0 %v875
    %1067 = vmatprep.subr.mxu0 0.0
    %1068 = vmatpush1.msra.mxu0 %v876
    %1069 = vmatprep.subr.mxu0 0.0
    %1070 = vmatpush1.msra.mxu0 %v877
    %1071 = vmatprep.subr.mxu0 0.0
    %1072 = vmatpush1.msra.mxu0 %v878
    %1073 = vmatprep.subr.mxu0 0.0
    %1074 = vmatpush1.msra.mxu0 0.0
    %1075 = vmatprep.subr.mxu0 0.0
    %1076 = vmatpush1.msra.mxu0 0.0
    %1077 = vmatprep.subr.mxu0 0.0
    %1078 = vmatpush1.msra.mxu0 0.0
    %1079 = vmatprep.subr.mxu0 0.0
    %1080 = vmatpush1.msra.mxu0 0.0
    %1081 = vmatprep.subr.mxu0 0.0
    %1082 = vmatpush1.msra.mxu0 0.0
    %1083 = vmatprep.subr.mxu0 0.0
    %1084 = vmatpush1.msra.mxu0 0.0
    %1085 = vmatprep.subr.mxu0 0.0
    %1086 = vmatpush1.msra.mxu0 0.0
    %1087 = vmatprep.subr.mxu0 0.0
    %1088 = vmatpush1.msra.mxu0 0.0
    %1089 = vmatprep.subr.mxu0 0.0
    %1090 = vmatpush1.msra.mxu0 0.0
    %1091 = vmatprep.subr.mxu0 0.0
    %1092 = vmatpush1.msra.mxu0 0.0
    %1093 = vmatprep.subr.mxu0 0.0
    %1094 = vmatpush1.msra.mxu0 0.0
    %1095 = vmatprep.subr.mxu0 0.0
    %1096 = vmatpush1.msra.mxu0 0.0
    %1097 = vmatprep.subr.mxu0 0.0
    %1098 = vmatpush1.msra.mxu0 0.0
    %1099 = vmatprep.subr.mxu0 0.0
    %1100 = vmatpush1.msra.mxu0 0.0
    %1101 = vmatprep.subr.mxu0 0.0
    %1102 = vmatpush1.msra.mxu0 0.0
    %1103 = vmatprep.subr.mxu0 0.0
    %1104 = vmatpush1.msra.mxu0 0.0
    %1105 = vmatprep.mubr.f32.mxu0 0.0
    %1106 = vmatmul.mubr.f32.gmra.mrb[0].mxu0 %v806
    %v1107 = vpop.f32.mrb[0].mxu0
    %v1108 = vadd.f32 %v963, %v1107
    %v1109 = vpop.f32.mrb[0].mxu0
    %1110 = vmatprep.mubr.f32.mxu0 0.0
    %1111 = vmatmul.mubr.f32.gmra.mrb[0].mxu0 %v768
    %v1112 = vpop.f32.mrb[0].mxu0
    %v1113 = vadd.f32 %v968, %v1112
    %v1114 = vpop.f32.mrb[0].mxu0
    %1115 = vmatprep.mubr.f32.mxu0 0.0
    %1116 = vmatmul.mubr.f32.gmra.mrb[0].mxu0 %v807
    %v1117 = vpop.f32.mrb[0].mxu0
    %v1118 = vadd.f32 %v973, %v1117
    %v1119 = vpop.f32.mrb[0].mxu0
    %1120 = vmatprep.mubr.f32.mxu0 0.0
    %1121 = vmatmul.mubr.f32.gmra.mrb[0].mxu0 %v771
    %v1122 = vpop.f32.mrb[0].mxu0
    %v1123 = vadd.f32 %v978, %v1122
    %v1124 = vpop.f32.mrb[0].mxu0
    %1125 = vmatprep.mubr.f32.mxu0 0.0
    %1126 = vmatmul.mubr.f32.gmra.mrb[0].mxu0 %v808
    %v1127 = vpop.f32.mrb[0].mxu0
    %v1128 = vadd.f32 %v983, %v1127
    %v1129 = vpop.f32.mrb[0].mxu0
    %1130 = vmatprep.mubr.f32.mxu0 0.0
    %1131 = vmatmul.mubr.f32.gmra.mrb[0].mxu0 %v774
    %v1132 = vpop.f32.mrb[0].mxu0
    %v1133 = vadd.f32 %v988, %v1132
    %v1134 = vpop.f32.mrb[0].mxu0
    %1135 = vmatprep.mubr.f32.mxu0 0.0
    %1136 = vmatmul.mubr.f32.gmra.mrb[0].mxu0 %v809
    %v1137 = vpop.f32.mrb[0].mxu0
    %v1138 = vadd.f32 %v993, %v1137
    %v1139 = vpop.f32.mrb[0].mxu0
    %1140 = vmatprep.mubr.f32.mxu0 0.0
    %1141 = vmatmul.mubr.f32.gmra.mrb[0].mxu0 %v777
    %v1142 = vpop.f32.mrb[0].mxu0
    %v1143 = vadd.f32 %v998, %v1142
    %v1144 = vpop.f32.mrb[0].mxu0
    %1145 = vmatprep.mubr.f32.mxu0 0.0
    %1146 = vmatmul.mubr.f32.gmra.mrb[0].mxu0 %v810
    %v1147 = vpop.f32.mrb[0].mxu0
    %v1148 = vadd.f32 %v1003, %v1147
    %v1149 = vpop.f32.mrb[0].mxu0
    %1150 = vmatprep.mubr.f32.mxu0 0.0
    %1151 = vmatmul.mubr.f32.gmra.mrb[0].mxu0 %v780
    %v1152 = vpop.f32.mrb[0].mxu0
    %v1153 = vadd.f32 %v1008, %v1152
    %v1154 = vpop.f32.mrb[0].mxu0
    %1155 = vmatprep.mubr.f32.mxu0 0.0
    %1156 = vmatmul.mubr.f32.gmra.mrb[0].mxu0 %v811
    %v1157 = vpop.f32.mrb[0].mxu0
    %v1158 = vadd.f32 %v1013, %v1157
    %v1159 = vpop.f32.mrb[0].mxu0
    %1160 = vmatprep.mubr.f32.mxu0 0.0
    %1161 = vmatmul.mubr.f32.gmra.mrb[0].mxu0 %v783
    %v1162 = vpop.f32.mrb[0].mxu0
    %v1163 = vadd.f32 %v1018, %v1162
    %v1164 = vpop.f32.mrb[0].mxu0
    %1165 = vmatprep.mubr.f32.mxu0 0.0
    %1166 = vmatmul.mubr.f32.gmra.mrb[0].mxu0 %v812
    %v1167 = vpop.f32.mrb[0].mxu0
    %v1168 = vadd.f32 %v1023, %v1167
    %v1169 = vpop.f32.mrb[0].mxu0
    %1170 = vmatprep.mubr.f32.mxu0 0.0
    %1171 = vmatmul.mubr.f32.gmra.mrb[0].mxu0 %v786
    %v1172 = vpop.f32.mrb[0].mxu0
    %v1173 = vadd.f32 %v1028, %v1172
    %v1174 = vpop.f32.mrb[0].mxu0
    %1175 = vmatprep.mubr.f32.mxu0 0.0
    %1176 = vmatmul.mubr.f32.gmra.mrb[0].mxu0 %v813
    %v1177 = vpop.f32.mrb[0].mxu0
    %v1178 = vadd.f32 %v1033, %v1177
    %v1179 = vpop.f32.mrb[0].mxu0
    %1180 = vmatprep.mubr.f32.mxu0 0.0
    %1181 = vmatmul.mubr.f32.gmra.mrb[0].mxu0 %v789
    %v1182 = vpop.f32.mrb[0].mxu0
    %v1183 = vadd.f32 %v1038, %v1182
    %v1184 = vpop.f32.mrb[0].mxu0
    %1185 = vdwg.mxu0
    %s1186 = scalar_lea.vmem %s3, 256
    %v1187 = vld [vmem:[%s1186] sm:$0xff]
    %v1188 = vld [vmem:[%s1186 + $0x8] sm:$0xff]
    %v1189 = vld [vmem:[%s1186 + $0x10] sm:$0xff]
    %v1190 = vld [vmem:[%s1186 + $0x18] sm:$0xff]
    %v1191 = vld [vmem:[%s1186 + $0x20] sm:$0xff]
    %v1192 = vld [vmem:[%s1186 + $0x28] sm:$0xff]
    %v1193 = vld [vmem:[%s1186 + $0x30] sm:$0xff]
    %v1194 = vld [vmem:[%s1186 + $0x38] sm:$0xff]
    %v1195 = vld [vmem:[%s1186 + $0x40] sm:$0xff]
    %v1196 = vld [vmem:[%s1186 + $0x48] sm:$0xff]
    %v1197 = vld [vmem:[%s1186 + $0x50] sm:$0xff]
    %v1198 = vld [vmem:[%s1186 + $0x58] sm:$0xff]
    %v1199 = vld [vmem:[%s1186 + $0x60] sm:$0xff]
    %v1200 = vld [vmem:[%s1186 + $0x68] sm:$0xff]
    %v1201 = vld [vmem:[%s1186 + $0x70] sm:$0xff]
    %v1202 = vld [vmem:[%s1186 + $0x78] sm:$0xff]
    %1203 = vmatprep.subr.mxu0 0.0
    %1204 = vmatpush1.msra.mxu0 %v1187
    %1205 = vmatprep.subr.mxu0 0.0
    %1206 = vmatpush1.msra.mxu0 %v1188
    %1207 = vmatprep.subr.mxu0 0.0
    %1208 = vmatpush1.msra.mxu0 %v1189
    %1209 = vmatprep.subr.mxu0 0.0
    %1210 = vmatpush1.msra.mxu0 %v1190
    %1211 = vmatprep.subr.mxu0 0.0
    %1212 = vmatpush1.msra.mxu0 %v1191
    %1213 = vmatprep.subr.mxu0 0.0
    %1214 = vmatpush1.msra.mxu0 %v1192
    %1215 = vmatprep.subr.mxu0 0.0
    %1216 = vmatpush1.msra.mxu0 %v1193
    %1217 = vmatprep.subr.mxu0 0.0
    %1218 = vmatpush1.msra.mxu0 %v1194
    %1219 = vmatprep.subr.mxu0 0.0
    %1220 = vmatpush1.msra.mxu0 %v1195
    %1221 = vmatprep.subr.mxu0 0.0
    %1222 = vmatpush1.msra.mxu0 %v1196
    %1223 = vmatprep.subr.mxu0 0.0
    %1224 = vmatpush1.msra.mxu0 %v1197
    %1225 = vmatprep.subr.mxu0 0.0
    %1226 = vmatpush1.msra.mxu0 %v1198
    %1227 = vmatprep.subr.mxu0 0.0
    %1228 = vmatpush1.msra.mxu0 %v1199
    %1229 = vmatprep.subr.mxu0 0.0
    %1230 = vmatpush1.msra.mxu0 %v1200
    %1231 = vmatprep.subr.mxu0 0.0
    %1232 = vmatpush1.msra.mxu0 %v1201
    %1233 = vmatprep.subr.mxu0 0.0
    %1234 = vmatpush1.msra.mxu0 %v1202
    %1235 = vmatprep.subr.mxu0 0.0
    %1236 = vmatpush1.msra.mxu0 0.0
    %1237 = vmatprep.subr.mxu0 0.0
    %1238 = vmatpush1.msra.mxu0 0.0
    %1239 = vmatprep.subr.mxu0 0.0
    %1240 = vmatpush1.msra.mxu0 0.0
    %1241 = vmatprep.subr.mxu0 0.0
    %1242 = vmatpush1.msra.mxu0 0.0
    %1243 = vmatprep.subr.mxu0 0.0
    %1244 = vmatpush1.msra.mxu0 0.0
    %1245 = vmatprep.subr.mxu0 0.0
    %1246 = vmatpush1.msra.mxu0 0.0
    %1247 = vmatprep.subr.mxu0 0.0
    %1248 = vmatpush1.msra.mxu0 0.0
    %1249 = vmatprep.subr.mxu0 0.0
    %1250 = vmatpush1.msra.mxu0 0.0
    %1251 = vmatprep.subr.mxu0 0.0
    %1252 = vmatpush1.msra.mxu0 0.0
    %1253 = vmatprep.subr.mxu0 0.0
    %1254 = vmatpush1.msra.mxu0 0.0
    %1255 = vmatprep.subr.mxu0 0.0
    %1256 = vmatpush1.msra.mxu0 0.0
    %1257 = vmatprep.subr.mxu0 0.0
    %1258 = vmatpush1.msra.mxu0 0.0
    %1259 = vmatprep.subr.mxu0 0.0
    %1260 = vmatpush1.msra.mxu0 0.0
    %1261 = vmatprep.subr.mxu0 0.0
    %1262 = vmatpush1.msra.mxu0 0.0
    %1263 = vmatprep.subr.mxu0 0.0
    %1264 = vmatpush1.msra.mxu0 0.0
    %1265 = vmatprep.subr.mxu0 0.0
    %1266 = vmatpush1.msra.mxu0 0.0
    %1267 = vmatprep.mubr.f32.mxu0 0.0
    %1268 = vmatmul.mubr.f32.gmra.mrb[0].mxu0 %v817
    %v1269 = vpop.f32.mrb[0].mxu0
    %v1270 = vadd.f32 0.0, %v1269
    %v1271 = vpop.f32.mrb[0].mxu0
    %1272 = vmatprep.mubr.f32.mxu0 0.0
    %1273 = vmatmul.mubr.f32.gmra.mrb[0].mxu0 %v855
    %v1274 = vpop.f32.mrb[0].mxu0
    %v1275 = vadd.f32 0.0, %v1274
    %v1276 = vpop.f32.mrb[0].mxu0
    %1277 = vmatprep.mubr.f32.mxu0 0.0
    %1278 = vmatmul.mubr.f32.gmra.mrb[0].mxu0 %v820
    %v1279 = vpop.f32.mrb[0].mxu0
    %v1280 = vadd.f32 0.0, %v1279
    %v1281 = vpop.f32.mrb[0].mxu0
    %1282 = vmatprep.mubr.f32.mxu0 0.0
    %1283 = vmatmul.mubr.f32.gmra.mrb[0].mxu0 %v856
    %v1284 = vpop.f32.mrb[0].mxu0
    %v1285 = vadd.f32 0.0, %v1284
    %v1286 = vpop.f32.mrb[0].mxu0
    %1287 = vmatprep.mubr.f32.mxu0 0.0
    %1288 = vmatmul.mubr.f32.gmra.mrb[0].mxu0 %v823
    %v1289 = vpop.f32.mrb[0].mxu0
    %v1290 = vadd.f32 0.0, %v1289
    %v1291 = vpop.f32.mrb[0].mxu0
    %1292 = vmatprep.mubr.f32.mxu0 0.0
    %1293 = vmatmul.mubr.f32.gmra.mrb[0].mxu0 %v857
    %v1294 = vpop.f32.mrb[0].mxu0
    %v1295 = vadd.f32 0.0, %v1294
    %v1296 = vpop.f32.mrb[0].mxu0
    %1297 = vmatprep.mubr.f32.mxu0 0.0
    %1298 = vmatmul.mubr.f32.gmra.mrb[0].mxu0 %v826
    %v1299 = vpop.f32.mrb[0].mxu0
    %v1300 = vadd.f32 0.0, %v1299
    %v1301 = vpop.f32.mrb[0].mxu0
    %1302 = vmatprep.mubr.f32.mxu0 0.0
    %1303 = vmatmul.mubr.f32.gmra.mrb[0].mxu0 %v858
    %v1304 = vpop.f32.mrb[0].mxu0
    %v1305 = vadd.f32 0.0, %v1304
    %v1306 = vpop.f32.mrb[0].mxu0
    %1307 = vmatprep.mubr.f32.mxu0 0.0
    %1308 = vmatmul.mubr.f32.gmra.mrb[0].mxu0 %v829
    %v1309 = vpop.f32.mrb[0].mxu0
    %v1310 = vadd.f32 0.0, %v1309
    %v1311 = vpop.f32.mrb[0].mxu0
    %1312 = vmatprep.mubr.f32.mxu0 0.0
    %1313 = vmatmul.mubr.f32.gmra.mrb[0].mxu0 %v859
    %v1314 = vpop.f32.mrb[0].mxu0
    %v1315 = vadd.f32 0.0, %v1314
    %v1316 = vpop.f32.mrb[0].mxu0
    %1317 = vmatprep.mubr.f32.mxu0 0.0
    %1318 = vmatmul.mubr.f32.gmra.mrb[0].mxu0 %v832
    %v1319 = vpop.f32.mrb[0].mxu0
    %v1320 = vadd.f32 0.0, %v1319
    %v1321 = vpop.f32.mrb[0].mxu0
    %1322 = vmatprep.mubr.f32.mxu0 0.0
    %1323 = vmatmul.mubr.f32.gmra.mrb[0].mxu0 %v860
    %v1324 = vpop.f32.mrb[0].mxu0
    %v1325 = vadd.f32 0.0, %v1324
    %v1326 = vpop.f32.mrb[0].mxu0
    %1327 = vmatprep.mubr.f32.mxu0 0.0
    %1328 = vmatmul.mubr.f32.gmra.mrb[0].mxu0 %v835
    %v1329 = vpop.f32.mrb[0].mxu0
    %v1330 = vadd.f32 0.0, %v1329
    %v1331 = vpop.f32.mrb[0].mxu0
    %1332 = vmatprep.mubr.f32.mxu0 0.0
    %1333 = vmatmul.mubr.f32.gmra.mrb[0].mxu0 %v861
    %v1334 = vpop.f32.mrb[0].mxu0
    %v1335 = vadd.f32 0.0, %v1334
    %v1336 = vpop.f32.mrb[0].mxu0
    %1337 = vmatprep.mubr.f32.mxu0 0.0
    %1338 = vmatmul.mubr.f32.gmra.mrb[0].mxu0 %v838
    %v1339 = vpop.f32.mrb[0].mxu0
    %v1340 = vadd.f32 0.0, %v1339
    %v1341 = vpop.f32.mrb[0].mxu0
    %1342 = vmatprep.mubr.f32.mxu0 0.0
    %1343 = vmatmul.mubr.f32.gmra.mrb[0].mxu0 %v862
    %v1344 = vpop.f32.mrb[0].mxu0
    %v1345 = vadd.f32 0.0, %v1344
    %v1346 = vpop.f32.mrb[0].mxu0
    %1347 = vdwg.mxu0
    %v1348 = vadd.f32 %v1108, %v1270
    %v1349 = vadd.f32 %v1113, %v1275
    %v1350 = vadd.f32 %v1118, %v1280
    %v1351 = vadd.f32 %v1123, %v1285
    %v1352 = vadd.f32 %v1128, %v1290
    %v1353 = vadd.f32 %v1133, %v1295
    %v1354 = vadd.f32 %v1138, %v1300
    %v1355 = vadd.f32 %v1143, %v1305
    %v1356 = vadd.f32 %v1148, %v1310
    %v1357 = vadd.f32 %v1153, %v1315
    %v1358 = vadd.f32 %v1158, %v1320
    %v1359 = vadd.f32 %v1163, %v1325
    %v1360 = vadd.f32 %v1168, %v1330
    %v1361 = vadd.f32 %v1173, %v1335
    %v1362 = vadd.f32 %v1178, %v1340
    %v1363 = vadd.f32 %v1183, %v1345
    %v1364 = vld [vmem:[%s4] sm:$0x1]
    %v1366 = vlaneseq
    %v1367 = vshrl.u32 %v1366, 7
    %v1368 = vsub.s32 0, %v1367
    %v1369 = vrot.slane %v1364, %v1368
    %v1371 = vadd.f32 %v1348, %v1369
    %v1372 = vadd.f32 %v1349, %v1369
    %v1373 = vadd.f32 %v1350, %v1369
    %v1374 = vadd.f32 %v1351, %v1369
    %v1375 = vadd.f32 %v1352, %v1369
    %v1376 = vadd.f32 %v1353, %v1369
    %v1377 = vadd.f32 %v1354, %v1369
    %v1378 = vadd.f32 %v1355, %v1369
    %v1379 = vadd.f32 %v1356, %v1369
    %v1380 = vadd.f32 %v1357, %v1369
    %v1381 = vadd.f32 %v1358, %v1369
    %v1382 = vadd.f32 %v1359, %v1369
    %v1383 = vadd.f32 %v1360, %v1369
    %v1384 = vadd.f32 %v1361, %v1369
    %v1385 = vadd.f32 %v1362, %v1369
    %v1386 = vadd.f32 %v1363, %v1369
    %v1387 = vmax.f32 %v1371, 0.0
    %v1388 = vmax.f32 %v1372, 0.0
    %v1389 = vmax.f32 %v1373, 0.0
    %v1390 = vmax.f32 %v1374, 0.0
    %v1391 = vmax.f32 %v1375, 0.0
    %v1392 = vmax.f32 %v1376, 0.0
    %v1393 = vmax.f32 %v1377, 0.0
    %v1394 = vmax.f32 %v1378, 0.0
    %v1395 = vmax.f32 %v1379, 0.0
    %v1396 = vmax.f32 %v1380, 0.0
    %v1397 = vmax.f32 %v1381, 0.0
    %v1398 = vmax.f32 %v1382, 0.0
    %v1399 = vmax.f32 %v1383, 0.0
    %v1400 = vmax.f32 %v1384, 0.0
    %v1401 = vmax.f32 %v1385, 0.0
    %v1402 = vmax.f32 %v1386, 0.0
    %v1403 = vld [vmem:[#allocation2] sm:$0xff]
    %v1404 = vld [vmem:[#allocation2 + $0x8] sm:$0xff]
    %v1405 = vld [vmem:[#allocation2 + $0x10] sm:$0xff]
    %v1406 = vld [vmem:[#allocation2 + $0x18] sm:$0xff]
    %v1407 = vld [vmem:[#allocation2 + $0x20] sm:$0xff]
    %v1408 = vld [vmem:[#allocation2 + $0x28] sm:$0xff]
    %v1409 = vld [vmem:[#allocation2 + $0x30] sm:$0xff]
    %v1410 = vld [vmem:[#allocation2 + $0x38] sm:$0xff]
    %v1411 = vld [vmem:[#allocation2 + $0x40] sm:$0xff]
    %v1412 = vld [vmem:[#allocation2 + $0x48] sm:$0xff]
    %v1413 = vld [vmem:[#allocation2 + $0x50] sm:$0xff]
    %v1414 = vld [vmem:[#allocation2 + $0x58] sm:$0xff]
    %v1415 = vld [vmem:[#allocation2 + $0x60] sm:$0xff]
    %v1416 = vld [vmem:[#allocation2 + $0x68] sm:$0xff]
    %v1417 = vld [vmem:[#allocation2 + $0x70] sm:$0xff]
    %v1418 = vld [vmem:[#allocation2 + $0x78] sm:$0xff]
    %v1419 = vld [vmem:[#allocation2 + $0x80] sm:$0xff]
    %v1420 = vld [vmem:[#allocation2 + $0x88] sm:$0xff]
    %v1421 = vld [vmem:[#allocation2 + $0x90] sm:$0xff]
    %v1422 = vld [vmem:[#allocation2 + $0x98] sm:$0xff]
    %v1423 = vld [vmem:[#allocation2 + $0xa0] sm:$0xff]
    %v1424 = vld [vmem:[#allocation2 + $0xa8] sm:$0xff]
    %v1425 = vld [vmem:[#allocation2 + $0xb0] sm:$0xff]
    %v1426 = vld [vmem:[#allocation2 + $0xb8] sm:$0xff]
    %v1427 = vld [vmem:[#allocation2 + $0xc0] sm:$0xff]
    %v1428 = vld [vmem:[#allocation2 + $0xc8] sm:$0xff]
    %v1429 = vld [vmem:[#allocation2 + $0xd0] sm:$0xff]
    %v1430 = vld [vmem:[#allocation2 + $0xd8] sm:$0xff]
    %v1431 = vld [vmem:[#allocation2 + $0xe0] sm:$0xff]
    %v1432 = vld [vmem:[#allocation2 + $0xe8] sm:$0xff]
    %v1433 = vld [vmem:[#allocation2 + $0xf0] sm:$0xff]
    %v1434 = vld [vmem:[#allocation2 + $0xf8] sm:$0xff]
    %v1443 = vrot.slane %v1387, 1
    %vm1444 = vcmask 1041409
    %v1445 = vsel %vm1444, %v1389, %v1443
    %v1446 = vrot.slane %v1391, 7
    %vm1447 = vcmask 1042434
    %v1448 = vsel %vm1447, %v1446, %v1445
    %v1449 = vrot.slane %v1393, 6
    %vm1450 = vcmask 1043459
    %v1451 = vsel %vm1450, %v1449, %v1448
    %v1452 = vrot.slane %v1395, 5
    %vm1453 = vcmask 1044484
    %v1454 = vsel %vm1453, %v1452, %v1451
    %v1455 = vrot.slane %v1397, 4
    %vm1456 = vcmask 1045509
    %v1457 = vsel %vm1456, %v1455, %v1454
    %v1458 = vrot.slane %v1399, 3
    %vm1459 = vcmask 1046534
    %v1460 = vsel %vm1459, %v1458, %v1457
    %v1461 = vrot.slane %v1401, 2
    %vm1462 = vcmask 1047559
    %v1463 = vsel %vm1462, %v1461, %v1460
    %1465 = vmatprep.subr.mxu0 0.0
    %1466 = vmatpush1.msra.mxu0 %v1419
    %1467 = vmatprep.subr.mxu0 0.0
    %1468 = vmatpush1.msra.mxu0 %v1420
    %1469 = vmatprep.subr.mxu0 0.0
    %1470 = vmatpush1.msra.mxu0 %v1421
    %1471 = vmatprep.subr.mxu0 0.0
    %1472 = vmatpush1.msra.mxu0 %v1422
    %1473 = vmatprep.subr.mxu0 0.0
    %1474 = vmatpush1.msra.mxu0 %v1423
    %1475 = vmatprep.subr.mxu0 0.0
    %1476 = vmatpush1.msra.mxu0 %v1424
    %1477 = vmatprep.subr.mxu0 0.0
    %1478 = vmatpush1.msra.mxu0 %v1425
    %1479 = vmatprep.subr.mxu0 0.0
    %1480 = vmatpush1.msra.mxu0 %v1426
    %1481 = vmatprep.subr.mxu0 0.0
    %1482 = vmatpush1.msra.mxu0 %v1427
    %1483 = vmatprep.subr.mxu0 0.0
    %1484 = vmatpush1.msra.mxu0 %v1428
    %1485 = vmatprep.subr.mxu0 0.0
    %1486 = vmatpush1.msra.mxu0 %v1429
    %1487 = vmatprep.subr.mxu0 0.0
    %1488 = vmatpush1.msra.mxu0 %v1430
    %1489 = vmatprep.subr.mxu0 0.0
    %1490 = vmatpush1.msra.mxu0 %v1431
    %1491 = vmatprep.subr.mxu0 0.0
    %1492 = vmatpush1.msra.mxu0 %v1432
    %1493 = vmatprep.subr.mxu0 0.0
    %1494 = vmatpush1.msra.mxu0 %v1433
    %1495 = vmatprep.subr.mxu0 0.0
    %1496 = vmatpush1.msra.mxu0 %v1434
    %1497 = vmatprep.subr.mxu0 0.0
    %1498 = vmatpush1.msra.mxu0 0.0
    %1499 = vmatprep.subr.mxu0 0.0
    %1500 = vmatpush1.msra.mxu0 0.0
    %1501 = vmatprep.subr.mxu0 0.0
    %1502 = vmatpush1.msra.mxu0 0.0
    %1503 = vmatprep.subr.mxu0 0.0
    %1504 = vmatpush1.msra.mxu0 0.0
    %1505 = vmatprep.subr.mxu0 0.0
    %1506 = vmatpush1.msra.mxu0 0.0
    %1507 = vmatprep.subr.mxu0 0.0
    %1508 = vmatpush1.msra.mxu0 0.0
    %1509 = vmatprep.subr.mxu0 0.0
    %1510 = vmatpush1.msra.mxu0 0.0
    %1511 = vmatprep.subr.mxu0 0.0
    %1512 = vmatpush1.msra.mxu0 0.0
    %1513 = vmatprep.subr.mxu0 0.0
    %1514 = vmatpush1.msra.mxu0 0.0
    %1515 = vmatprep.subr.mxu0 0.0
    %1516 = vmatpush1.msra.mxu0 0.0
    %1517 = vmatprep.subr.mxu0 0.0
    %1518 = vmatpush1.msra.mxu0 0.0
    %1519 = vmatprep.subr.mxu0 0.0
    %1520 = vmatpush1.msra.mxu0 0.0
    %1521 = vmatprep.subr.mxu0 0.0
    %1522 = vmatpush1.msra.mxu0 0.0
    %1523 = vmatprep.subr.mxu0 0.0
    %1524 = vmatpush1.msra.mxu0 0.0
    %1525 = vmatprep.subr.mxu0 0.0
    %1526 = vmatpush1.msra.mxu0 0.0
    %1527 = vmatprep.subr.mxu0 0.0
    %1528 = vmatpush1.msra.mxu0 0.0
    %1529 = vmatprep.mubr.f32.mxu0 0.0
    %1530 = vmatmul.mubr.f32.gmra.mrb[0].mxu0 %v1463
    %v1531 = vpop.f32.mrb[0].mxu0
    %v1532 = vadd.f32 0.0, %v1531
    %v1533 = vpop.f32.mrb[0].mxu0
    %1534 = vdwg.mxu0
    %v1535 = vrot.slane %v1389, 7
    %v1536 = vsel %vm1444, %v1535, %v1387
    %v1537 = vrot.slane %v1391, 6
    %v1538 = vsel %vm1447, %v1537, %v1536
    %v1539 = vrot.slane %v1393, 5
    %v1540 = vsel %vm1450, %v1539, %v1538
    %v1541 = vrot.slane %v1395, 4
    %v1542 = vsel %vm1453, %v1541, %v1540
    %v1543 = vrot.slane %v1397, 3
    %v1544 = vsel %vm1456, %v1543, %v1542
    %v1545 = vrot.slane %v1399, 2
    %v1546 = vsel %vm1459, %v1545, %v1544
    %v1547 = vrot.slane %v1401, 1
    %v1548 = vsel %vm1462, %v1547, %v1546
    %1550 = vmatprep.subr.mxu0 0.0
    %1551 = vmatpush1.msra.mxu0 %v1403
    %1552 = vmatprep.subr.mxu0 0.0
    %1553 = vmatpush1.msra.mxu0 %v1404
    %1554 = vmatprep.subr.mxu0 0.0
    %1555 = vmatpush1.msra.mxu0 %v1405
    %1556 = vmatprep.subr.mxu0 0.0
    %1557 = vmatpush1.msra.mxu0 %v1406
    %1558 = vmatprep.subr.mxu0 0.0
    %1559 = vmatpush1.msra.mxu0 %v1407
    %1560 = vmatprep.subr.mxu0 0.0
    %1561 = vmatpush1.msra.mxu0 %v1408
    %1562 = vmatprep.subr.mxu0 0.0
    %1563 = vmatpush1.msra.mxu0 %v1409
    %1564 = vmatprep.subr.mxu0 0.0
    %1565 = vmatpush1.msra.mxu0 %v1410
    %1566 = vmatprep.subr.mxu0 0.0
    %1567 = vmatpush1.msra.mxu0 %v1411
    %1568 = vmatprep.subr.mxu0 0.0
    %1569 = vmatpush1.msra.mxu0 %v1412
    %1570 = vmatprep.subr.mxu0 0.0
    %1571 = vmatpush1.msra.mxu0 %v1413
    %1572 = vmatprep.subr.mxu0 0.0
    %1573 = vmatpush1.msra.mxu0 %v1414
    %1574 = vmatprep.subr.mxu0 0.0
    %1575 = vmatpush1.msra.mxu0 %v1415
    %1576 = vmatprep.subr.mxu0 0.0
    %1577 = vmatpush1.msra.mxu0 %v1416
    %1578 = vmatprep.subr.mxu0 0.0
    %1579 = vmatpush1.msra.mxu0 %v1417
    %1580 = vmatprep.subr.mxu0 0.0
    %1581 = vmatpush1.msra.mxu0 %v1418
    %1582 = vmatprep.subr.mxu0 0.0
    %1583 = vmatpush1.msra.mxu0 0.0
    %1584 = vmatprep.subr.mxu0 0.0
    %1585 = vmatpush1.msra.mxu0 0.0
    %1586 = vmatprep.subr.mxu0 0.0
    %1587 = vmatpush1.msra.mxu0 0.0
    %1588 = vmatprep.subr.mxu0 0.0
    %1589 = vmatpush1.msra.mxu0 0.0
    %1590 = vmatprep.subr.mxu0 0.0
    %1591 = vmatpush1.msra.mxu0 0.0
    %1592 = vmatprep.subr.mxu0 0.0
    %1593 = vmatpush1.msra.mxu0 0.0
    %1594 = vmatprep.subr.mxu0 0.0
    %1595 = vmatpush1.msra.mxu0 0.0
    %1596 = vmatprep.subr.mxu0 0.0
    %1597 = vmatpush1.msra.mxu0 0.0
    %1598 = vmatprep.subr.mxu0 0.0
    %1599 = vmatpush1.msra.mxu0 0.0
    %1600 = vmatprep.subr.mxu0 0.0
    %1601 = vmatpush1.msra.mxu0 0.0
    %1602 = vmatprep.subr.mxu0 0.0
    %1603 = vmatpush1.msra.mxu0 0.0
    %1604 = vmatprep.subr.mxu0 0.0
    %1605 = vmatpush1.msra.mxu0 0.0
    %1606 = vmatprep.subr.mxu0 0.0
    %1607 = vmatpush1.msra.mxu0 0.0
    %1608 = vmatprep.subr.mxu0 0.0
    %1609 = vmatpush1.msra.mxu0 0.0
    %1610 = vmatprep.subr.mxu0 0.0
    %1611 = vmatpush1.msra.mxu0 0.0
    %1612 = vmatprep.subr.mxu0 0.0
    %1613 = vmatpush1.msra.mxu0 0.0
    %1614 = vmatprep.mubr.f32.mxu0 0.0
    %1615 = vmatmul.mubr.f32.gmra.mrb[0].mxu0 %v1548
    %v1616 = vpop.f32.mrb[0].mxu0
    %v1617 = vadd.f32 %v1532, %v1616
    %v1618 = vpop.f32.mrb[0].mxu0
    %1619 = vdwg.mxu0
    %v1620 = vld [vmem:[#allocation2 + $0x100] sm:$0xff]
    %v1621 = vld [vmem:[#allocation2 + $0x108] sm:$0xff]
    %v1622 = vld [vmem:[#allocation2 + $0x110] sm:$0xff]
    %v1623 = vld [vmem:[#allocation2 + $0x118] sm:$0xff]
    %v1624 = vld [vmem:[#allocation2 + $0x120] sm:$0xff]
    %v1625 = vld [vmem:[#allocation2 + $0x128] sm:$0xff]
    %v1626 = vld [vmem:[#allocation2 + $0x130] sm:$0xff]
    %v1627 = vld [vmem:[#allocation2 + $0x138] sm:$0xff]
    %v1628 = vld [vmem:[#allocation2 + $0x140] sm:$0xff]
    %v1629 = vld [vmem:[#allocation2 + $0x148] sm:$0xff]
    %v1630 = vld [vmem:[#allocation2 + $0x150] sm:$0xff]
    %v1631 = vld [vmem:[#allocation2 + $0x158] sm:$0xff]
    %v1632 = vld [vmem:[#allocation2 + $0x160] sm:$0xff]
    %v1633 = vld [vmem:[#allocation2 + $0x168] sm:$0xff]
    %v1634 = vld [vmem:[#allocation2 + $0x170] sm:$0xff]
    %v1635 = vld [vmem:[#allocation2 + $0x178] sm:$0xff]
    %v1636 = vrot.slane %v1387, 2
    %v1637 = vrot.slane %v1389, 1
    %v1638 = vsel %vm1444, %v1637, %v1636
    %v1639 = vsel %vm1447, %v1391, %v1638
    %v1640 = vrot.slane %v1393, 7
    %v1641 = vsel %vm1450, %v1640, %v1639
    %v1642 = vrot.slane %v1395, 6
    %v1643 = vsel %vm1453, %v1642, %v1641
    %v1644 = vrot.slane %v1397, 5
    %v1645 = vsel %vm1456, %v1644, %v1643
    %v1646 = vrot.slane %v1399, 4
    %v1647 = vsel %vm1459, %v1646, %v1645
    %v1648 = vrot.slane %v1401, 3
    %v1649 = vsel %vm1462, %v1648, %v1647
    %1651 = vmatprep.subr.mxu0 0.0
    %1652 = vmatpush1.msra.mxu0 %v1620
    %1653 = vmatprep.subr.mxu0 0.0
    %1654 = vmatpush1.msra.mxu0 %v1621
    %1655 = vmatprep.subr.mxu0 0.0
    %1656 = vmatpush1.msra.mxu0 %v1622
    %1657 = vmatprep.subr.mxu0 0.0
    %1658 = vmatpush1.msra.mxu0 %v1623
    %1659 = vmatprep.subr.mxu0 0.0
    %1660 = vmatpush1.msra.mxu0 %v1624
    %1661 = vmatprep.subr.mxu0 0.0
    %1662 = vmatpush1.msra.mxu0 %v1625
    %1663 = vmatprep.subr.mxu0 0.0
    %1664 = vmatpush1.msra.mxu0 %v1626
    %1665 = vmatprep.subr.mxu0 0.0
    %1666 = vmatpush1.msra.mxu0 %v1627
    %1667 = vmatprep.subr.mxu0 0.0
    %1668 = vmatpush1.msra.mxu0 %v1628
    %1669 = vmatprep.subr.mxu0 0.0
    %1670 = vmatpush1.msra.mxu0 %v1629
    %1671 = vmatprep.subr.mxu0 0.0
    %1672 = vmatpush1.msra.mxu0 %v1630
    %1673 = vmatprep.subr.mxu0 0.0
    %1674 = vmatpush1.msra.mxu0 %v1631
    %1675 = vmatprep.subr.mxu0 0.0
    %1676 = vmatpush1.msra.mxu0 %v1632
    %1677 = vmatprep.subr.mxu0 0.0
    %1678 = vmatpush1.msra.mxu0 %v1633
    %1679 = vmatprep.subr.mxu0 0.0
    %1680 = vmatpush1.msra.mxu0 %v1634
    %1681 = vmatprep.subr.mxu0 0.0
    %1682 = vmatpush1.msra.mxu0 %v1635
    %1683 = vmatprep.subr.mxu0 0.0
    %1684 = vmatpush1.msra.mxu0 0.0
    %1685 = vmatprep.subr.mxu0 0.0
    %1686 = vmatpush1.msra.mxu0 0.0
    %1687 = vmatprep.subr.mxu0 0.0
    %1688 = vmatpush1.msra.mxu0 0.0
    %1689 = vmatprep.subr.mxu0 0.0
    %1690 = vmatpush1.msra.mxu0 0.0
    %1691 = vmatprep.subr.mxu0 0.0
    %1692 = vmatpush1.msra.mxu0 0.0
    %1693 = vmatprep.subr.mxu0 0.0
    %1694 = vmatpush1.msra.mxu0 0.0
    %1695 = vmatprep.subr.mxu0 0.0
    %1696 = vmatpush1.msra.mxu0 0.0
    %1697 = vmatprep.subr.mxu0 0.0
    %1698 = vmatpush1.msra.mxu0 0.0
    %1699 = vmatprep.subr.mxu0 0.0
    %1700 = vmatpush1.msra.mxu0 0.0
    %1701 = vmatprep.subr.mxu0 0.0
    %1702 = vmatpush1.msra.mxu0 0.0
    %1703 = vmatprep.subr.mxu0 0.0
    %1704 = vmatpush1.msra.mxu0 0.0
    %1705 = vmatprep.subr.mxu0 0.0
    %1706 = vmatpush1.msra.mxu0 0.0
    %1707 = vmatprep.subr.mxu0 0.0
    %1708 = vmatpush1.msra.mxu0 0.0
    %1709 = vmatprep.subr.mxu0 0.0
    %1710 = vmatpush1.msra.mxu0 0.0
    %1711 = vmatprep.subr.mxu0 0.0
    %1712 = vmatpush1.msra.mxu0 0.0
    %1713 = vmatprep.subr.mxu0 0.0
    %1714 = vmatpush1.msra.mxu0 0.0
    %1715 = vmatprep.mubr.f32.mxu0 0.0
    %1716 = vmatmul.mubr.f32.gmra.mrb[0].mxu0 %v1649
    %v1717 = vpop.f32.mrb[0].mxu0
    %v1718 = vadd.f32 0.0, %v1717
    %v1719 = vpop.f32.mrb[0].mxu0
    %1720 = vdwg.mxu0
    %v1721 = vadd.f32 %v1617, %v1718
    %v1722 = vld [vmem:[#allocation2 + $0x180] sm:$0xff]
    %v1723 = vld [vmem:[#allocation2 + $0x188] sm:$0xff]
    %v1724 = vld [vmem:[#allocation2 + $0x190] sm:$0xff]
    %v1725 = vld [vmem:[#allocation2 + $0x198] sm:$0xff]
    %v1726 = vld [vmem:[#allocation2 + $0x1a0] sm:$0xff]
    %v1727 = vld [vmem:[#allocation2 + $0x1a8] sm:$0xff]
    %v1728 = vld [vmem:[#allocation2 + $0x1b0] sm:$0xff]
    %v1729 = vld [vmem:[#allocation2 + $0x1b8] sm:$0xff]
    %v1730 = vld [vmem:[#allocation2 + $0x1c0] sm:$0xff]
    %v1731 = vld [vmem:[#allocation2 + $0x1c8] sm:$0xff]
    %v1732 = vld [vmem:[#allocation2 + $0x1d0] sm:$0xff]
    %v1733 = vld [vmem:[#allocation2 + $0x1d8] sm:$0xff]
    %v1734 = vld [vmem:[#allocation2 + $0x1e0] sm:$0xff]
    %v1735 = vld [vmem:[#allocation2 + $0x1e8] sm:$0xff]
    %v1736 = vld [vmem:[#allocation2 + $0x1f0] sm:$0xff]
    %v1737 = vld [vmem:[#allocation2 + $0x1f8] sm:$0xff]
    %v1738 = vrot.slane %v1387, 3
    %v1739 = vrot.slane %v1389, 2
    %v1740 = vsel %vm1444, %v1739, %v1738
    %v1741 = vrot.slane %v1391, 1
    %v1742 = vsel %vm1447, %v1741, %v1740
    %v1743 = vsel %vm1450, %v1393, %v1742
    %v1744 = vrot.slane %v1395, 7
    %v1745 = vsel %vm1453, %v1744, %v1743
    %v1746 = vrot.slane %v1397, 6
    %v1747 = vsel %vm1456, %v1746, %v1745
    %v1748 = vrot.slane %v1399, 5
    %v1749 = vsel %vm1459, %v1748, %v1747
    %v1750 = vrot.slane %v1401, 4
    %v1751 = vsel %vm1462, %v1750, %v1749
    %1753 = vmatprep.subr.mxu0 0.0
    %1754 = vmatpush1.msra.mxu0 %v1722
    %1755 = vmatprep.subr.mxu0 0.0
    %1756 = vmatpush1.msra.mxu0 %v1723
    %1757 = vmatprep.subr.mxu0 0.0
    %1758 = vmatpush1.msra.mxu0 %v1724
    %1759 = vmatprep.subr.mxu0 0.0
    %1760 = vmatpush1.msra.mxu0 %v1725
    %1761 = vmatprep.subr.mxu0 0.0
    %1762 = vmatpush1.msra.mxu0 %v1726
    %1763 = vmatprep.subr.mxu0 0.0
    %1764 = vmatpush1.msra.mxu0 %v1727
    %1765 = vmatprep.subr.mxu0 0.0
    %1766 = vmatpush1.msra.mxu0 %v1728
    %1767 = vmatprep.subr.mxu0 0.0
    %1768 = vmatpush1.msra.mxu0 %v1729
    %1769 = vmatprep.subr.mxu0 0.0
    %1770 = vmatpush1.msra.mxu0 %v1730
    %1771 = vmatprep.subr.mxu0 0.0
    %1772 = vmatpush1.msra.mxu0 %v1731
    %1773 = vmatprep.subr.mxu0 0.0
    %1774 = vmatpush1.msra.mxu0 %v1732
    %1775 = vmatprep.subr.mxu0 0.0
    %1776 = vmatpush1.msra.mxu0 %v1733
    %1777 = vmatprep.subr.mxu0 0.0
    %1778 = vmatpush1.msra.mxu0 %v1734
    %1779 = vmatprep.subr.mxu0 0.0
    %1780 = vmatpush1.msra.mxu0 %v1735
    %1781 = vmatprep.subr.mxu0 0.0
    %1782 = vmatpush1.msra.mxu0 %v1736
    %1783 = vmatprep.subr.mxu0 0.0
    %1784 = vmatpush1.msra.mxu0 %v1737
    %1785 = vmatprep.subr.mxu0 0.0
    %1786 = vmatpush1.msra.mxu0 0.0
    %1787 = vmatprep.subr.mxu0 0.0
    %1788 = vmatpush1.msra.mxu0 0.0
    %1789 = vmatprep.subr.mxu0 0.0
    %1790 = vmatpush1.msra.mxu0 0.0
    %1791 = vmatprep.subr.mxu0 0.0
    %1792 = vmatpush1.msra.mxu0 0.0
    %1793 = vmatprep.subr.mxu0 0.0
    %1794 = vmatpush1.msra.mxu0 0.0
    %1795 = vmatprep.subr.mxu0 0.0
    %1796 = vmatpush1.msra.mxu0 0.0
    %1797 = vmatprep.subr.mxu0 0.0
    %1798 = vmatpush1.msra.mxu0 0.0
    %1799 = vmatprep.subr.mxu0 0.0
    %1800 = vmatpush1.msra.mxu0 0.0
    %1801 = vmatprep.subr.mxu0 0.0
    %1802 = vmatpush1.msra.mxu0 0.0
    %1803 = vmatprep.subr.mxu0 0.0
    %1804 = vmatpush1.msra.mxu0 0.0
    %1805 = vmatprep.subr.mxu0 0.0
    %1806 = vmatpush1.msra.mxu0 0.0
    %1807 = vmatprep.subr.mxu0 0.0
    %1808 = vmatpush1.msra.mxu0 0.0
    %1809 = vmatprep.subr.mxu0 0.0
    %1810 = vmatpush1.msra.mxu0 0.0
    %1811 = vmatprep.subr.mxu0 0.0
    %1812 = vmatpush1.msra.mxu0 0.0
    %1813 = vmatprep.subr.mxu0 0.0
    %1814 = vmatpush1.msra.mxu0 0.0
    %1815 = vmatprep.subr.mxu0 0.0
    %1816 = vmatpush1.msra.mxu0 0.0
    %1817 = vmatprep.mubr.f32.mxu0 0.0
    %1818 = vmatmul.mubr.f32.gmra.mrb[0].mxu0 %v1751
    %v1819 = vpop.f32.mrb[0].mxu0
    %v1820 = vadd.f32 0.0, %v1819
    %v1821 = vpop.f32.mrb[0].mxu0
    %1822 = vdwg.mxu0
    %v1823 = vadd.f32 %v1721, %v1820
    %v1824 = vld [vmem:[#allocation2 + $0x200] sm:$0xff]
    %v1825 = vld [vmem:[#allocation2 + $0x208] sm:$0xff]
    %v1826 = vld [vmem:[#allocation2 + $0x210] sm:$0xff]
    %v1827 = vld [vmem:[#allocation2 + $0x218] sm:$0xff]
    %v1828 = vld [vmem:[#allocation2 + $0x220] sm:$0xff]
    %v1829 = vld [vmem:[#allocation2 + $0x228] sm:$0xff]
    %v1830 = vld [vmem:[#allocation2 + $0x230] sm:$0xff]
    %v1831 = vld [vmem:[#allocation2 + $0x238] sm:$0xff]
    %v1832 = vld [vmem:[#allocation2 + $0x240] sm:$0xff]
    %v1833 = vld [vmem:[#allocation2 + $0x248] sm:$0xff]
    %v1834 = vld [vmem:[#allocation2 + $0x250] sm:$0xff]
    %v1835 = vld [vmem:[#allocation2 + $0x258] sm:$0xff]
    %v1836 = vld [vmem:[#allocation2 + $0x260] sm:$0xff]
    %v1837 = vld [vmem:[#allocation2 + $0x268] sm:$0xff]
    %v1838 = vld [vmem:[#allocation2 + $0x270] sm:$0xff]
    %v1839 = vld [vmem:[#allocation2 + $0x278] sm:$0xff]
    %v1840 = vrot.slane %v1387, 4
    %v1841 = vrot.slane %v1389, 3
    %v1842 = vsel %vm1444, %v1841, %v1840
    %v1843 = vrot.slane %v1391, 2
    %v1844 = vsel %vm1447, %v1843, %v1842
    %v1845 = vrot.slane %v1393, 1
    %v1846 = vsel %vm1450, %v1845, %v1844
    %v1847 = vsel %vm1453, %v1395, %v1846
    %v1848 = vrot.slane %v1397, 7
    %v1849 = vsel %vm1456, %v1848, %v1847
    %v1850 = vrot.slane %v1399, 6
    %v1851 = vsel %vm1459, %v1850, %v1849
    %v1852 = vrot.slane %v1401, 5
    %v1853 = vsel %vm1462, %v1852, %v1851
    %1855 = vmatprep.subr.mxu0 0.0
    %1856 = vmatpush1.msra.mxu0 %v1824
    %1857 = vmatprep.subr.mxu0 0.0
    %1858 = vmatpush1.msra.mxu0 %v1825
    %1859 = vmatprep.subr.mxu0 0.0
    %1860 = vmatpush1.msra.mxu0 %v1826
    %1861 = vmatprep.subr.mxu0 0.0
    %1862 = vmatpush1.msra.mxu0 %v1827
    %1863 = vmatprep.subr.mxu0 0.0
    %1864 = vmatpush1.msra.mxu0 %v1828
    %1865 = vmatprep.subr.mxu0 0.0
    %1866 = vmatpush1.msra.mxu0 %v1829
    %1867 = vmatprep.subr.mxu0 0.0
    %1868 = vmatpush1.msra.mxu0 %v1830
    %1869 = vmatprep.subr.mxu0 0.0
    %1870 = vmatpush1.msra.mxu0 %v1831
    %1871 = vmatprep.subr.mxu0 0.0
    %1872 = vmatpush1.msra.mxu0 %v1832
    %1873 = vmatprep.subr.mxu0 0.0
    %1874 = vmatpush1.msra.mxu0 %v1833
    %1875 = vmatprep.subr.mxu0 0.0
    %1876 = vmatpush1.msra.mxu0 %v1834
    %1877 = vmatprep.subr.mxu0 0.0
    %1878 = vmatpush1.msra.mxu0 %v1835
    %1879 = vmatprep.subr.mxu0 0.0
    %1880 = vmatpush1.msra.mxu0 %v1836
    %1881 = vmatprep.subr.mxu0 0.0
    %1882 = vmatpush1.msra.mxu0 %v1837
    %1883 = vmatprep.subr.mxu0 0.0
    %1884 = vmatpush1.msra.mxu0 %v1838
    %1885 = vmatprep.subr.mxu0 0.0
    %1886 = vmatpush1.msra.mxu0 %v1839
    %1887 = vmatprep.subr.mxu0 0.0
    %1888 = vmatpush1.msra.mxu0 0.0
    %1889 = vmatprep.subr.mxu0 0.0
    %1890 = vmatpush1.msra.mxu0 0.0
    %1891 = vmatprep.subr.mxu0 0.0
    %1892 = vmatpush1.msra.mxu0 0.0
    %1893 = vmatprep.subr.mxu0 0.0
    %1894 = vmatpush1.msra.mxu0 0.0
    %1895 = vmatprep.subr.mxu0 0.0
    %1896 = vmatpush1.msra.mxu0 0.0
    %1897 = vmatprep.subr.mxu0 0.0
    %1898 = vmatpush1.msra.mxu0 0.0
    %1899 = vmatprep.subr.mxu0 0.0
    %1900 = vmatpush1.msra.mxu0 0.0
    %1901 = vmatprep.subr.mxu0 0.0
    %1902 = vmatpush1.msra.mxu0 0.0
    %1903 = vmatprep.subr.mxu0 0.0
    %1904 = vmatpush1.msra.mxu0 0.0
    %1905 = vmatprep.subr.mxu0 0.0
    %1906 = vmatpush1.msra.mxu0 0.0
    %1907 = vmatprep.subr.mxu0 0.0
    %1908 = vmatpush1.msra.mxu0 0.0
    %1909 = vmatprep.subr.mxu0 0.0
    %1910 = vmatpush1.msra.mxu0 0.0
    %1911 = vmatprep.subr.mxu0 0.0
    %1912 = vmatpush1.msra.mxu0 0.0
    %1913 = vmatprep.subr.mxu0 0.0
    %1914 = vmatpush1.msra.mxu0 0.0
    %1915 = vmatprep.subr.mxu0 0.0
    %1916 = vmatpush1.msra.mxu0 0.0
    %1917 = vmatprep.subr.mxu0 0.0
    %1918 = vmatpush1.msra.mxu0 0.0
    %1919 = vmatprep.mubr.f32.mxu0 0.0
    %1920 = vmatmul.mubr.f32.gmra.mrb[0].mxu0 %v1853
    %v1921 = vpop.f32.mrb[0].mxu0
    %v1922 = vadd.f32 0.0, %v1921
    %v1923 = vpop.f32.mrb[0].mxu0
    %1924 = vdwg.mxu0
    %v1925 = vadd.f32 %v1823, %v1922
    %v1926 = vld [vmem:[#allocation2 + $0x280] sm:$0xff]
    %v1927 = vld [vmem:[#allocation2 + $0x288] sm:$0xff]
    %v1928 = vld [vmem:[#allocation2 + $0x290] sm:$0xff]
    %v1929 = vld [vmem:[#allocation2 + $0x298] sm:$0xff]
    %v1930 = vld [vmem:[#allocation2 + $0x2a0] sm:$0xff]
    %v1931 = vld [vmem:[#allocation2 + $0x2a8] sm:$0xff]
    %v1932 = vld [vmem:[#allocation2 + $0x2b0] sm:$0xff]
    %v1933 = vld [vmem:[#allocation2 + $0x2b8] sm:$0xff]
    %v1934 = vld [vmem:[#allocation2 + $0x2c0] sm:$0xff]
    %v1935 = vld [vmem:[#allocation2 + $0x2c8] sm:$0xff]
    %v1936 = vld [vmem:[#allocation2 + $0x2d0] sm:$0xff]
    %v1937 = vld [vmem:[#allocation2 + $0x2d8] sm:$0xff]
    %v1938 = vld [vmem:[#allocation2 + $0x2e0] sm:$0xff]
    %v1939 = vld [vmem:[#allocation2 + $0x2e8] sm:$0xff]
    %v1940 = vld [vmem:[#allocation2 + $0x2f0] sm:$0xff]
    %v1941 = vld [vmem:[#allocation2 + $0x2f8] sm:$0xff]
    %v1942 = vrot.slane %v1387, 5
    %v1943 = vrot.slane %v1389, 4
    %v1944 = vsel %vm1444, %v1943, %v1942
    %v1945 = vrot.slane %v1391, 3
    %v1946 = vsel %vm1447, %v1945, %v1944
    %v1947 = vrot.slane %v1393, 2
    %v1948 = vsel %vm1450, %v1947, %v1946
    %v1949 = vrot.slane %v1395, 1
    %v1950 = vsel %vm1453, %v1949, %v1948
    %v1951 = vsel %vm1456, %v1397, %v1950
    %v1952 = vrot.slane %v1399, 7
    %v1953 = vsel %vm1459, %v1952, %v1951
    %v1954 = vrot.slane %v1401, 6
    %v1955 = vsel %vm1462, %v1954, %v1953
    %1957 = vmatprep.subr.mxu0 0.0
    %1958 = vmatpush1.msra.mxu0 %v1926
    %1959 = vmatprep.subr.mxu0 0.0
    %1960 = vmatpush1.msra.mxu0 %v1927
    %1961 = vmatprep.subr.mxu0 0.0
    %1962 = vmatpush1.msra.mxu0 %v1928
    %1963 = vmatprep.subr.mxu0 0.0
    %1964 = vmatpush1.msra.mxu0 %v1929
    %1965 = vmatprep.subr.mxu0 0.0
    %1966 = vmatpush1.msra.mxu0 %v1930
    %1967 = vmatprep.subr.mxu0 0.0
    %1968 = vmatpush1.msra.mxu0 %v1931
    %1969 = vmatprep.subr.mxu0 0.0
    %1970 = vmatpush1.msra.mxu0 %v1932
    %1971 = vmatprep.subr.mxu0 0.0
    %1972 = vmatpush1.msra.mxu0 %v1933
    %1973 = vmatprep.subr.mxu0 0.0
    %1974 = vmatpush1.msra.mxu0 %v1934
    %1975 = vmatprep.subr.mxu0 0.0
    %1976 = vmatpush1.msra.mxu0 %v1935
    %1977 = vmatprep.subr.mxu0 0.0
    %1978 = vmatpush1.msra.mxu0 %v1936
    %1979 = vmatprep.subr.mxu0 0.0
    %1980 = vmatpush1.msra.mxu0 %v1937
    %1981 = vmatprep.subr.mxu0 0.0
    %1982 = vmatpush1.msra.mxu0 %v1938
    %1983 = vmatprep.subr.mxu0 0.0
    %1984 = vmatpush1.msra.mxu0 %v1939
    %1985 = vmatprep.subr.mxu0 0.0
    %1986 = vmatpush1.msra.mxu0 %v1940
    %1987 = vmatprep.subr.mxu0 0.0
    %1988 = vmatpush1.msra.mxu0 %v1941
    %1989 = vmatprep.subr.mxu0 0.0
    %1990 = vmatpush1.msra.mxu0 0.0
    %1991 = vmatprep.subr.mxu0 0.0
    %1992 = vmatpush1.msra.mxu0 0.0
    %1993 = vmatprep.subr.mxu0 0.0
    %1994 = vmatpush1.msra.mxu0 0.0
    %1995 = vmatprep.subr.mxu0 0.0
    %1996 = vmatpush1.msra.mxu0 0.0
    %1997 = vmatprep.subr.mxu0 0.0
    %1998 = vmatpush1.msra.mxu0 0.0
    %1999 = vmatprep.subr.mxu0 0.0
    %2000 = vmatpush1.msra.mxu0 0.0
    %2001 = vmatprep.subr.mxu0 0.0
    %2002 = vmatpush1.msra.mxu0 0.0
    %2003 = vmatprep.subr.mxu0 0.0
    %2004 = vmatpush1.msra.mxu0 0.0
    %2005 = vmatprep.subr.mxu0 0.0
    %2006 = vmatpush1.msra.mxu0 0.0
    %2007 = vmatprep.subr.mxu0 0.0
    %2008 = vmatpush1.msra.mxu0 0.0
    %2009 = vmatprep.subr.mxu0 0.0
    %2010 = vmatpush1.msra.mxu0 0.0
    %2011 = vmatprep.subr.mxu0 0.0
    %2012 = vmatpush1.msra.mxu0 0.0
    %2013 = vmatprep.subr.mxu0 0.0
    %2014 = vmatpush1.msra.mxu0 0.0
    %2015 = vmatprep.subr.mxu0 0.0
    %2016 = vmatpush1.msra.mxu0 0.0
    %2017 = vmatprep.subr.mxu0 0.0
    %2018 = vmatpush1.msra.mxu0 0.0
    %2019 = vmatprep.subr.mxu0 0.0
    %2020 = vmatpush1.msra.mxu0 0.0
    %2021 = vmatprep.mubr.f32.mxu0 0.0
    %2022 = vmatmul.mubr.f32.gmra.mrb[0].mxu0 %v1955
    %v2023 = vpop.f32.mrb[0].mxu0
    %v2024 = vadd.f32 0.0, %v2023
    %v2025 = vpop.f32.mrb[0].mxu0
    %2026 = vdwg.mxu0
    %v2027 = vadd.f32 %v1925, %v2024
    %v2028 = vld [vmem:[#allocation2 + $0x300] sm:$0xff]
    %v2029 = vld [vmem:[#allocation2 + $0x308] sm:$0xff]
    %v2030 = vld [vmem:[#allocation2 + $0x310] sm:$0xff]
    %v2031 = vld [vmem:[#allocation2 + $0x318] sm:$0xff]
    %v2032 = vld [vmem:[#allocation2 + $0x320] sm:$0xff]
    %v2033 = vld [vmem:[#allocation2 + $0x328] sm:$0xff]
    %v2034 = vld [vmem:[#allocation2 + $0x330] sm:$0xff]
    %v2035 = vld [vmem:[#allocation2 + $0x338] sm:$0xff]
    %v2036 = vld [vmem:[#allocation2 + $0x340] sm:$0xff]
    %v2037 = vld [vmem:[#allocation2 + $0x348] sm:$0xff]
    %v2038 = vld [vmem:[#allocation2 + $0x350] sm:$0xff]
    %v2039 = vld [vmem:[#allocation2 + $0x358] sm:$0xff]
    %v2040 = vld [vmem:[#allocation2 + $0x360] sm:$0xff]
    %v2041 = vld [vmem:[#allocation2 + $0x368] sm:$0xff]
    %v2042 = vld [vmem:[#allocation2 + $0x370] sm:$0xff]
    %v2043 = vld [vmem:[#allocation2 + $0x378] sm:$0xff]
    %v2044 = vrot.slane %v1387, 6
    %v2045 = vrot.slane %v1389, 5
    %v2046 = vsel %vm1444, %v2045, %v2044
    %v2047 = vrot.slane %v1391, 4
    %v2048 = vsel %vm1447, %v2047, %v2046
    %v2049 = vrot.slane %v1393, 3
    %v2050 = vsel %vm1450, %v2049, %v2048
    %v2051 = vrot.slane %v1395, 2
    %v2052 = vsel %vm1453, %v2051, %v2050
    %v2053 = vrot.slane %v1397, 1
    %v2054 = vsel %vm1456, %v2053, %v2052
    %v2055 = vsel %vm1459, %v1399, %v2054
    %v2056 = vrot.slane %v1401, 7
    %v2057 = vsel %vm1462, %v2056, %v2055
    %2059 = vmatprep.subr.mxu0 0.0
    %2060 = vmatpush1.msra.mxu0 %v2028
    %2061 = vmatprep.subr.mxu0 0.0
    %2062 = vmatpush1.msra.mxu0 %v2029
    %2063 = vmatprep.subr.mxu0 0.0
    %2064 = vmatpush1.msra.mxu0 %v2030
    %2065 = vmatprep.subr.mxu0 0.0
    %2066 = vmatpush1.msra.mxu0 %v2031
    %2067 = vmatprep.subr.mxu0 0.0
    %2068 = vmatpush1.msra.mxu0 %v2032
    %2069 = vmatprep.subr.mxu0 0.0
    %2070 = vmatpush1.msra.mxu0 %v2033
    %2071 = vmatprep.subr.mxu0 0.0
    %2072 = vmatpush1.msra.mxu0 %v2034
    %2073 = vmatprep.subr.mxu0 0.0
    %2074 = vmatpush1.msra.mxu0 %v2035
    %2075 = vmatprep.subr.mxu0 0.0
    %2076 = vmatpush1.msra.mxu0 %v2036
    %2077 = vmatprep.subr.mxu0 0.0
    %2078 = vmatpush1.msra.mxu0 %v2037
    %2079 = vmatprep.subr.mxu0 0.0
    %2080 = vmatpush1.msra.mxu0 %v2038
    %2081 = vmatprep.subr.mxu0 0.0
    %2082 = vmatpush1.msra.mxu0 %v2039
    %2083 = vmatprep.subr.mxu0 0.0
    %2084 = vmatpush1.msra.mxu0 %v2040
    %2085 = vmatprep.subr.mxu0 0.0
    %2086 = vmatpush1.msra.mxu0 %v2041
    %2087 = vmatprep.subr.mxu0 0.0
    %2088 = vmatpush1.msra.mxu0 %v2042
    %2089 = vmatprep.subr.mxu0 0.0
    %2090 = vmatpush1.msra.mxu0 %v2043
    %2091 = vmatprep.subr.mxu0 0.0
    %2092 = vmatpush1.msra.mxu0 0.0
    %2093 = vmatprep.subr.mxu0 0.0
    %2094 = vmatpush1.msra.mxu0 0.0
    %2095 = vmatprep.subr.mxu0 0.0
    %2096 = vmatpush1.msra.mxu0 0.0
    %2097 = vmatprep.subr.mxu0 0.0
    %2098 = vmatpush1.msra.mxu0 0.0
    %2099 = vmatprep.subr.mxu0 0.0
    %2100 = vmatpush1.msra.mxu0 0.0
    %2101 = vmatprep.subr.mxu0 0.0
    %2102 = vmatpush1.msra.mxu0 0.0
    %2103 = vmatprep.subr.mxu0 0.0
    %2104 = vmatpush1.msra.mxu0 0.0
    %2105 = vmatprep.subr.mxu0 0.0
    %2106 = vmatpush1.msra.mxu0 0.0
    %2107 = vmatprep.subr.mxu0 0.0
    %2108 = vmatpush1.msra.mxu0 0.0
    %2109 = vmatprep.subr.mxu0 0.0
    %2110 = vmatpush1.msra.mxu0 0.0
    %2111 = vmatprep.subr.mxu0 0.0
    %2112 = vmatpush1.msra.mxu0 0.0
    %2113 = vmatprep.subr.mxu0 0.0
    %2114 = vmatpush1.msra.mxu0 0.0
    %2115 = vmatprep.subr.mxu0 0.0
    %2116 = vmatpush1.msra.mxu0 0.0
    %2117 = vmatprep.subr.mxu0 0.0
    %2118 = vmatpush1.msra.mxu0 0.0
    %2119 = vmatprep.subr.mxu0 0.0
    %2120 = vmatpush1.msra.mxu0 0.0
    %2121 = vmatprep.subr.mxu0 0.0
    %2122 = vmatpush1.msra.mxu0 0.0
    %2123 = vmatprep.mubr.f32.mxu0 0.0
    %2124 = vmatmul.mubr.f32.gmra.mrb[0].mxu0 %v2057
    %v2125 = vpop.f32.mrb[0].mxu0
    %v2126 = vadd.f32 0.0, %v2125
    %v2127 = vpop.f32.mrb[0].mxu0
    %2128 = vdwg.mxu0
    %v2129 = vadd.f32 %v2027, %v2126
    %v2130 = vld [vmem:[#allocation2 + $0x380] sm:$0xff]
    %v2131 = vld [vmem:[#allocation2 + $0x388] sm:$0xff]
    %v2132 = vld [vmem:[#allocation2 + $0x390] sm:$0xff]
    %v2133 = vld [vmem:[#allocation2 + $0x398] sm:$0xff]
    %v2134 = vld [vmem:[#allocation2 + $0x3a0] sm:$0xff]
    %v2135 = vld [vmem:[#allocation2 + $0x3a8] sm:$0xff]
    %v2136 = vld [vmem:[#allocation2 + $0x3b0] sm:$0xff]
    %v2137 = vld [vmem:[#allocation2 + $0x3b8] sm:$0xff]
    %v2138 = vld [vmem:[#allocation2 + $0x3c0] sm:$0xff]
    %v2139 = vld [vmem:[#allocation2 + $0x3c8] sm:$0xff]
    %v2140 = vld [vmem:[#allocation2 + $0x3d0] sm:$0xff]
    %v2141 = vld [vmem:[#allocation2 + $0x3d8] sm:$0xff]
    %v2142 = vld [vmem:[#allocation2 + $0x3e0] sm:$0xff]
    %v2143 = vld [vmem:[#allocation2 + $0x3e8] sm:$0xff]
    %v2144 = vld [vmem:[#allocation2 + $0x3f0] sm:$0xff]
    %v2145 = vld [vmem:[#allocation2 + $0x3f8] sm:$0xff]
    %v2146 = vrot.slane %v1387, 7
    %v2147 = vrot.slane %v1389, 6
    %v2148 = vsel %vm1444, %v2147, %v2146
    %v2149 = vrot.slane %v1391, 5
    %v2150 = vsel %vm1447, %v2149, %v2148
    %v2151 = vrot.slane %v1393, 4
    %v2152 = vsel %vm1450, %v2151, %v2150
    %v2153 = vrot.slane %v1395, 3
    %v2154 = vsel %vm1453, %v2153, %v2152
    %v2155 = vrot.slane %v1397, 2
    %v2156 = vsel %vm1456, %v2155, %v2154
    %v2157 = vrot.slane %v1399, 1
    %v2158 = vsel %vm1459, %v2157, %v2156
    %v2159 = vsel %vm1462, %v1401, %v2158
    %2161 = vmatprep.subr.mxu0 0.0
    %2162 = vmatpush1.msra.mxu0 %v2130
    %2163 = vmatprep.subr.mxu0 0.0
    %2164 = vmatpush1.msra.mxu0 %v2131
    %2165 = vmatprep.subr.mxu0 0.0
    %2166 = vmatpush1.msra.mxu0 %v2132
    %2167 = vmatprep.subr.mxu0 0.0
    %2168 = vmatpush1.msra.mxu0 %v2133
    %2169 = vmatprep.subr.mxu0 0.0
    %2170 = vmatpush1.msra.mxu0 %v2134
    %2171 = vmatprep.subr.mxu0 0.0
    %2172 = vmatpush1.msra.mxu0 %v2135
    %2173 = vmatprep.subr.mxu0 0.0
    %2174 = vmatpush1.msra.mxu0 %v2136
    %2175 = vmatprep.subr.mxu0 0.0
    %2176 = vmatpush1.msra.mxu0 %v2137
    %2177 = vmatprep.subr.mxu0 0.0
    %2178 = vmatpush1.msra.mxu0 %v2138
    %2179 = vmatprep.subr.mxu0 0.0
    %2180 = vmatpush1.msra.mxu0 %v2139
    %2181 = vmatprep.subr.mxu0 0.0
    %2182 = vmatpush1.msra.mxu0 %v2140
    %2183 = vmatprep.subr.mxu0 0.0
    %2184 = vmatpush1.msra.mxu0 %v2141
    %2185 = vmatprep.subr.mxu0 0.0
    %2186 = vmatpush1.msra.mxu0 %v2142
    %2187 = vmatprep.subr.mxu0 0.0
    %2188 = vmatpush1.msra.mxu0 %v2143
    %2189 = vmatprep.subr.mxu0 0.0
    %2190 = vmatpush1.msra.mxu0 %v2144
    %2191 = vmatprep.subr.mxu0 0.0
    %2192 = vmatpush1.msra.mxu0 %v2145
    %2193 = vmatprep.subr.mxu0 0.0
    %2194 = vmatpush1.msra.mxu0 0.0
    %2195 = vmatprep.subr.mxu0 0.0
    %2196 = vmatpush1.msra.mxu0 0.0
    %2197 = vmatprep.subr.mxu0 0.0
    %2198 = vmatpush1.msra.mxu0 0.0
    %2199 = vmatprep.subr.mxu0 0.0
    %2200 = vmatpush1.msra.mxu0 0.0
    %2201 = vmatprep.subr.mxu0 0.0
    %2202 = vmatpush1.msra.mxu0 0.0
    %2203 = vmatprep.subr.mxu0 0.0
    %2204 = vmatpush1.msra.mxu0 0.0
    %2205 = vmatprep.subr.mxu0 0.0
    %2206 = vmatpush1.msra.mxu0 0.0
    %2207 = vmatprep.subr.mxu0 0.0
    %2208 = vmatpush1.msra.mxu0 0.0
    %2209 = vmatprep.subr.mxu0 0.0
    %2210 = vmatpush1.msra.mxu0 0.0
    %2211 = vmatprep.subr.mxu0 0.0
    %2212 = vmatpush1.msra.mxu0 0.0
    %2213 = vmatprep.subr.mxu0 0.0
    %2214 = vmatpush1.msra.mxu0 0.0
    %2215 = vmatprep.subr.mxu0 0.0
    %2216 = vmatpush1.msra.mxu0 0.0
    %2217 = vmatprep.subr.mxu0 0.0
    %2218 = vmatpush1.msra.mxu0 0.0
    %2219 = vmatprep.subr.mxu0 0.0
    %2220 = vmatpush1.msra.mxu0 0.0
    %2221 = vmatprep.subr.mxu0 0.0
    %2222 = vmatpush1.msra.mxu0 0.0
    %2223 = vmatprep.subr.mxu0 0.0
    %2224 = vmatpush1.msra.mxu0 0.0
    %2225 = vmatprep.mubr.f32.mxu0 0.0
    %2226 = vmatmul.mubr.f32.gmra.mrb[0].mxu0 %v2159
    %v2227 = vpop.f32.mrb[0].mxu0
    %v2228 = vadd.f32 0.0, %v2227
    %v2229 = vpop.f32.mrb[0].mxu0
    %2230 = vdwg.mxu0
    %v2231 = vadd.f32 %v2129, %v2228
    %v2232 = vld [vmem:[#allocation2 + $0x400] sm:$0xff]
    %v2233 = vld [vmem:[#allocation2 + $0x408] sm:$0xff]
    %v2234 = vld [vmem:[#allocation2 + $0x410] sm:$0xff]
    %v2235 = vld [vmem:[#allocation2 + $0x418] sm:$0xff]
    %v2236 = vld [vmem:[#allocation2 + $0x420] sm:$0xff]
    %v2237 = vld [vmem:[#allocation2 + $0x428] sm:$0xff]
    %v2238 = vld [vmem:[#allocation2 + $0x430] sm:$0xff]
    %v2239 = vld [vmem:[#allocation2 + $0x438] sm:$0xff]
    %v2240 = vld [vmem:[#allocation2 + $0x440] sm:$0xff]
    %v2241 = vld [vmem:[#allocation2 + $0x448] sm:$0xff]
    %v2242 = vld [vmem:[#allocation2 + $0x450] sm:$0xff]
    %v2243 = vld [vmem:[#allocation2 + $0x458] sm:$0xff]
    %v2244 = vld [vmem:[#allocation2 + $0x460] sm:$0xff]
    %v2245 = vld [vmem:[#allocation2 + $0x468] sm:$0xff]
    %v2246 = vld [vmem:[#allocation2 + $0x470] sm:$0xff]
    %v2247 = vld [vmem:[#allocation2 + $0x478] sm:$0xff]
    %v2256 = vrot.slane %v1390, 7
    %v2257 = vsel %vm1444, %v2256, %v1388
    %v2258 = vrot.slane %v1392, 6
    %v2259 = vsel %vm1447, %v2258, %v2257
    %v2260 = vrot.slane %v1394, 5
    %v2261 = vsel %vm1450, %v2260, %v2259
    %v2262 = vrot.slane %v1396, 4
    %v2263 = vsel %vm1453, %v2262, %v2261
    %v2264 = vrot.slane %v1398, 3
    %v2265 = vsel %vm1456, %v2264, %v2263
    %v2266 = vrot.slane %v1400, 2
    %v2267 = vsel %vm1459, %v2266, %v2265
    %v2268 = vrot.slane %v1402, 1
    %v2269 = vsel %vm1462, %v2268, %v2267
    %2271 = vmatprep.subr.mxu0 0.0
    %2272 = vmatpush1.msra.mxu0 %v2232
    %2273 = vmatprep.subr.mxu0 0.0
    %2274 = vmatpush1.msra.mxu0 %v2233
    %2275 = vmatprep.subr.mxu0 0.0
    %2276 = vmatpush1.msra.mxu0 %v2234
    %2277 = vmatprep.subr.mxu0 0.0
    %2278 = vmatpush1.msra.mxu0 %v2235
    %2279 = vmatprep.subr.mxu0 0.0
    %2280 = vmatpush1.msra.mxu0 %v2236
    %2281 = vmatprep.subr.mxu0 0.0
    %2282 = vmatpush1.msra.mxu0 %v2237
    %2283 = vmatprep.subr.mxu0 0.0
    %2284 = vmatpush1.msra.mxu0 %v2238
    %2285 = vmatprep.subr.mxu0 0.0
    %2286 = vmatpush1.msra.mxu0 %v2239
    %2287 = vmatprep.subr.mxu0 0.0
    %2288 = vmatpush1.msra.mxu0 %v2240
    %2289 = vmatprep.subr.mxu0 0.0
    %2290 = vmatpush1.msra.mxu0 %v2241
    %2291 = vmatprep.subr.mxu0 0.0
    %2292 = vmatpush1.msra.mxu0 %v2242
    %2293 = vmatprep.subr.mxu0 0.0
    %2294 = vmatpush1.msra.mxu0 %v2243
    %2295 = vmatprep.subr.mxu0 0.0
    %2296 = vmatpush1.msra.mxu0 %v2244
    %2297 = vmatprep.subr.mxu0 0.0
    %2298 = vmatpush1.msra.mxu0 %v2245
    %2299 = vmatprep.subr.mxu0 0.0
    %2300 = vmatpush1.msra.mxu0 %v2246
    %2301 = vmatprep.subr.mxu0 0.0
    %2302 = vmatpush1.msra.mxu0 %v2247
    %2303 = vmatprep.subr.mxu0 0.0
    %2304 = vmatpush1.msra.mxu0 0.0
    %2305 = vmatprep.subr.mxu0 0.0
    %2306 = vmatpush1.msra.mxu0 0.0
    %2307 = vmatprep.subr.mxu0 0.0
    %2308 = vmatpush1.msra.mxu0 0.0
    %2309 = vmatprep.subr.mxu0 0.0
    %2310 = vmatpush1.msra.mxu0 0.0
    %2311 = vmatprep.subr.mxu0 0.0
    %2312 = vmatpush1.msra.mxu0 0.0
    %2313 = vmatprep.subr.mxu0 0.0
    %2314 = vmatpush1.msra.mxu0 0.0
    %2315 = vmatprep.subr.mxu0 0.0
    %2316 = vmatpush1.msra.mxu0 0.0
    %2317 = vmatprep.subr.mxu0 0.0
    %2318 = vmatpush1.msra.mxu0 0.0
    %2319 = vmatprep.subr.mxu0 0.0
    %2320 = vmatpush1.msra.mxu0 0.0
    %2321 = vmatprep.subr.mxu0 0.0
    %2322 = vmatpush1.msra.mxu0 0.0
    %2323 = vmatprep.subr.mxu0 0.0
    %2324 = vmatpush1.msra.mxu0 0.0
    %2325 = vmatprep.subr.mxu0 0.0
    %2326 = vmatpush1.msra.mxu0 0.0
    %2327 = vmatprep.subr.mxu0 0.0
    %2328 = vmatpush1.msra.mxu0 0.0
    %2329 = vmatprep.subr.mxu0 0.0
    %2330 = vmatpush1.msra.mxu0 0.0
    %2331 = vmatprep.subr.mxu0 0.0
    %2332 = vmatpush1.msra.mxu0 0.0
    %2333 = vmatprep.subr.mxu0 0.0
    %2334 = vmatpush1.msra.mxu0 0.0
    %2335 = vmatprep.mubr.f32.mxu0 0.0
    %2336 = vmatmul.mubr.f32.gmra.mrb[0].mxu0 %v2269
    %v2337 = vpop.f32.mrb[0].mxu0
    %v2338 = vadd.f32 0.0, %v2337
    %v2339 = vpop.f32.mrb[0].mxu0
    %2340 = vdwg.mxu0
    %v2341 = vadd.f32 %v2231, %v2338
    %v2342 = vld [vmem:[#allocation2 + $0x480] sm:$0xff]
    %v2343 = vld [vmem:[#allocation2 + $0x488] sm:$0xff]
    %v2344 = vld [vmem:[#allocation2 + $0x490] sm:$0xff]
    %v2345 = vld [vmem:[#allocation2 + $0x498] sm:$0xff]
    %v2346 = vld [vmem:[#allocation2 + $0x4a0] sm:$0xff]
    %v2347 = vld [vmem:[#allocation2 + $0x4a8] sm:$0xff]
    %v2348 = vld [vmem:[#allocation2 + $0x4b0] sm:$0xff]
    %v2349 = vld [vmem:[#allocation2 + $0x4b8] sm:$0xff]
    %v2350 = vld [vmem:[#allocation2 + $0x4c0] sm:$0xff]
    %v2351 = vld [vmem:[#allocation2 + $0x4c8] sm:$0xff]
    %v2352 = vld [vmem:[#allocation2 + $0x4d0] sm:$0xff]
    %v2353 = vld [vmem:[#allocation2 + $0x4d8] sm:$0xff]
    %v2354 = vld [vmem:[#allocation2 + $0x4e0] sm:$0xff]
    %v2355 = vld [vmem:[#allocation2 + $0x4e8] sm:$0xff]
    %v2356 = vld [vmem:[#allocation2 + $0x4f0] sm:$0xff]
    %v2357 = vld [vmem:[#allocation2 + $0x4f8] sm:$0xff]
    %v2358 = vrot.slane %v1388, 1
    %v2359 = vsel %vm1444, %v1390, %v2358
    %v2360 = vrot.slane %v1392, 7
    %v2361 = vsel %vm1447, %v2360, %v2359
    %v2362 = vrot.slane %v1394, 6
    %v2363 = vsel %vm1450, %v2362, %v2361
    %v2364 = vrot.slane %v1396, 5
    %v2365 = vsel %vm1453, %v2364, %v2363
    %v2366 = vrot.slane %v1398, 4
    %v2367 = vsel %vm1456, %v2366, %v2365
    %v2368 = vrot.slane %v1400, 3
    %v2369 = vsel %vm1459, %v2368, %v2367
    %v2370 = vrot.slane %v1402, 2
    %v2371 = vsel %vm1462, %v2370, %v2369
    %2373 = vmatprep.subr.mxu0 0.0
    %2374 = vmatpush1.msra.mxu0 %v2342
    %2375 = vmatprep.subr.mxu0 0.0
    %2376 = vmatpush1.msra.mxu0 %v2343
    %2377 = vmatprep.subr.mxu0 0.0
    %2378 = vmatpush1.msra.mxu0 %v2344
    %2379 = vmatprep.subr.mxu0 0.0
    %2380 = vmatpush1.msra.mxu0 %v2345
    %2381 = vmatprep.subr.mxu0 0.0
    %2382 = vmatpush1.msra.mxu0 %v2346
    %2383 = vmatprep.subr.mxu0 0.0
    %2384 = vmatpush1.msra.mxu0 %v2347
    %2385 = vmatprep.subr.mxu0 0.0
    %2386 = vmatpush1.msra.mxu0 %v2348
    %2387 = vmatprep.subr.mxu0 0.0
    %2388 = vmatpush1.msra.mxu0 %v2349
    %2389 = vmatprep.subr.mxu0 0.0
    %2390 = vmatpush1.msra.mxu0 %v2350
    %2391 = vmatprep.subr.mxu0 0.0
    %2392 = vmatpush1.msra.mxu0 %v2351
    %2393 = vmatprep.subr.mxu0 0.0
    %2394 = vmatpush1.msra.mxu0 %v2352
    %2395 = vmatprep.subr.mxu0 0.0
    %2396 = vmatpush1.msra.mxu0 %v2353
    %2397 = vmatprep.subr.mxu0 0.0
    %2398 = vmatpush1.msra.mxu0 %v2354
    %2399 = vmatprep.subr.mxu0 0.0
    %2400 = vmatpush1.msra.mxu0 %v2355
    %2401 = vmatprep.subr.mxu0 0.0
    %2402 = vmatpush1.msra.mxu0 %v2356
    %2403 = vmatprep.subr.mxu0 0.0
    %2404 = vmatpush1.msra.mxu0 %v2357
    %2405 = vmatprep.subr.mxu0 0.0
    %2406 = vmatpush1.msra.mxu0 0.0
    %2407 = vmatprep.subr.mxu0 0.0
    %2408 = vmatpush1.msra.mxu0 0.0
    %2409 = vmatprep.subr.mxu0 0.0
    %2410 = vmatpush1.msra.mxu0 0.0
    %2411 = vmatprep.subr.mxu0 0.0
    %2412 = vmatpush1.msra.mxu0 0.0
    %2413 = vmatprep.subr.mxu0 0.0
    %2414 = vmatpush1.msra.mxu0 0.0
    %2415 = vmatprep.subr.mxu0 0.0
    %2416 = vmatpush1.msra.mxu0 0.0
    %2417 = vmatprep.subr.mxu0 0.0
    %2418 = vmatpush1.msra.mxu0 0.0
    %2419 = vmatprep.subr.mxu0 0.0
    %2420 = vmatpush1.msra.mxu0 0.0
    %2421 = vmatprep.subr.mxu0 0.0
    %2422 = vmatpush1.msra.mxu0 0.0
    %2423 = vmatprep.subr.mxu0 0.0
    %2424 = vmatpush1.msra.mxu0 0.0
    %2425 = vmatprep.subr.mxu0 0.0
    %2426 = vmatpush1.msra.mxu0 0.0
    %2427 = vmatprep.subr.mxu0 0.0
    %2428 = vmatpush1.msra.mxu0 0.0
    %2429 = vmatprep.subr.mxu0 0.0
    %2430 = vmatpush1.msra.mxu0 0.0
    %2431 = vmatprep.subr.mxu0 0.0
    %2432 = vmatpush1.msra.mxu0 0.0
    %2433 = vmatprep.subr.mxu0 0.0
    %2434 = vmatpush1.msra.mxu0 0.0
    %2435 = vmatprep.subr.mxu0 0.0
    %2436 = vmatpush1.msra.mxu0 0.0
    %2437 = vmatprep.mubr.f32.mxu0 0.0
    %2438 = vmatmul.mubr.f32.gmra.mrb[0].mxu0 %v2371
    %v2439 = vpop.f32.mrb[0].mxu0
    %v2440 = vadd.f32 0.0, %v2439
    %v2441 = vpop.f32.mrb[0].mxu0
    %2442 = vdwg.mxu0
    %v2443 = vadd.f32 %v2341, %v2440
    %v2444 = vld [vmem:[#allocation2 + $0x500] sm:$0xff]
    %v2445 = vld [vmem:[#allocation2 + $0x508] sm:$0xff]
    %v2446 = vld [vmem:[#allocation2 + $0x510] sm:$0xff]
    %v2447 = vld [vmem:[#allocation2 + $0x518] sm:$0xff]
    %v2448 = vld [vmem:[#allocation2 + $0x520] sm:$0xff]
    %v2449 = vld [vmem:[#allocation2 + $0x528] sm:$0xff]
    %v2450 = vld [vmem:[#allocation2 + $0x530] sm:$0xff]
    %v2451 = vld [vmem:[#allocation2 + $0x538] sm:$0xff]
    %v2452 = vld [vmem:[#allocation2 + $0x540] sm:$0xff]
    %v2453 = vld [vmem:[#allocation2 + $0x548] sm:$0xff]
    %v2454 = vld [vmem:[#allocation2 + $0x550] sm:$0xff]
    %v2455 = vld [vmem:[#allocation2 + $0x558] sm:$0xff]
    %v2456 = vld [vmem:[#allocation2 + $0x560] sm:$0xff]
    %v2457 = vld [vmem:[#allocation2 + $0x568] sm:$0xff]
    %v2458 = vld [vmem:[#allocation2 + $0x570] sm:$0xff]
    %v2459 = vld [vmem:[#allocation2 + $0x578] sm:$0xff]
    %v2460 = vrot.slane %v1388, 2
    %v2461 = vrot.slane %v1390, 1
    %v2462 = vsel %vm1444, %v2461, %v2460
    %v2463 = vsel %vm1447, %v1392, %v2462
    %v2464 = vrot.slane %v1394, 7
    %v2465 = vsel %vm1450, %v2464, %v2463
    %v2466 = vrot.slane %v1396, 6
    %v2467 = vsel %vm1453, %v2466, %v2465
    %v2468 = vrot.slane %v1398, 5
    %v2469 = vsel %vm1456, %v2468, %v2467
    %v2470 = vrot.slane %v1400, 4
    %v2471 = vsel %vm1459, %v2470, %v2469
    %v2472 = vrot.slane %v1402, 3
    %v2473 = vsel %vm1462, %v2472, %v2471
    %2475 = vmatprep.subr.mxu0 0.0
    %2476 = vmatpush1.msra.mxu0 %v2444
    %2477 = vmatprep.subr.mxu0 0.0
    %2478 = vmatpush1.msra.mxu0 %v2445
    %2479 = vmatprep.subr.mxu0 0.0
    %2480 = vmatpush1.msra.mxu0 %v2446
    %2481 = vmatprep.subr.mxu0 0.0
    %2482 = vmatpush1.msra.mxu0 %v2447
    %2483 = vmatprep.subr.mxu0 0.0
    %2484 = vmatpush1.msra.mxu0 %v2448
    %2485 = vmatprep.subr.mxu0 0.0
    %2486 = vmatpush1.msra.mxu0 %v2449
    %2487 = vmatprep.subr.mxu0 0.0
    %2488 = vmatpush1.msra.mxu0 %v2450
    %2489 = vmatprep.subr.mxu0 0.0
    %2490 = vmatpush1.msra.mxu0 %v2451
    %2491 = vmatprep.subr.mxu0 0.0
    %2492 = vmatpush1.msra.mxu0 %v2452
    %2493 = vmatprep.subr.mxu0 0.0
    %2494 = vmatpush1.msra.mxu0 %v2453
    %2495 = vmatprep.subr.mxu0 0.0
    %2496 = vmatpush1.msra.mxu0 %v2454
    %2497 = vmatprep.subr.mxu0 0.0
    %2498 = vmatpush1.msra.mxu0 %v2455
    %2499 = vmatprep.subr.mxu0 0.0
    %2500 = vmatpush1.msra.mxu0 %v2456
    %2501 = vmatprep.subr.mxu0 0.0
    %2502 = vmatpush1.msra.mxu0 %v2457
    %2503 = vmatprep.subr.mxu0 0.0
    %2504 = vmatpush1.msra.mxu0 %v2458
    %2505 = vmatprep.subr.mxu0 0.0
    %2506 = vmatpush1.msra.mxu0 %v2459
    %2507 = vmatprep.subr.mxu0 0.0
    %2508 = vmatpush1.msra.mxu0 0.0
    %2509 = vmatprep.subr.mxu0 0.0
    %2510 = vmatpush1.msra.mxu0 0.0
    %2511 = vmatprep.subr.mxu0 0.0
    %2512 = vmatpush1.msra.mxu0 0.0
    %2513 = vmatprep.subr.mxu0 0.0
    %2514 = vmatpush1.msra.mxu0 0.0
    %2515 = vmatprep.subr.mxu0 0.0
    %2516 = vmatpush1.msra.mxu0 0.0
    %2517 = vmatprep.subr.mxu0 0.0
    %2518 = vmatpush1.msra.mxu0 0.0
    %2519 = vmatprep.subr.mxu0 0.0
    %2520 = vmatpush1.msra.mxu0 0.0
    %2521 = vmatprep.subr.mxu0 0.0
    %2522 = vmatpush1.msra.mxu0 0.0
    %2523 = vmatprep.subr.mxu0 0.0
    %2524 = vmatpush1.msra.mxu0 0.0
    %2525 = vmatprep.subr.mxu0 0.0
    %2526 = vmatpush1.msra.mxu0 0.0
    %2527 = vmatprep.subr.mxu0 0.0
    %2528 = vmatpush1.msra.mxu0 0.0
    %2529 = vmatprep.subr.mxu0 0.0
    %2530 = vmatpush1.msra.mxu0 0.0
    %2531 = vmatprep.subr.mxu0 0.0
    %2532 = vmatpush1.msra.mxu0 0.0
    %2533 = vmatprep.subr.mxu0 0.0
    %2534 = vmatpush1.msra.mxu0 0.0
    %2535 = vmatprep.subr.mxu0 0.0
    %2536 = vmatpush1.msra.mxu0 0.0
    %2537 = vmatprep.subr.mxu0 0.0
    %2538 = vmatpush1.msra.mxu0 0.0
    %2539 = vmatprep.mubr.f32.mxu0 0.0
    %2540 = vmatmul.mubr.f32.gmra.mrb[0].mxu0 %v2473
    %v2541 = vpop.f32.mrb[0].mxu0
    %v2542 = vadd.f32 0.0, %v2541
    %v2543 = vpop.f32.mrb[0].mxu0
    %2544 = vdwg.mxu0
    %v2545 = vadd.f32 %v2443, %v2542
    %v2546 = vld [vmem:[#allocation2 + $0x580] sm:$0xff]
    %v2547 = vld [vmem:[#allocation2 + $0x588] sm:$0xff]
    %v2548 = vld [vmem:[#allocation2 + $0x590] sm:$0xff]
    %v2549 = vld [vmem:[#allocation2 + $0x598] sm:$0xff]
    %v2550 = vld [vmem:[#allocation2 + $0x5a0] sm:$0xff]
    %v2551 = vld [vmem:[#allocation2 + $0x5a8] sm:$0xff]
    %v2552 = vld [vmem:[#allocation2 + $0x5b0] sm:$0xff]
    %v2553 = vld [vmem:[#allocation2 + $0x5b8] sm:$0xff]
    %v2554 = vld [vmem:[#allocation2 + $0x5c0] sm:$0xff]
    %v2555 = vld [vmem:[#allocation2 + $0x5c8] sm:$0xff]
    %v2556 = vld [vmem:[#allocation2 + $0x5d0] sm:$0xff]
    %v2557 = vld [vmem:[#allocation2 + $0x5d8] sm:$0xff]
    %v2558 = vld [vmem:[#allocation2 + $0x5e0] sm:$0xff]
    %v2559 = vld [vmem:[#allocation2 + $0x5e8] sm:$0xff]
    %v2560 = vld [vmem:[#allocation2 + $0x5f0] sm:$0xff]
    %v2561 = vld [vmem:[#allocation2 + $0x5f8] sm:$0xff]
    %v2562 = vrot.slane %v1388, 3
    %v2563 = vrot.slane %v1390, 2
    %v2564 = vsel %vm1444, %v2563, %v2562
    %v2565 = vrot.slane %v1392, 1
    %v2566 = vsel %vm1447, %v2565, %v2564
    %v2567 = vsel %vm1450, %v1394, %v2566
    %v2568 = vrot.slane %v1396, 7
    %v2569 = vsel %vm1453, %v2568, %v2567
    %v2570 = vrot.slane %v1398, 6
    %v2571 = vsel %vm1456, %v2570, %v2569
    %v2572 = vrot.slane %v1400, 5
    %v2573 = vsel %vm1459, %v2572, %v2571
    %v2574 = vrot.slane %v1402, 4
    %v2575 = vsel %vm1462, %v2574, %v2573
    %2577 = vmatprep.subr.mxu0 0.0
    %2578 = vmatpush1.msra.mxu0 %v2546
    %2579 = vmatprep.subr.mxu0 0.0
    %2580 = vmatpush1.msra.mxu0 %v2547
    %2581 = vmatprep.subr.mxu0 0.0
    %2582 = vmatpush1.msra.mxu0 %v2548
    %2583 = vmatprep.subr.mxu0 0.0
    %2584 = vmatpush1.msra.mxu0 %v2549
    %2585 = vmatprep.subr.mxu0 0.0
    %2586 = vmatpush1.msra.mxu0 %v2550
    %2587 = vmatprep.subr.mxu0 0.0
    %2588 = vmatpush1.msra.mxu0 %v2551
    %2589 = vmatprep.subr.mxu0 0.0
    %2590 = vmatpush1.msra.mxu0 %v2552
    %2591 = vmatprep.subr.mxu0 0.0
    %2592 = vmatpush1.msra.mxu0 %v2553
    %2593 = vmatprep.subr.mxu0 0.0
    %2594 = vmatpush1.msra.mxu0 %v2554
    %2595 = vmatprep.subr.mxu0 0.0
    %2596 = vmatpush1.msra.mxu0 %v2555
    %2597 = vmatprep.subr.mxu0 0.0
    %2598 = vmatpush1.msra.mxu0 %v2556
    %2599 = vmatprep.subr.mxu0 0.0
    %2600 = vmatpush1.msra.mxu0 %v2557
    %2601 = vmatprep.subr.mxu0 0.0
    %2602 = vmatpush1.msra.mxu0 %v2558
    %2603 = vmatprep.subr.mxu0 0.0
    %2604 = vmatpush1.msra.mxu0 %v2559
    %2605 = vmatprep.subr.mxu0 0.0
    %2606 = vmatpush1.msra.mxu0 %v2560
    %2607 = vmatprep.subr.mxu0 0.0
    %2608 = vmatpush1.msra.mxu0 %v2561
    %2609 = vmatprep.subr.mxu0 0.0
    %2610 = vmatpush1.msra.mxu0 0.0
    %2611 = vmatprep.subr.mxu0 0.0
    %2612 = vmatpush1.msra.mxu0 0.0
    %2613 = vmatprep.subr.mxu0 0.0
    %2614 = vmatpush1.msra.mxu0 0.0
    %2615 = vmatprep.subr.mxu0 0.0
    %2616 = vmatpush1.msra.mxu0 0.0
    %2617 = vmatprep.subr.mxu0 0.0
    %2618 = vmatpush1.msra.mxu0 0.0
    %2619 = vmatprep.subr.mxu0 0.0
    %2620 = vmatpush1.msra.mxu0 0.0
    %2621 = vmatprep.subr.mxu0 0.0
    %2622 = vmatpush1.msra.mxu0 0.0
    %2623 = vmatprep.subr.mxu0 0.0
    %2624 = vmatpush1.msra.mxu0 0.0
    %2625 = vmatprep.subr.mxu0 0.0
    %2626 = vmatpush1.msra.mxu0 0.0
    %2627 = vmatprep.subr.mxu0 0.0
    %2628 = vmatpush1.msra.mxu0 0.0
    %2629 = vmatprep.subr.mxu0 0.0
    %2630 = vmatpush1.msra.mxu0 0.0
    %2631 = vmatprep.subr.mxu0 0.0
    %2632 = vmatpush1.msra.mxu0 0.0
    %2633 = vmatprep.subr.mxu0 0.0
    %2634 = vmatpush1.msra.mxu0 0.0
    %2635 = vmatprep.subr.mxu0 0.0
    %2636 = vmatpush1.msra.mxu0 0.0
    %2637 = vmatprep.subr.mxu0 0.0
    %2638 = vmatpush1.msra.mxu0 0.0
    %2639 = vmatprep.subr.mxu0 0.0
    %2640 = vmatpush1.msra.mxu0 0.0
    %2641 = vmatprep.mubr.f32.mxu0 0.0
    %2642 = vmatmul.mubr.f32.gmra.mrb[0].mxu0 %v2575
    %v2643 = vpop.f32.mrb[0].mxu0
    %v2644 = vadd.f32 0.0, %v2643
    %v2645 = vpop.f32.mrb[0].mxu0
    %2646 = vdwg.mxu0
    %v2647 = vadd.f32 %v2545, %v2644
    %v2648 = vld [vmem:[#allocation2 + $0x600] sm:$0xff]
    %v2649 = vld [vmem:[#allocation2 + $0x608] sm:$0xff]
    %v2650 = vld [vmem:[#allocation2 + $0x610] sm:$0xff]
    %v2651 = vld [vmem:[#allocation2 + $0x618] sm:$0xff]
    %v2652 = vld [vmem:[#allocation2 + $0x620] sm:$0xff]
    %v2653 = vld [vmem:[#allocation2 + $0x628] sm:$0xff]
    %v2654 = vld [vmem:[#allocation2 + $0x630] sm:$0xff]
    %v2655 = vld [vmem:[#allocation2 + $0x638] sm:$0xff]
    %v2656 = vld [vmem:[#allocation2 + $0x640] sm:$0xff]
    %v2657 = vld [vmem:[#allocation2 + $0x648] sm:$0xff]
    %v2658 = vld [vmem:[#allocation2 + $0x650] sm:$0xff]
    %v2659 = vld [vmem:[#allocation2 + $0x658] sm:$0xff]
    %v2660 = vld [vmem:[#allocation2 + $0x660] sm:$0xff]
    %v2661 = vld [vmem:[#allocation2 + $0x668] sm:$0xff]
    %v2662 = vld [vmem:[#allocation2 + $0x670] sm:$0xff]
    %v2663 = vld [vmem:[#allocation2 + $0x678] sm:$0xff]
    %v2664 = vrot.slane %v1388, 4
    %v2665 = vrot.slane %v1390, 3
    %v2666 = vsel %vm1444, %v2665, %v2664
    %v2667 = vrot.slane %v1392, 2
    %v2668 = vsel %vm1447, %v2667, %v2666
    %v2669 = vrot.slane %v1394, 1
    %v2670 = vsel %vm1450, %v2669, %v2668
    %v2671 = vsel %vm1453, %v1396, %v2670
    %v2672 = vrot.slane %v1398, 7
    %v2673 = vsel %vm1456, %v2672, %v2671
    %v2674 = vrot.slane %v1400, 6
    %v2675 = vsel %vm1459, %v2674, %v2673
    %v2676 = vrot.slane %v1402, 5
    %v2677 = vsel %vm1462, %v2676, %v2675
    %2679 = vmatprep.subr.mxu0 0.0
    %2680 = vmatpush1.msra.mxu0 %v2648
    %2681 = vmatprep.subr.mxu0 0.0
    %2682 = vmatpush1.msra.mxu0 %v2649
    %2683 = vmatprep.subr.mxu0 0.0
    %2684 = vmatpush1.msra.mxu0 %v2650
    %2685 = vmatprep.subr.mxu0 0.0
    %2686 = vmatpush1.msra.mxu0 %v2651
    %2687 = vmatprep.subr.mxu0 0.0
    %2688 = vmatpush1.msra.mxu0 %v2652
    %2689 = vmatprep.subr.mxu0 0.0
    %2690 = vmatpush1.msra.mxu0 %v2653
    %2691 = vmatprep.subr.mxu0 0.0
    %2692 = vmatpush1.msra.mxu0 %v2654
    %2693 = vmatprep.subr.mxu0 0.0
    %2694 = vmatpush1.msra.mxu0 %v2655
    %2695 = vmatprep.subr.mxu0 0.0
    %2696 = vmatpush1.msra.mxu0 %v2656
    %2697 = vmatprep.subr.mxu0 0.0
    %2698 = vmatpush1.msra.mxu0 %v2657
    %2699 = vmatprep.subr.mxu0 0.0
    %2700 = vmatpush1.msra.mxu0 %v2658
    %2701 = vmatprep.subr.mxu0 0.0
    %2702 = vmatpush1.msra.mxu0 %v2659
    %2703 = vmatprep.subr.mxu0 0.0
    %2704 = vmatpush1.msra.mxu0 %v2660
    %2705 = vmatprep.subr.mxu0 0.0
    %2706 = vmatpush1.msra.mxu0 %v2661
    %2707 = vmatprep.subr.mxu0 0.0
    %2708 = vmatpush1.msra.mxu0 %v2662
    %2709 = vmatprep.subr.mxu0 0.0
    %2710 = vmatpush1.msra.mxu0 %v2663
    %2711 = vmatprep.subr.mxu0 0.0
    %2712 = vmatpush1.msra.mxu0 0.0
    %2713 = vmatprep.subr.mxu0 0.0
    %2714 = vmatpush1.msra.mxu0 0.0
    %2715 = vmatprep.subr.mxu0 0.0
    %2716 = vmatpush1.msra.mxu0 0.0
    %2717 = vmatprep.subr.mxu0 0.0
    %2718 = vmatpush1.msra.mxu0 0.0
    %2719 = vmatprep.subr.mxu0 0.0
    %2720 = vmatpush1.msra.mxu0 0.0
    %2721 = vmatprep.subr.mxu0 0.0
    %2722 = vmatpush1.msra.mxu0 0.0
    %2723 = vmatprep.subr.mxu0 0.0
    %2724 = vmatpush1.msra.mxu0 0.0
    %2725 = vmatprep.subr.mxu0 0.0
    %2726 = vmatpush1.msra.mxu0 0.0
    %2727 = vmatprep.subr.mxu0 0.0
    %2728 = vmatpush1.msra.mxu0 0.0
    %2729 = vmatprep.subr.mxu0 0.0
    %2730 = vmatpush1.msra.mxu0 0.0
    %2731 = vmatprep.subr.mxu0 0.0
    %2732 = vmatpush1.msra.mxu0 0.0
    %2733 = vmatprep.subr.mxu0 0.0
    %2734 = vmatpush1.msra.mxu0 0.0
    %2735 = vmatprep.subr.mxu0 0.0
    %2736 = vmatpush1.msra.mxu0 0.0
    %2737 = vmatprep.subr.mxu0 0.0
    %2738 = vmatpush1.msra.mxu0 0.0
    %2739 = vmatprep.subr.mxu0 0.0
    %2740 = vmatpush1.msra.mxu0 0.0
    %2741 = vmatprep.subr.mxu0 0.0
    %2742 = vmatpush1.msra.mxu0 0.0
    %2743 = vmatprep.mubr.f32.mxu0 0.0
    %2744 = vmatmul.mubr.f32.gmra.mrb[0].mxu0 %v2677
    %v2745 = vpop.f32.mrb[0].mxu0
    %v2746 = vadd.f32 0.0, %v2745
    %v2747 = vpop.f32.mrb[0].mxu0
    %2748 = vdwg.mxu0
    %v2749 = vadd.f32 %v2647, %v2746
    %v2750 = vld [vmem:[#allocation2 + $0x680] sm:$0xff]
    %v2751 = vld [vmem:[#allocation2 + $0x688] sm:$0xff]
    %v2752 = vld [vmem:[#allocation2 + $0x690] sm:$0xff]
    %v2753 = vld [vmem:[#allocation2 + $0x698] sm:$0xff]
    %v2754 = vld [vmem:[#allocation2 + $0x6a0] sm:$0xff]
    %v2755 = vld [vmem:[#allocation2 + $0x6a8] sm:$0xff]
    %v2756 = vld [vmem:[#allocation2 + $0x6b0] sm:$0xff]
    %v2757 = vld [vmem:[#allocation2 + $0x6b8] sm:$0xff]
    %v2758 = vld [vmem:[#allocation2 + $0x6c0] sm:$0xff]
    %v2759 = vld [vmem:[#allocation2 + $0x6c8] sm:$0xff]
    %v2760 = vld [vmem:[#allocation2 + $0x6d0] sm:$0xff]
    %v2761 = vld [vmem:[#allocation2 + $0x6d8] sm:$0xff]
    %v2762 = vld [vmem:[#allocation2 + $0x6e0] sm:$0xff]
    %v2763 = vld [vmem:[#allocation2 + $0x6e8] sm:$0xff]
    %v2764 = vld [vmem:[#allocation2 + $0x6f0] sm:$0xff]
    %v2765 = vld [vmem:[#allocation2 + $0x6f8] sm:$0xff]
    %v2766 = vrot.slane %v1388, 5
    %v2767 = vrot.slane %v1390, 4
    %v2768 = vsel %vm1444, %v2767, %v2766
    %v2769 = vrot.slane %v1392, 3
    %v2770 = vsel %vm1447, %v2769, %v2768
    %v2771 = vrot.slane %v1394, 2
    %v2772 = vsel %vm1450, %v2771, %v2770
    %v2773 = vrot.slane %v1396, 1
    %v2774 = vsel %vm1453, %v2773, %v2772
    %v2775 = vsel %vm1456, %v1398, %v2774
    %v2776 = vrot.slane %v1400, 7
    %v2777 = vsel %vm1459, %v2776, %v2775
    %v2778 = vrot.slane %v1402, 6
    %v2779 = vsel %vm1462, %v2778, %v2777
    %2781 = vmatprep.subr.mxu0 0.0
    %2782 = vmatpush1.msra.mxu0 %v2750
    %2783 = vmatprep.subr.mxu0 0.0
    %2784 = vmatpush1.msra.mxu0 %v2751
    %2785 = vmatprep.subr.mxu0 0.0
    %2786 = vmatpush1.msra.mxu0 %v2752
    %2787 = vmatprep.subr.mxu0 0.0
    %2788 = vmatpush1.msra.mxu0 %v2753
    %2789 = vmatprep.subr.mxu0 0.0
    %2790 = vmatpush1.msra.mxu0 %v2754
    %2791 = vmatprep.subr.mxu0 0.0
    %2792 = vmatpush1.msra.mxu0 %v2755
    %2793 = vmatprep.subr.mxu0 0.0
    %2794 = vmatpush1.msra.mxu0 %v2756
    %2795 = vmatprep.subr.mxu0 0.0
    %2796 = vmatpush1.msra.mxu0 %v2757
    %2797 = vmatprep.subr.mxu0 0.0
    %2798 = vmatpush1.msra.mxu0 %v2758
    %2799 = vmatprep.subr.mxu0 0.0
    %2800 = vmatpush1.msra.mxu0 %v2759
    %2801 = vmatprep.subr.mxu0 0.0
    %2802 = vmatpush1.msra.mxu0 %v2760
    %2803 = vmatprep.subr.mxu0 0.0
    %2804 = vmatpush1.msra.mxu0 %v2761
    %2805 = vmatprep.subr.mxu0 0.0
    %2806 = vmatpush1.msra.mxu0 %v2762
    %2807 = vmatprep.subr.mxu0 0.0
    %2808 = vmatpush1.msra.mxu0 %v2763
    %2809 = vmatprep.subr.mxu0 0.0
    %2810 = vmatpush1.msra.mxu0 %v2764
    %2811 = vmatprep.subr.mxu0 0.0
    %2812 = vmatpush1.msra.mxu0 %v2765
    %2813 = vmatprep.subr.mxu0 0.0
    %2814 = vmatpush1.msra.mxu0 0.0
    %2815 = vmatprep.subr.mxu0 0.0
    %2816 = vmatpush1.msra.mxu0 0.0
    %2817 = vmatprep.subr.mxu0 0.0
    %2818 = vmatpush1.msra.mxu0 0.0
    %2819 = vmatprep.subr.mxu0 0.0
    %2820 = vmatpush1.msra.mxu0 0.0
    %2821 = vmatprep.subr.mxu0 0.0
    %2822 = vmatpush1.msra.mxu0 0.0
    %2823 = vmatprep.subr.mxu0 0.0
    %2824 = vmatpush1.msra.mxu0 0.0
    %2825 = vmatprep.subr.mxu0 0.0
    %2826 = vmatpush1.msra.mxu0 0.0
    %2827 = vmatprep.subr.mxu0 0.0
    %2828 = vmatpush1.msra.mxu0 0.0
    %2829 = vmatprep.subr.mxu0 0.0
    %2830 = vmatpush1.msra.mxu0 0.0
    %2831 = vmatprep.subr.mxu0 0.0
    %2832 = vmatpush1.msra.mxu0 0.0
    %2833 = vmatprep.subr.mxu0 0.0
    %2834 = vmatpush1.msra.mxu0 0.0
    %2835 = vmatprep.subr.mxu0 0.0
    %2836 = vmatpush1.msra.mxu0 0.0
    %2837 = vmatprep.subr.mxu0 0.0
    %2838 = vmatpush1.msra.mxu0 0.0
    %2839 = vmatprep.subr.mxu0 0.0
    %2840 = vmatpush1.msra.mxu0 0.0
    %2841 = vmatprep.subr.mxu0 0.0
    %2842 = vmatpush1.msra.mxu0 0.0
    %2843 = vmatprep.subr.mxu0 0.0
    %2844 = vmatpush1.msra.mxu0 0.0
    %2845 = vmatprep.mubr.f32.mxu0 0.0
    %2846 = vmatmul.mubr.f32.gmra.mrb[0].mxu0 %v2779
    %v2847 = vpop.f32.mrb[0].mxu0
    %v2848 = vadd.f32 0.0, %v2847
    %v2849 = vpop.f32.mrb[0].mxu0
    %2850 = vdwg.mxu0
    %v2851 = vadd.f32 %v2749, %v2848
    %v2852 = vld [vmem:[#allocation2 + $0x700] sm:$0xff]
    %v2853 = vld [vmem:[#allocation2 + $0x708] sm:$0xff]
    %v2854 = vld [vmem:[#allocation2 + $0x710] sm:$0xff]
    %v2855 = vld [vmem:[#allocation2 + $0x718] sm:$0xff]
    %v2856 = vld [vmem:[#allocation2 + $0x720] sm:$0xff]
    %v2857 = vld [vmem:[#allocation2 + $0x728] sm:$0xff]
    %v2858 = vld [vmem:[#allocation2 + $0x730] sm:$0xff]
    %v2859 = vld [vmem:[#allocation2 + $0x738] sm:$0xff]
    %v2860 = vld [vmem:[#allocation2 + $0x740] sm:$0xff]
    %v2861 = vld [vmem:[#allocation2 + $0x748] sm:$0xff]
    %v2862 = vld [vmem:[#allocation2 + $0x750] sm:$0xff]
    %v2863 = vld [vmem:[#allocation2 + $0x758] sm:$0xff]
    %v2864 = vld [vmem:[#allocation2 + $0x760] sm:$0xff]
    %v2865 = vld [vmem:[#allocation2 + $0x768] sm:$0xff]
    %v2866 = vld [vmem:[#allocation2 + $0x770] sm:$0xff]
    %v2867 = vld [vmem:[#allocation2 + $0x778] sm:$0xff]
    %v2868 = vrot.slane %v1388, 6
    %v2869 = vrot.slane %v1390, 5
    %v2870 = vsel %vm1444, %v2869, %v2868
    %v2871 = vrot.slane %v1392, 4
    %v2872 = vsel %vm1447, %v2871, %v2870
    %v2873 = vrot.slane %v1394, 3
    %v2874 = vsel %vm1450, %v2873, %v2872
    %v2875 = vrot.slane %v1396, 2
    %v2876 = vsel %vm1453, %v2875, %v2874
    %v2877 = vrot.slane %v1398, 1
    %v2878 = vsel %vm1456, %v2877, %v2876
    %v2879 = vsel %vm1459, %v1400, %v2878
    %v2880 = vrot.slane %v1402, 7
    %v2881 = vsel %vm1462, %v2880, %v2879
    %2883 = vmatprep.subr.mxu0 0.0
    %2884 = vmatpush1.msra.mxu0 %v2852
    %2885 = vmatprep.subr.mxu0 0.0
    %2886 = vmatpush1.msra.mxu0 %v2853
    %2887 = vmatprep.subr.mxu0 0.0
    %2888 = vmatpush1.msra.mxu0 %v2854
    %2889 = vmatprep.subr.mxu0 0.0
    %2890 = vmatpush1.msra.mxu0 %v2855
    %2891 = vmatprep.subr.mxu0 0.0
    %2892 = vmatpush1.msra.mxu0 %v2856
    %2893 = vmatprep.subr.mxu0 0.0
    %2894 = vmatpush1.msra.mxu0 %v2857
    %2895 = vmatprep.subr.mxu0 0.0
    %2896 = vmatpush1.msra.mxu0 %v2858
    %2897 = vmatprep.subr.mxu0 0.0
    %2898 = vmatpush1.msra.mxu0 %v2859
    %2899 = vmatprep.subr.mxu0 0.0
    %2900 = vmatpush1.msra.mxu0 %v2860
    %2901 = vmatprep.subr.mxu0 0.0
    %2902 = vmatpush1.msra.mxu0 %v2861
    %2903 = vmatprep.subr.mxu0 0.0
    %2904 = vmatpush1.msra.mxu0 %v2862
    %2905 = vmatprep.subr.mxu0 0.0
    %2906 = vmatpush1.msra.mxu0 %v2863
    %2907 = vmatprep.subr.mxu0 0.0
    %2908 = vmatpush1.msra.mxu0 %v2864
    %2909 = vmatprep.subr.mxu0 0.0
    %2910 = vmatpush1.msra.mxu0 %v2865
    %2911 = vmatprep.subr.mxu0 0.0
    %2912 = vmatpush1.msra.mxu0 %v2866
    %2913 = vmatprep.subr.mxu0 0.0
    %2914 = vmatpush1.msra.mxu0 %v2867
    %2915 = vmatprep.subr.mxu0 0.0
    %2916 = vmatpush1.msra.mxu0 0.0
    %2917 = vmatprep.subr.mxu0 0.0
    %2918 = vmatpush1.msra.mxu0 0.0
    %2919 = vmatprep.subr.mxu0 0.0
    %2920 = vmatpush1.msra.mxu0 0.0
    %2921 = vmatprep.subr.mxu0 0.0
    %2922 = vmatpush1.msra.mxu0 0.0
    %2923 = vmatprep.subr.mxu0 0.0
    %2924 = vmatpush1.msra.mxu0 0.0
    %2925 = vmatprep.subr.mxu0 0.0
    %2926 = vmatpush1.msra.mxu0 0.0
    %2927 = vmatprep.subr.mxu0 0.0
    %2928 = vmatpush1.msra.mxu0 0.0
    %2929 = vmatprep.subr.mxu0 0.0
    %2930 = vmatpush1.msra.mxu0 0.0
    %2931 = vmatprep.subr.mxu0 0.0
    %2932 = vmatpush1.msra.mxu0 0.0
    %2933 = vmatprep.subr.mxu0 0.0
    %2934 = vmatpush1.msra.mxu0 0.0
    %2935 = vmatprep.subr.mxu0 0.0
    %2936 = vmatpush1.msra.mxu0 0.0
    %2937 = vmatprep.subr.mxu0 0.0
    %2938 = vmatpush1.msra.mxu0 0.0
    %2939 = vmatprep.subr.mxu0 0.0
    %2940 = vmatpush1.msra.mxu0 0.0
    %2941 = vmatprep.subr.mxu0 0.0
    %2942 = vmatpush1.msra.mxu0 0.0
    %2943 = vmatprep.subr.mxu0 0.0
    %2944 = vmatpush1.msra.mxu0 0.0
    %2945 = vmatprep.subr.mxu0 0.0
    %2946 = vmatpush1.msra.mxu0 0.0
    %2947 = vmatprep.mubr.f32.mxu0 0.0
    %2948 = vmatmul.mubr.f32.gmra.mrb[0].mxu0 %v2881
    %v2949 = vpop.f32.mrb[0].mxu0
    %v2950 = vadd.f32 0.0, %v2949
    %v2951 = vpop.f32.mrb[0].mxu0
    %2952 = vdwg.mxu0
    %v2953 = vadd.f32 %v2851, %v2950
    %v2954 = vld [vmem:[#allocation2 + $0x780] sm:$0xff]
    %v2955 = vld [vmem:[#allocation2 + $0x788] sm:$0xff]
    %v2956 = vld [vmem:[#allocation2 + $0x790] sm:$0xff]
    %v2957 = vld [vmem:[#allocation2 + $0x798] sm:$0xff]
    %v2958 = vld [vmem:[#allocation2 + $0x7a0] sm:$0xff]
    %v2959 = vld [vmem:[#allocation2 + $0x7a8] sm:$0xff]
    %v2960 = vld [vmem:[#allocation2 + $0x7b0] sm:$0xff]
    %v2961 = vld [vmem:[#allocation2 + $0x7b8] sm:$0xff]
    %v2962 = vld [vmem:[#allocation2 + $0x7c0] sm:$0xff]
    %v2963 = vld [vmem:[#allocation2 + $0x7c8] sm:$0xff]
    %v2964 = vld [vmem:[#allocation2 + $0x7d0] sm:$0xff]
    %v2965 = vld [vmem:[#allocation2 + $0x7d8] sm:$0xff]
    %v2966 = vld [vmem:[#allocation2 + $0x7e0] sm:$0xff]
    %v2967 = vld [vmem:[#allocation2 + $0x7e8] sm:$0xff]
    %v2968 = vld [vmem:[#allocation2 + $0x7f0] sm:$0xff]
    %v2969 = vld [vmem:[#allocation2 + $0x7f8] sm:$0xff]
    %v2970 = vrot.slane %v1388, 7
    %v2971 = vrot.slane %v1390, 6
    %v2972 = vsel %vm1444, %v2971, %v2970
    %v2973 = vrot.slane %v1392, 5
    %v2974 = vsel %vm1447, %v2973, %v2972
    %v2975 = vrot.slane %v1394, 4
    %v2976 = vsel %vm1450, %v2975, %v2974
    %v2977 = vrot.slane %v1396, 3
    %v2978 = vsel %vm1453, %v2977, %v2976
    %v2979 = vrot.slane %v1398, 2
    %v2980 = vsel %vm1456, %v2979, %v2978
    %v2981 = vrot.slane %v1400, 1
    %v2982 = vsel %vm1459, %v2981, %v2980
    %v2983 = vsel %vm1462, %v1402, %v2982
    %2985 = vmatprep.subr.mxu0 0.0
    %2986 = vmatpush1.msra.mxu0 %v2954
    %2987 = vmatprep.subr.mxu0 0.0
    %2988 = vmatpush1.msra.mxu0 %v2955
    %2989 = vmatprep.subr.mxu0 0.0
    %2990 = vmatpush1.msra.mxu0 %v2956
    %2991 = vmatprep.subr.mxu0 0.0
    %2992 = vmatpush1.msra.mxu0 %v2957
    %2993 = vmatprep.subr.mxu0 0.0
    %2994 = vmatpush1.msra.mxu0 %v2958
    %2995 = vmatprep.subr.mxu0 0.0
    %2996 = vmatpush1.msra.mxu0 %v2959
    %2997 = vmatprep.subr.mxu0 0.0
    %2998 = vmatpush1.msra.mxu0 %v2960
    %2999 = vmatprep.subr.mxu0 0.0
    %3000 = vmatpush1.msra.mxu0 %v2961
    %3001 = vmatprep.subr.mxu0 0.0
    %3002 = vmatpush1.msra.mxu0 %v2962
    %3003 = vmatprep.subr.mxu0 0.0
    %3004 = vmatpush1.msra.mxu0 %v2963
    %3005 = vmatprep.subr.mxu0 0.0
    %3006 = vmatpush1.msra.mxu0 %v2964
    %3007 = vmatprep.subr.mxu0 0.0
    %3008 = vmatpush1.msra.mxu0 %v2965
    %3009 = vmatprep.subr.mxu0 0.0
    %3010 = vmatpush1.msra.mxu0 %v2966
    %3011 = vmatprep.subr.mxu0 0.0
    %3012 = vmatpush1.msra.mxu0 %v2967
    %3013 = vmatprep.subr.mxu0 0.0
    %3014 = vmatpush1.msra.mxu0 %v2968
    %3015 = vmatprep.subr.mxu0 0.0
    %3016 = vmatpush1.msra.mxu0 %v2969
    %3017 = vmatprep.subr.mxu0 0.0
    %3018 = vmatpush1.msra.mxu0 0.0
    %3019 = vmatprep.subr.mxu0 0.0
    %3020 = vmatpush1.msra.mxu0 0.0
    %3021 = vmatprep.subr.mxu0 0.0
    %3022 = vmatpush1.msra.mxu0 0.0
    %3023 = vmatprep.subr.mxu0 0.0
    %3024 = vmatpush1.msra.mxu0 0.0
    %3025 = vmatprep.subr.mxu0 0.0
    %3026 = vmatpush1.msra.mxu0 0.0
    %3027 = vmatprep.subr.mxu0 0.0
    %3028 = vmatpush1.msra.mxu0 0.0
    %3029 = vmatprep.subr.mxu0 0.0
    %3030 = vmatpush1.msra.mxu0 0.0
    %3031 = vmatprep.subr.mxu0 0.0
    %3032 = vmatpush1.msra.mxu0 0.0
    %3033 = vmatprep.subr.mxu0 0.0
    %3034 = vmatpush1.msra.mxu0 0.0
    %3035 = vmatprep.subr.mxu0 0.0
    %3036 = vmatpush1.msra.mxu0 0.0
    %3037 = vmatprep.subr.mxu0 0.0
    %3038 = vmatpush1.msra.mxu0 0.0
    %3039 = vmatprep.subr.mxu0 0.0
    %3040 = vmatpush1.msra.mxu0 0.0
    %3041 = vmatprep.subr.mxu0 0.0
    %3042 = vmatpush1.msra.mxu0 0.0
    %3043 = vmatprep.subr.mxu0 0.0
    %3044 = vmatpush1.msra.mxu0 0.0
    %3045 = vmatprep.subr.mxu0 0.0
    %3046 = vmatpush1.msra.mxu0 0.0
    %3047 = vmatprep.subr.mxu0 0.0
    %3048 = vmatpush1.msra.mxu0 0.0
    %3049 = vmatprep.mubr.f32.mxu0 0.0
    %3050 = vmatmul.mubr.f32.gmra.mrb[0].mxu0 %v2983
    %v3051 = vpop.f32.mrb[0].mxu0
    %v3052 = vadd.f32 0.0, %v3051
    %v3053 = vpop.f32.mrb[0].mxu0
    %3054 = vdwg.mxu0
    %v3055 = vadd.f32 %v2953, %v3052
    %v3056 = vld [vmem:[%s6] sm:$0x1]
    %v3058 = vlaneseq
    %v3059 = vshrl.u32 %v3058, 7
    %v3060 = vsub.s32 0, %v3059
    %v3061 = vrot.slane %v3056, %v3060
    %v3063 = vadd.f32 %v3055, %v3061
    %3064 = vmax.xlane.f32.xlu0 %v3063
    %v3065 = vpop.xlane.xlu0 %3064
    %v3066 = vsub.f32 %v3063, %v3065
    %v3067 = vmul.f32 %v3066, 1.442695
    %v3068 = vpow.pop %v3067
    %3069 = vadd.xlane.f32.xlu0 %v3068
    %v3070 = vpop.xlane.xlu0 %3069
    %v3071 = vrcp.pop %v3070
    %v3072 = vmul.f32 %v3068, %v3071
    %3073 = vst [vmem:[%s7] sm:$0xff] %v3072
    // Predicated region
    $region34: #{forward.1} parent=1 // pred_check
      _
    $region35: #{forward.1} parent=1 // pred_check_branch
      %3075 = sbr.rel (0) target = $region37
    $region36: #{forward.1} parent=1 // pred_region
      _
    $region37: #{forward.1} parent=1 // pred_fallthru
      _
    // Predicated region
    $region38: #{forward.1} parent=1 // pred_check
      _
    $region39: #{forward.1} parent=1 // pred_check_branch
      %3077 = sbr.rel (0) target = $region41
    $region40: #{forward.1} parent=1 // pred_region
      _
    $region41: #{forward.1} parent=1 // pred_fallthru
      _
    %3078 = vsyncpa [#allocation3], 1

</llo_original>
